<compile_context>
chip_gen: v7x
topology: tpu7x:2x2x1
jax: 0.10.0
libtpu: 0.0.40
codegen_flags: <defaults>
</compile_context>

<pallas_src>
import functools
import math

import jax
import jax.numpy as jnp
from jax import lax
from jax.experimental import pallas as pl
from jax.experimental.pallas import tpu as pltpu

LN_EPS = 1e-5


def _round_up(n, m):
    return (n + m - 1) // m * m


def _row_tile(n, tm_max=256):
    """Row tile: multiple of 8 (sublane), <= tm_max, and (when possible) >= 2 grid
    steps so the 'parallel' row axis can shard across v7x's two TensorCores."""
    tm = max(8, _round_up(-(-n // 2), 8))
    return min(tm, tm_max, _round_up(n, 8))


def _pick_ff_tile(d_ff, cap=2048):
    """d_ff tile: full dim when small, else a 128-multiple divisor (streamed W1/W2)."""
    if d_ff <= cap or d_ff % 128 != 0:
        return d_ff
    for t in (2048, 1024, 512, 256, 128):
        if d_ff % t == 0:
            return t
    return d_ff


# ---------------------------------------------------------------------------
# Dense (nn.Linear): y = x @ W + b      (bf16 MXU operands, f32 accumulation)
# ---------------------------------------------------------------------------
def _dense_kernel(x_ref, w_ref, b_ref, o_ref):
    y = jnp.dot(x_ref[...], w_ref[...], preferred_element_type=jnp.float32)
    o_ref[...] = (y + b_ref[...]).astype(o_ref.dtype)


def dense(x2d, w_bf16, b_f32, *, out_dtype=jnp.bfloat16, tm_max=256):
    # TODO(synk): for weights that exceed VMEM block the feature dims with a VMEM
    #             accumulator; weights at these sizes stay fully resident.
    n, d_in = x2d.shape
    d_out = w_bf16.shape[1]
    tm = _row_tile(n, tm_max)
    itemsize = jnp.dtype(out_dtype).itemsize
    return pl.pallas_call(
        _dense_kernel,
        out_shape=jax.ShapeDtypeStruct((n, d_out), out_dtype),
        grid_spec=pltpu.PrefetchScalarGridSpec(
            num_scalar_prefetch=0,
            grid=(pl.cdiv(n, tm),),
            in_specs=[
                pl.BlockSpec((tm, d_in), lambda i: (i, 0)),
                pl.BlockSpec((d_in, d_out), lambda i: (0, 0)),
                pl.BlockSpec((1, d_out), lambda i: (0, 0)),
            ],
            out_specs=pl.BlockSpec((tm, d_out), lambda i: (i, 0)),
        ),
        compiler_params=pltpu.CompilerParams(dimension_semantics=("parallel",)),
        cost_estimate=pl.CostEstimate(
            flops=2 * n * d_in * d_out,
            transcendentals=0,
            bytes_accessed=2 * (n * d_in + d_in * d_out) + 4 * d_out + itemsize * n * d_out,
        ),
    )(x2d.astype(jnp.bfloat16), w_bf16, b_f32)


# ---------------------------------------------------------------------------
# Dense + residual add + LayerNorm fused epilogue:  out = LN(x @ W + b + res)
# ---------------------------------------------------------------------------
def _dense_add_ln_kernel(x_ref, w_ref, b_ref, r_ref, g_ref, bt_ref, o_ref, *, eps):
    y = jnp.dot(x_ref[...], w_ref[...], preferred_element_type=jnp.float32) + b_ref[...]
    h = y + r_ref[...]
    mean = jnp.mean(h, axis=-1, keepdims=True)
    c = h - mean
    var = jnp.mean(c * c, axis=-1, keepdims=True)
    o_ref[...] = (c * lax.rsqrt(var + eps) * g_ref[...] + bt_ref[...]).astype(o_ref.dtype)


def dense_add_ln(x2d, w_bf16, b_f32, res2d, gamma, beta, *, tm_max=256):
    n, d_in = x2d.shape
    d_out = w_bf16.shape[1]
    tm = _row_tile(n, tm_max)
    return pl.pallas_call(
        functools.partial(_dense_add_ln_kernel, eps=LN_EPS),
        out_shape=jax.ShapeDtypeStruct((n, d_out), jnp.float32),
        grid_spec=pltpu.PrefetchScalarGridSpec(
            num_scalar_prefetch=0,
            grid=(pl.cdiv(n, tm),),
            in_specs=[
                pl.BlockSpec((tm, d_in), lambda i: (i, 0)),
                pl.BlockSpec((d_in, d_out), lambda i: (0, 0)),
                pl.BlockSpec((1, d_out), lambda i: (0, 0)),
                pl.BlockSpec((tm, d_out), lambda i: (i, 0)),
                pl.BlockSpec((1, d_out), lambda i: (0, 0)),
                pl.BlockSpec((1, d_out), lambda i: (0, 0)),
            ],
            out_specs=pl.BlockSpec((tm, d_out), lambda i: (i, 0)),
        ),
        compiler_params=pltpu.CompilerParams(dimension_semantics=("parallel",)),
        cost_estimate=pl.CostEstimate(
            flops=2 * n * d_in * d_out + 8 * n * d_out,
            transcendentals=n,
            bytes_accessed=2 * (n * d_in + d_in * d_out) + 4 * (2 * n * d_out + 3 * d_out),
        ),
    )(x2d.astype(jnp.bfloat16), w_bf16, b_f32, res2d.astype(jnp.float32), gamma, beta)


# ---------------------------------------------------------------------------
# Attention: all heads of one batch per grid step, lane-dense (tq, d_model) IO.
# scores = (q/sqrt(d_k)) @ k^T ; masked_fill(mask==0, 1e-09) ; softmax ; @ v
# ---------------------------------------------------------------------------
def _attn_kernel(*refs, heads, d_k, scale, has_mask):
    if has_mask:
        m_ref, q_ref, k_ref, v_ref, o_ref = refs
        m = m_ref[...]
    else:
        q_ref, k_ref, v_ref, o_ref = refs
        m = None
    for h in range(heads):                      # heads is a small static constant -> unrolled
        sl = slice(h * d_k, (h + 1) * d_k)
        q = (q_ref[:, sl].astype(jnp.float32) * scale).astype(jnp.bfloat16)
        k = k_ref[:, sl]
        v = v_ref[:, sl]
        s = lax.dot_general(q, k, (((1,), (1,)), ((), ())),
                            preferred_element_type=jnp.float32)
        if m is not None:
            s = jnp.where(m == 0.0, 1e-09, s)   # torch: masked_fill(mask == 0, 1e-09)
        s = s - jnp.max(s, axis=-1, keepdims=True)
        p = jnp.exp(s)
        l = jnp.sum(p, axis=-1, keepdims=True)
        o = jnp.dot(p.astype(jnp.bfloat16), v, preferred_element_type=jnp.float32)
        o_ref[:, sl] = (o * pl.reciprocal(l, approx=True)).astype(o_ref.dtype)


def attention_all_heads(q, k, v, mask, *, heads):
    b, tq, d_model = q.shape
    tk = k.shape[1]
    assert d_model % heads == 0
    d_k = d_model // heads
    scale = 1.0 / math.sqrt(d_k)
    has_mask = mask is not None

    kernel = functools.partial(_attn_kernel, heads=heads, d_k=d_k,
                               scale=scale, has_mask=has_mask)
    in_specs = []
    args = []
    if has_mask:
        m = jnp.broadcast_to(mask, (b, tq, tk)).astype(jnp.float32)
        in_specs.append(pl.BlockSpec((None, tq, tk), lambda i: (i, 0, 0)))
        args.append(m)
    in_specs += [
        pl.BlockSpec((None, tq, d_model), lambda i: (i, 0, 0)),
        pl.BlockSpec((None, tk, d_model), lambda i: (i, 0, 0)),
        pl.BlockSpec((None, tk, d_model), lambda i: (i, 0, 0)),
    ]
    args += [q.astype(jnp.bfloat16), k.astype(jnp.bfloat16), v.astype(jnp.bfloat16)]

    return pl.pallas_call(
        kernel,
        out_shape=jax.ShapeDtypeStruct((b, tq, d_model), jnp.bfloat16),
        grid_spec=pltpu.PrefetchScalarGridSpec(
            num_scalar_prefetch=0,
            grid=(b,),
            in_specs=in_specs,
            out_specs=pl.BlockSpec((None, tq, d_model), lambda i: (i, 0, 0)),
        ),
        compiler_params=pltpu.CompilerParams(dimension_semantics=("parallel",)),
    )(*args)


def _self_attention(p, heads, x, mask):
    b, t, d_model = x.shape
    qkv = dense(x.reshape(b * t, d_model), p["wqkv"], p["bqkv"])      # fused Q|K|V projection
    q = qkv[:, :d_model].reshape(b, t, d_model)
    k = qkv[:, d_model:2 * d_model].reshape(b, t, d_model)
    v = qkv[:, 2 * d_model:].reshape(b, t, d_model)
    return attention_all_heads(q, k, v, mask, heads=heads)


def _cross_attention(p, heads, x, kv_src, mask):
    b, tq, d_model = x.shape
    tk = kv_src.shape[1]
    q = dense(x.reshape(b * tq, d_model), p["wq"], p["bq"]).reshape(b, tq, d_model)
    kv = dense(kv_src.reshape(b * tk, d_model), p["wkv"], p["bkv"])   # fused K|V projection
    k = kv[:, :d_model].reshape(b, tk, d_model)
    v = kv[:, d_model:].reshape(b, tk, d_model)
    return attention_all_heads(q, k, v, mask, heads=heads)


# ---------------------------------------------------------------------------
# FFN (Linear, ReLU, Linear, ReLU) + residual add + LayerNorm, d_ff streamed.
# ---------------------------------------------------------------------------
def _ffn_add_ln_kernel(x_ref, w1_ref, b1_ref, w2_ref, b2_ref, r_ref, g_ref, bt_ref,
                       o_ref, acc_ref, *, eps):
    f = pl.program_id(1)

    @pl.when(f == 0)
    def _():
        acc_ref[...] = jnp.zeros_like(acc_ref)

    h = jnp.dot(x_ref[...], w1_ref[...], preferred_element_type=jnp.float32) + b1_ref[...]
    h = jnp.maximum(h, 0.0).astype(jnp.bfloat16)          # ReLU after first linear
    acc_ref[...] += jnp.dot(h, w2_ref[...], preferred_element_type=jnp.float32)

    @pl.when(f == pl.num_programs(1) - 1)
    def _():
        y = jnp.maximum(acc_ref[...] + b2_ref[...], 0.0)  # ReLU after second linear (per module)
        hs = y + r_ref[...]                               # residual add (Dropout == identity)
        mean = jnp.mean(hs, axis=-1, keepdims=True)
        c = hs - mean
        var = jnp.mean(c * c, axis=-1, keepdims=True)
        o_ref[...] = (c * lax.rsqrt(var + eps) * g_ref[...] + bt_ref[...]).astype(o_ref.dtype)


def ffn_add_ln(x2d, res2d, pf, gamma, beta, *, tm_max=256):
    n, d_model = x2d.shape
    d_ff = pf["w1"].shape[1]
    tm = _row_tile(n, tm_max)
    tf = _pick_ff_tile(d_ff)
    return pl.pallas_call(
        functools.partial(_ffn_add_ln_kernel, eps=LN_EPS),
        out_shape=jax.ShapeDtypeStruct((n, d_model), jnp.float32),
        grid_spec=pltpu.PrefetchScalarGridSpec(
            num_scalar_prefetch=0,
            grid=(pl.cdiv(n, tm), d_ff // tf),
            in_specs=[
                pl.BlockSpec((tm, d_model), lambda i, f: (i, 0)),
                pl.BlockSpec((d_model, tf), lambda i, f: (0, f)),
                pl.BlockSpec((1, tf), lambda i, f: (0, f)),
                pl.BlockSpec((tf, d_model), lambda i, f: (f, 0)),
                pl.BlockSpec((1, d_model), lambda i, f: (0, 0)),
                pl.BlockSpec((tm, d_model), lambda i, f: (i, 0)),
                pl.BlockSpec((1, d_model), lambda i, f: (0, 0)),
                pl.BlockSpec((1, d_model), lambda i, f: (0, 0)),
            ],
            out_specs=pl.BlockSpec((tm, d_model), lambda i, f: (i, 0)),
            scratch_shapes=[pltpu.VMEM((tm, d_model), jnp.float32)],
        ),
        compiler_params=pltpu.CompilerParams(
            dimension_semantics=("parallel", "arbitrary")),
        cost_estimate=pl.CostEstimate(
            flops=4 * n * d_model * d_ff,
            transcendentals=n,
            bytes_accessed=2 * (n * d_model + 2 * d_model * d_ff) + 4 * (2 * n * d_model),
        ),
    )(x2d.astype(jnp.bfloat16), pf["w1"], pf["b1"], pf["w2"], pf["b2"],
      res2d.astype(jnp.float32), gamma, beta)


# ---------------------------------------------------------------------------
# decodelayer forward
# ---------------------------------------------------------------------------
def decode_layer(params, x, encode_kv, mask=None, src_mask=None, *, heads):
    b, t, d_model = x.shape
    x2 = x.reshape(b * t, d_model)
    gamma, beta = params["ln_gamma"], params["ln_beta"]

    a1 = _self_attention(params["self_attn"], heads, x, mask)                    # (b,t,d) bf16
    h1 = dense_add_ln(a1.reshape(b * t, d_model), params["self_attn"]["wo"],
                      params["self_attn"]["bo"], x2, gamma, beta)                # norms(x + wo(a1))

    a2 = _cross_attention(params["cross_attn"], heads, h1.reshape(b, t, d_model),
                          encode_kv, src_mask)
    h2 = dense_add_ln(a2.reshape(b * t, d_model), params["cross_attn"]["wo"],
                      params["cross_attn"]["bo"], h1, gamma, beta)               # norms(h1 + wo(a2))

    out = ffn_add_ln(h2, h2, params["ffn"], gamma, beta)                         # norms(ffn(h2) + h2)
    return out.reshape(b, t, d_model)   # trailing nn.Dropout is identity at inference


# ---------------------------------------------------------------------------
# Parameters (weights stored (in, out), i.e. transposed from PyTorch)
# ---------------------------------------------------------------------------
def _init_linear(key, d_in, d_out):
    kw, kb = jax.random.split(key)
    bound = 1.0 / math.sqrt(d_in)
    w = jax.random.uniform(kw, (d_in, d_out), jnp.float32, -bound, bound)
    b = jax.random.uniform(kb, (d_out,), jnp.float32, -bound, bound)
    return w, b


def init_raw_params(key, d_model, d_ff):
    ks = jax.random.split(key, 6)

    def attn_params(k4):
        kq, kk, kv, ko = jax.random.split(k4, 4)
        wq, bq = _init_linear(kq, d_model, d_model)
        wk, bk = _init_linear(kk, d_model, d_model)
        wv, bv = _init_linear(kv, d_model, d_model)
        wo, bo = _init_linear(ko, d_model, d_model)
        return dict(wq=wq, bq=bq, wk=wk, bk=bk, wv=wv, bv=bv, wo=wo, bo=bo)

    w1, b1 = _init_linear(ks[2], d_model, d_ff)
    w2, b2 = _init_linear(ks[3], d_ff, d_model)
    return dict(
        self_attn=attn_params(ks[0]),
        cross_attn=attn_params(ks[1]),
        ffn=dict(w1=w1, b1=b1, w2=w2, b2=b2),
        # The module shares ONE nn.LayerNorm ("self.norms") for all three Add&Norm stages.
        ln_gamma=1.0 + 0.1 * jax.random.normal(ks[4], (d_model,), jnp.float32),
        ln_beta=0.1 * jax.random.normal(ks[5], (d_model,), jnp.float32),
    )


def prepare_params(raw):
    """One-time weight prep (hoisted out of the forward): bf16 weights, f32 (1,d) biases,
    fused wq|wk|wv for self-attn and wk|wv for cross-attn."""
    sa, ca, ff = raw["self_attn"], raw["cross_attn"], raw["ffn"]

    def lin(w, b):
        return w.astype(jnp.bfloat16), b.astype(jnp.float32).reshape(1, -1)

    wqkv = jnp.concatenate([sa["wq"], sa["wk"], sa["wv"]], axis=1).astype(jnp.bfloat16)
    bqkv = jnp.concatenate([sa["bq"], sa["bk"], sa["bv"]]).astype(jnp.float32).reshape(1, -1)
    wkv = jnp.concatenate([ca["wk"], ca["wv"]], axis=1).astype(jnp.bfloat16)
    bkv = jnp.concatenate([ca["bk"], ca["bv"]]).astype(jnp.float32).reshape(1, -1)
    wo_s, bo_s = lin(sa["wo"], sa["bo"])
    wq_c, bq_c = lin(ca["wq"], ca["bq"])
    wo_c, bo_c = lin(ca["wo"], ca["bo"])
    w1, b1 = lin(ff["w1"], ff["b1"])
    w2, b2 = lin(ff["w2"], ff["b2"])
    return dict(
        self_attn=dict(wqkv=wqkv, bqkv=bqkv, wo=wo_s, bo=bo_s),
        cross_attn=dict(wq=wq_c, bq=bq_c, wkv=wkv, bkv=bkv, wo=wo_c, bo=bo_c),
        ffn=dict(w1=w1, b1=b1, w2=w2, b2=b2),
        ln_gamma=raw["ln_gamma"].astype(jnp.float32).reshape(1, -1),
        ln_beta=raw["ln_beta"].astype(jnp.float32).reshape(1, -1),
    )


# ---------------------------------------------------------------------------
# Pure-JAX reference (mirrors the bf16-operand / f32-accumulate numerics)
# ---------------------------------------------------------------------------
def _ref_dense(x2d, w, b):
    return jnp.dot(x2d.astype(jnp.bfloat16), w.astype(jnp.bfloat16),
                   preferred_element_type=jnp.float32) + b


def _ref_add_ln(y, res, g, bt, eps=LN_EPS):
    h = y + res
    m = jnp.mean(h, -1, keepdims=True)
    c = h - m
    v = jnp.mean(c * c, -1, keepdims=True)
    return c * lax.rsqrt(v + eps) * g + bt


def _ref_mha_concat(p, heads, q_in, k_in, v_in, mask):
    b, tq, d_model = q_in.shape
    tk = k_in.shape[1]
    d_k = d_model // heads
    scale = 1.0 / math.sqrt(d_k)

    def proj(x, w, bia, t):
        y = _ref_dense(x.reshape(b * t, d_model), w, bia).astype(jnp.bfloat16)
        return y.reshape(b, t, heads, d_k).transpose(0, 2, 1, 3)

    q = proj(q_in, p["wq"], p["bq"], tq)
    k = proj(k_in, p["wk"], p["bk"], tk)
    v = proj(v_in, p["wv"], p["bv"], tk)
    qs = (q.astype(jnp.float32) * scale).astype(jnp.bfloat16)
    s = jnp.einsum("bhqd,bhkd->bhqk", qs, k, preferred_element_type=jnp.float32)
    if mask is not None:
        m = jnp.broadcast_to(mask, (b, tq, tk))[:, None]
        s = jnp.where(m == 0, 1e-09, s)
    a = jax.nn.softmax(s, axis=-1)
    o = jnp.einsum("bhqk,bhkd->bhqd", a.astype(jnp.bfloat16), v,
                   preferred_element_type=jnp.float32)
    return o.transpose(0, 2, 1, 3).reshape(b * tq, d_model).astype(jnp.bfloat16)


def ref_decode_layer(raw, x, encode_kv, mask=None, src_mask=None, *, heads):
    b, t, d_model = x.shape
    g, bt = raw["ln_gamma"], raw["ln_beta"]
    x2 = x.reshape(b * t, d_model)

    a1 = _ref_mha_concat(raw["self_attn"], heads, x, x, x, mask)
    h1 = _ref_add_ln(_ref_dense(a1, raw["self_attn"]["wo"], raw["self_attn"]["bo"]), x2, g, bt)

    a2 = _ref_mha_concat(raw["cross_attn"], heads, h1.reshape(b, t, d_model),
                         encode_kv, encode_kv, src_mask)
    h2 = _ref_add_ln(_ref_dense(a2, raw["cross_attn"]["wo"], raw["cross_attn"]["bo"]), h1, g, bt)

    ff = raw["ffn"]
    h = jnp.maximum(_ref_dense(h2, ff["w1"], ff["b1"]), 0.0)
    y = jnp.maximum(jnp.dot(h.astype(jnp.bfloat16), ff["w2"].astype(jnp.bfloat16),
                            preferred_element_type=jnp.float32) + ff["b2"], 0.0)
    out = _ref_add_ln(y, h2, g, bt)
    return out.reshape(b, t, d_model)


if __name__ == "__main__":
    key = jax.random.PRNGKey(0)
    kx, ke, kp = jax.random.split(key, 3)

    heads, d_model, d_ff = 4, 32, 64
    batch, seq = 2, 8

    x = jax.random.normal(kx, (batch, seq, d_model), jnp.float32)
    encode_kv = jax.random.normal(ke, (batch, seq, d_model), jnp.float32)

    raw = init_raw_params(kp, d_model, d_ff)
    params = prepare_params(raw)   # one-time weight cast/fuse, hoisted out of the forward

    # Causal mask for the masked self-attention (torch semantics: masked_fill(mask==0, 1e-09)).
    mask = jnp.broadcast_to(jnp.tril(jnp.ones((seq, seq), jnp.float32)), (batch, seq, seq))

    fwd = jax.jit(functools.partial(decode_layer, heads=heads))
    out = jax.block_until_ready(fwd(params, x, encode_kv, mask, None))

    ref = ref_decode_layer(raw, x, encode_kv, mask, None, heads=heads)
    assert out.shape == (batch, seq, d_model)
    max_err = jnp.max(jnp.abs(out - ref))
    assert jnp.allclose(out, ref, atol=2e-2, rtol=2e-2), f"mismatch vs reference (max abs err {max_err})"
    print("KERNEL_OK")
</pallas_src>

<mosaic_0001>
module attributes {stable_mosaic.version = 11 : i64} {
  func.func @_dense_kernel(%arg0: i32, %arg1: memref<8x32xbf16, #tpu.memory_space<vmem>>, %arg2: memref<32x96xbf16, #tpu.memory_space<vmem>>, %arg3: memref<1x96xf32, #tpu.memory_space<vmem>>, %arg4: memref<8x96xbf16, #tpu.memory_space<vmem>>) attributes {dimension_semantics = [#tpu.dimension_semantics<parallel>], iteration_bounds = array<i64: 2>, scalar_prefetch = 0 : i64, scratch_operands = 0 : i64, tpu.core_type = #tpu.core_type<tc>, window_params = [{transform_indices = @transform_0, window_bounds = array<i64: 8, 32>}, {pipeline_mode = #tpu.pipeline_mode<synchronous>, transform_indices = @transform_1, window_bounds = array<i64: 32, 96>}, {pipeline_mode = #tpu.pipeline_mode<synchronous>, transform_indices = @transform_2, window_bounds = array<i64: 1, 96>}, {transform_indices = @transform_3, window_bounds = array<i64: 8, 96>}]} {
    %c0 = arith.constant 0 : index
    %c0_0 = arith.constant 0 : index
    %0 = vector.load %arg1[%c0, %c0_0] : memref<8x32xbf16, #tpu.memory_space<vmem>>, vector<8x32xbf16>
    %c0_1 = arith.constant 0 : index
    %c0_2 = arith.constant 0 : index
    %1 = vector.load %arg2[%c0_1, %c0_2] : memref<32x96xbf16, #tpu.memory_space<vmem>>, vector<32x96xbf16>
    %cst = arith.constant dense<0.000000e+00> : vector<8x96xf32>
    %2 = tpu.matmul %0, %1, %cst {dimension_numbers = #tpu.dot_dimension_numbers<[1], [0], [0], [1], [0, 0, 1, 1], [], []>} : vector<8x32xbf16>, vector<32x96xbf16>, vector<8x96xf32> -> vector<8x96xf32>
    %c0_3 = arith.constant 0 : index
    %c0_4 = arith.constant 0 : index
    %3 = vector.load %arg3[%c0_3, %c0_4] : memref<1x96xf32, #tpu.memory_space<vmem>>, vector<1x96xf32>
    %4 = vector.broadcast %3 : vector<1x96xf32> to vector<8x96xf32>
    %5 = arith.addf %2, %4 : vector<8x96xf32>
    %6 = arith.truncf %5 : vector<8x96xf32> to vector<8x96xbf16>
    %c0_5 = arith.constant 0 : index
    %c0_6 = arith.constant 0 : index
    %7 = vector.load %arg4[%c0_5, %c0_6] : memref<8x96xbf16, #tpu.memory_space<vmem>>, vector<8x96xbf16>
    tpu.vector_store %arg4[%c0_5, %c0_6], %6 {strides = array<i32>} : memref<8x96xbf16, #tpu.memory_space<vmem>>, vector<8x96xbf16>,
    return
  }
  func.func @transform_0(%arg0: i32) -> (i32, i32) {
    %c0_i32 = arith.constant 0 : i32
    %c0_i32_0 = arith.constant 0 : i32
    return %arg0, %c0_i32 : i32, i32
  }
  func.func @transform_1(%arg0: i32) -> (i32, i32) {
    %c0_i32 = arith.constant 0 : i32
    %c0_i32_0 = arith.constant 0 : i32
    %c0_i32_1 = arith.constant 0 : i32
    return %c0_i32, %c0_i32_0 : i32, i32
  }
  func.func @transform_2(%arg0: i32) -> (i32, i32) {
    %c0_i32 = arith.constant 0 : i32
    %c0_i32_0 = arith.constant 0 : i32
    %c0_i32_1 = arith.constant 0 : i32
    return %c0_i32, %c0_i32_0 : i32, i32
  }
  func.func @transform_3(%arg0: i32) -> (i32, i32) {
    %c0_i32 = arith.constant 0 : i32
    %c0_i32_0 = arith.constant 0 : i32
    return %arg0, %c0_i32 : i32, i32
  }
}

module attributes {stable_mosaic.version = 11 : i64} {
  func.func @_dense_kernel(%arg0: i32, %arg1: memref<8x32xbf16, #tpu.memory_space<vmem>>, %arg2: memref<32x64xbf16, #tpu.memory_space<vmem>>, %arg3: memref<1x64xf32, #tpu.memory_space<vmem>>, %arg4: memref<8x64xbf16, #tpu.memory_space<vmem>>) attributes {dimension_semantics = [#tpu.dimension_semantics<parallel>], iteration_bounds = array<i64: 2>, scalar_prefetch = 0 : i64, scratch_operands = 0 : i64, tpu.core_type = #tpu.core_type<tc>, window_params = [{transform_indices = @transform_0, window_bounds = array<i64: 8, 32>}, {pipeline_mode = #tpu.pipeline_mode<synchronous>, transform_indices = @transform_1, window_bounds = array<i64: 32, 64>}, {pipeline_mode = #tpu.pipeline_mode<synchronous>, transform_indices = @transform_2, window_bounds = array<i64: 1, 64>}, {transform_indices = @transform_3, window_bounds = array<i64: 8, 64>}]} {
    %c0 = arith.constant 0 : index
    %c0_0 = arith.constant 0 : index
    %0 = vector.load %arg1[%c0, %c0_0] : memref<8x32xbf16, #tpu.memory_space<vmem>>, vector<8x32xbf16>
    %c0_1 = arith.constant 0 : index
    %c0_2 = arith.constant 0 : index
    %1 = vector.load %arg2[%c0_1, %c0_2] : memref<32x64xbf16, #tpu.memory_space<vmem>>, vector<32x64xbf16>
    %cst = arith.constant dense<0.000000e+00> : vector<8x64xf32>
    %2 = tpu.matmul %0, %1, %cst {dimension_numbers = #tpu.dot_dimension_numbers<[1], [0], [0], [1], [0, 0, 1, 1], [], []>} : vector<8x32xbf16>, vector<32x64xbf16>, vector<8x64xf32> -> vector<8x64xf32>
    %c0_3 = arith.constant 0 : index
    %c0_4 = arith.constant 0 : index
    %3 = vector.load %arg3[%c0_3, %c0_4] : memref<1x64xf32, #tpu.memory_space<vmem>>, vector<1x64xf32>
    %4 = vector.broadcast %3 : vector<1x64xf32> to vector<8x64xf32>
    %5 = arith.addf %2, %4 : vector<8x64xf32>
    %6 = arith.truncf %5 : vector<8x64xf32> to vector<8x64xbf16>
    %c0_5 = arith.constant 0 : index
    %c0_6 = arith.constant 0 : index
    %7 = vector.load %arg4[%c0_5, %c0_6] : memref<8x64xbf16, #tpu.memory_space<vmem>>, vector<8x64xbf16>
    tpu.vector_store %arg4[%c0_5, %c0_6], %6 {strides = array<i32>} : memref<8x64xbf16, #tpu.memory_space<vmem>>, vector<8x64xbf16>,
    return
  }
  func.func @transform_0(%arg0: i32) -> (i32, i32) {
    %c0_i32 = arith.constant 0 : i32
    %c0_i32_0 = arith.constant 0 : i32
    return %arg0, %c0_i32 : i32, i32
  }
  func.func @transform_1(%arg0: i32) -> (i32, i32) {
    %c0_i32 = arith.constant 0 : i32
    %c0_i32_0 = arith.constant 0 : i32
    %c0_i32_1 = arith.constant 0 : i32
    return %c0_i32, %c0_i32_0 : i32, i32
  }
  func.func @transform_2(%arg0: i32) -> (i32, i32) {
    %c0_i32 = arith.constant 0 : i32
    %c0_i32_0 = arith.constant 0 : i32
    %c0_i32_1 = arith.constant 0 : i32
    return %c0_i32, %c0_i32_0 : i32, i32
  }
  func.func @transform_3(%arg0: i32) -> (i32, i32) {
    %c0_i32 = arith.constant 0 : i32
    %c0_i32_0 = arith.constant 0 : i32
    return %arg0, %c0_i32 : i32, i32
  }
}

module attributes {stable_mosaic.version = 11 : i64} {
  func.func @_dense_add_ln_kernel(%arg0: i32, %arg1: memref<8x32xbf16, #tpu.memory_space<vmem>>, %arg2: memref<32x32xbf16, #tpu.memory_space<vmem>>, %arg3: memref<1x32xf32, #tpu.memory_space<vmem>>, %arg4: memref<8x32xf32, #tpu.memory_space<vmem>>, %arg5: memref<1x32xf32, #tpu.memory_space<vmem>>, %arg6: memref<1x32xf32, #tpu.memory_space<vmem>>, %arg7: memref<8x32xf32, #tpu.memory_space<vmem>>) attributes {dimension_semantics = [#tpu.dimension_semantics<parallel>], iteration_bounds = array<i64: 2>, scalar_prefetch = 0 : i64, scratch_operands = 0 : i64, tpu.core_type = #tpu.core_type<tc>, window_params = [{transform_indices = @transform_0, window_bounds = array<i64: 8, 32>}, {pipeline_mode = #tpu.pipeline_mode<synchronous>, transform_indices = @transform_1, window_bounds = array<i64: 32, 32>}, {pipeline_mode = #tpu.pipeline_mode<synchronous>, transform_indices = @transform_2, window_bounds = array<i64: 1, 32>}, {transform_indices = @transform_3, window_bounds = array<i64: 8, 32>}, {pipeline_mode = #tpu.pipeline_mode<synchronous>, transform_indices = @transform_4, window_bounds = array<i64: 1, 32>}, {pipeline_mode = #tpu.pipeline_mode<synchronous>, transform_indices = @transform_5, window_bounds = array<i64: 1, 32>}, {transform_indices = @transform_6, window_bounds = array<i64: 8, 32>}]} {
    %c0 = arith.constant 0 : index
    %c0_0 = arith.constant 0 : index
    %0 = vector.load %arg1[%c0, %c0_0] : memref<8x32xbf16, #tpu.memory_space<vmem>>, vector<8x32xbf16>
    %c0_1 = arith.constant 0 : index
    %c0_2 = arith.constant 0 : index
    %1 = vector.load %arg2[%c0_1, %c0_2] : memref<32x32xbf16, #tpu.memory_space<vmem>>, vector<32x32xbf16>
    %cst = arith.constant dense<0.000000e+00> : vector<8x32xf32>
    %2 = tpu.matmul %0, %1, %cst {dimension_numbers = #tpu.dot_dimension_numbers<[1], [0], [0], [1], [0, 0, 1, 1], [], []>} : vector<8x32xbf16>, vector<32x32xbf16>, vector<8x32xf32> -> vector<8x32xf32>
    %c0_3 = arith.constant 0 : index
    %c0_4 = arith.constant 0 : index
    %3 = vector.load %arg3[%c0_3, %c0_4] : memref<1x32xf32, #tpu.memory_space<vmem>>, vector<1x32xf32>
    %4 = vector.broadcast %3 : vector<1x32xf32> to vector<8x32xf32>
    %5 = arith.addf %2, %4 : vector<8x32xf32>
    %c0_5 = arith.constant 0 : index
    %c0_6 = arith.constant 0 : index
    %6 = vector.load %arg4[%c0_5, %c0_6] : memref<8x32xf32, #tpu.memory_space<vmem>>, vector<8x32xf32>
    %7 = arith.addf %5, %6 : vector<8x32xf32>
    %cst_7 = arith.constant dense<0.000000e+00> : vector<8xf32>
    %8 = vector.multi_reduction <add>, %7, %cst_7 [1] : vector<8x32xf32> to vector<8xf32>
    %9 = vector.shape_cast %8 : vector<8xf32> to vector<8x1xf32>
    %cst_8 = arith.constant 3.200000e+01 : f32
    %10 = vector.broadcast %cst_8 : f32 to vector<8x1xf32>
    %11 = arith.divf %9, %10 : vector<8x1xf32>
    %12 = vector.broadcast %11 : vector<8x1xf32> to vector<8x32xf32>
    %13 = arith.subf %7, %12 : vector<8x32xf32>
    %14 = arith.mulf %13, %13 : vector<8x32xf32>
    %cst_9 = arith.constant dense<0.000000e+00> : vector<8xf32>
    %15 = vector.multi_reduction <add>, %14, %cst_9 [1] : vector<8x32xf32> to vector<8xf32>
    %16 = vector.shape_cast %15 : vector<8xf32> to vector<8x1xf32>
    %cst_10 = arith.constant 3.200000e+01 : f32
    %17 = vector.broadcast %cst_10 : f32 to vector<8x1xf32>
    %18 = arith.divf %16, %17 : vector<8x1xf32>
    %cst_11 = arith.constant 9.99999974E-6 : f32
    %19 = vector.broadcast %cst_11 : f32 to vector<8x1xf32>
    %20 = arith.addf %18, %19 : vector<8x1xf32>
    %21 = math.rsqrt %20 : vector<8x1xf32>
    %22 = vector.broadcast %21 : vector<8x1xf32> to vector<8x32xf32>
    %23 = arith.mulf %13, %22 : vector<8x32xf32>
    %c0_12 = arith.constant 0 : index
    %c0_13 = arith.constant 0 : index
    %24 = vector.load %arg5[%c0_12, %c0_13] : memref<1x32xf32, #tpu.memory_space<vmem>>, vector<1x32xf32>
    %25 = vector.broadcast %24 : vector<1x32xf32> to vector<8x32xf32>
    %26 = arith.mulf %23, %25 : vector<8x32xf32>
    %c0_14 = arith.constant 0 : index
    %c0_15 = arith.constant 0 : index
    %27 = vector.load %arg6[%c0_14, %c0_15] : memref<1x32xf32, #tpu.memory_space<vmem>>, vector<1x32xf32>
    %28 = vector.broadcast %27 : vector<1x32xf32> to vector<8x32xf32>
    %29 = arith.addf %26, %28 : vector<8x32xf32>
    %c0_16 = arith.constant 0 : index
    %c0_17 = arith.constant 0 : index
    %30 = vector.load %arg7[%c0_16, %c0_17] : memref<8x32xf32, #tpu.memory_space<vmem>>, vector<8x32xf32>
    tpu.vector_store %arg7[%c0_16, %c0_17], %29 {strides = array<i32>} : memref<8x32xf32, #tpu.memory_space<vmem>>, vector<8x32xf32>,
    return
  }
  func.func @transform_0(%arg0: i32) -> (i32, i32) {
    %c0_i32 = arith.constant 0 : i32
    %c0_i32_0 = arith.constant 0 : i32
    return %arg0, %c0_i32 : i32, i32
  }
  func.func @transform_1(%arg0: i32) -> (i32, i32) {
    %c0_i32 = arith.constant 0 : i32
    %c0_i32_0 = arith.constant 0 : i32
    %c0_i32_1 = arith.constant 0 : i32
    return %c0_i32, %c0_i32_0 : i32, i32
  }
  func.func @transform_2(%arg0: i32) -> (i32, i32) {
    %c0_i32 = arith.constant 0 : i32
    %c0_i32_0 = arith.constant 0 : i32
    %c0_i32_1 = arith.constant 0 : i32
    return %c0_i32, %c0_i32_0 : i32, i32
  }
  func.func @transform_3(%arg0: i32) -> (i32, i32) {
    %c0_i32 = arith.constant 0 : i32
    %c0_i32_0 = arith.constant 0 : i32
    return %arg0, %c0_i32 : i32, i32
  }
  func.func @transform_4(%arg0: i32) -> (i32, i32) {
    %c0_i32 = arith.constant 0 : i32
    %c0_i32_0 = arith.constant 0 : i32
    %c0_i32_1 = arith.constant 0 : i32
    return %c0_i32, %c0_i32_0 : i32, i32
  }
  func.func @transform_5(%arg0: i32) -> (i32, i32) {
    %c0_i32 = arith.constant 0 : i32
    %c0_i32_0 = arith.constant 0 : i32
    %c0_i32_1 = arith.constant 0 : i32
    return %c0_i32, %c0_i32_0 : i32, i32
  }
  func.func @transform_6(%arg0: i32) -> (i32, i32) {
    %c0_i32 = arith.constant 0 : i32
    %c0_i32_0 = arith.constant 0 : i32
    return %arg0, %c0_i32 : i32, i32
  }
}

module attributes {stable_mosaic.version = 11 : i64} {
  func.func @_attn_kernel(%arg0: i32, %arg1: memref<1x8x8xf32, #tpu.memory_space<vmem>>, %arg2: memref<1x8x32xbf16, #tpu.memory_space<vmem>>, %arg3: memref<1x8x32xbf16, #tpu.memory_space<vmem>>, %arg4: memref<1x8x32xbf16, #tpu.memory_space<vmem>>, %arg5: memref<1x8x32xbf16, #tpu.memory_space<vmem>>) attributes {dimension_semantics = [#tpu.dimension_semantics<parallel>], iteration_bounds = array<i64: 2>, scalar_prefetch = 0 : i64, scratch_operands = 0 : i64, tpu.core_type = #tpu.core_type<tc>, window_params = [{transform_indices = @transform_0, window_bounds = array<i64: 1, 8, 8>}, {transform_indices = @transform_1, window_bounds = array<i64: 1, 8, 32>}, {transform_indices = @transform_2, window_bounds = array<i64: 1, 8, 32>}, {transform_indices = @transform_3, window_bounds = array<i64: 1, 8, 32>}, {transform_indices = @transform_4, window_bounds = array<i64: 1, 8, 32>}]} {
    %c0 = arith.constant 0 : index
    %c0_0 = arith.constant 0 : index
    %c0_1 = arith.constant 0 : index
    %0 = vector.load %arg1[%c0, %c0_0, %c0_1] : memref<1x8x8xf32, #tpu.memory_space<vmem>>, vector<1x8x8xf32>
    %1 = vector.shape_cast %0 : vector<1x8x8xf32> to vector<8x8xf32>
    %c0_2 = arith.constant 0 : index
    %c0_3 = arith.constant 0 : index
    %c0_4 = arith.constant 0 : index
    %2 = vector.load %arg2[%c0_2, %c0_3, %c0_4] : memref<1x8x32xbf16, #tpu.memory_space<vmem>>, vector<1x8x8xbf16>
    %3 = vector.shape_cast %2 : vector<1x8x8xbf16> to vector<8x8xbf16>
    %4 = arith.extf %3 : vector<8x8xbf16> to vector<8x8xf32>
    %cst = arith.constant 0.353553385 : f32
    %5 = vector.broadcast %cst : f32 to vector<8x8xf32>
    %6 = arith.mulf %4, %5 : vector<8x8xf32>
    %7 = arith.truncf %6 : vector<8x8xf32> to vector<8x8xbf16>
    %c0_5 = arith.constant 0 : index
    %c0_6 = arith.constant 0 : index
    %c0_7 = arith.constant 0 : index
    %8 = vector.load %arg3[%c0_5, %c0_6, %c0_7] : memref<1x8x32xbf16, #tpu.memory_space<vmem>>, vector<1x8x8xbf16>
    %9 = vector.shape_cast %8 : vector<1x8x8xbf16> to vector<8x8xbf16>
    %c0_8 = arith.constant 0 : index
    %c0_9 = arith.constant 0 : index
    %c0_10 = arith.constant 0 : index
    %10 = vector.load %arg4[%c0_8, %c0_9, %c0_10] : memref<1x8x32xbf16, #tpu.memory_space<vmem>>, vector<1x8x8xbf16>
    %11 = vector.shape_cast %10 : vector<1x8x8xbf16> to vector<8x8xbf16>
    %cst_11 = arith.constant dense<0.000000e+00> : vector<8x8xf32>
    %12 = tpu.matmul %7, %9, %cst_11 {dimension_numbers = #tpu.dot_dimension_numbers<[1], [1], [0], [0], [0, 0, 1, 0], [], []>} : vector<8x8xbf16>, vector<8x8xbf16>, vector<8x8xf32> -> vector<8x8xf32>
    %cst_12 = arith.constant 0.000000e+00 : f32
    %13 = vector.broadcast %cst_12 : f32 to vector<8x8xf32>
    %14 = arith.cmpf oeq, %1, %13 : vector<8x8xf32>
    %cst_13 = arith.constant 9.99999971E-10 : f32
    %15 = vector.broadcast %cst_13 : f32 to vector<8x8xf32>
    %16 = arith.select %14, %15, %12 : vector<8x8xi1>, vector<8x8xf32>
    %cst_14 = arith.constant dense<0xFF800000> : vector<8xf32>
    %17 = vector.multi_reduction <maximumf>, %16, %cst_14 [1] : vector<8x8xf32> to vector<8xf32>
    %18 = vector.shape_cast %17 : vector<8xf32> to vector<8x1xf32>
    %19 = vector.broadcast %18 : vector<8x1xf32> to vector<8x8xf32>
    %20 = arith.subf %16, %19 : vector<8x8xf32>
    %21 = math.exp %20 : vector<8x8xf32>
    %cst_15 = arith.constant dense<0.000000e+00> : vector<8xf32>
    %22 = vector.multi_reduction <add>, %21, %cst_15 [1] : vector<8x8xf32> to vector<8xf32>
    %23 = vector.shape_cast %22 : vector<8xf32> to vector<8x1xf32>
    %24 = arith.truncf %21 : vector<8x8xf32> to vector<8x8xbf16>
    %cst_16 = arith.constant dense<0.000000e+00> : vector<8x8xf32>
    %25 = tpu.matmul %24, %11, %cst_16 {dimension_numbers = #tpu.dot_dimension_numbers<[1], [0], [0], [1], [0, 0, 1, 1], [], []>} : vector<8x8xbf16>, vector<8x8xbf16>, vector<8x8xf32> -> vector<8x8xf32>
    %26 = tpu.reciprocal %23 {approx = true} : vector<8x1xf32> -> vector<8x1xf32>
    %27 = vector.broadcast %26 : vector<8x1xf32> to vector<8x8xf32>
    %28 = arith.mulf %25, %27 : vector<8x8xf32>
    %29 = arith.truncf %28 : vector<8x8xf32> to vector<8x8xbf16>
    %c0_17 = arith.constant 0 : index
    %c0_18 = arith.constant 0 : index
    %c0_19 = arith.constant 0 : index
    %30 = vector.load %arg5[%c0_17, %c0_18, %c0_19] : memref<1x8x32xbf16, #tpu.memory_space<vmem>>, vector<1x8x8xbf16>
    %31 = vector.shape_cast %30 : vector<1x8x8xbf16> to vector<8x8xbf16>
    %32 = vector.shape_cast %29 : vector<8x8xbf16> to vector<1x8x8xbf16>
    tpu.vector_store %arg5[%c0_17, %c0_18, %c0_19], %32 {strides = array<i32>} : memref<1x8x32xbf16, #tpu.memory_space<vmem>>, vector<1x8x8xbf16>,
    %c0_20 = arith.constant 0 : index
    %c0_21 = arith.constant 0 : index
    %c8 = arith.constant 8 : index
    %33 = vector.load %arg2[%c0_20, %c0_21, %c8] : memref<1x8x32xbf16, #tpu.memory_space<vmem>>, vector<1x8x8xbf16>
    %34 = vector.shape_cast %33 : vector<1x8x8xbf16> to vector<8x8xbf16>
    %35 = arith.extf %34 : vector<8x8xbf16> to vector<8x8xf32>
    %cst_22 = arith.constant 0.353553385 : f32
    %36 = vector.broadcast %cst_22 : f32 to vector<8x8xf32>
    %37 = arith.mulf %35, %36 : vector<8x8xf32>
    %38 = arith.truncf %37 : vector<8x8xf32> to vector<8x8xbf16>
    %c0_23 = arith.constant 0 : index
    %c0_24 = arith.constant 0 : index
    %c8_25 = arith.constant 8 : index
    %39 = vector.load %arg3[%c0_23, %c0_24, %c8_25] : memref<1x8x32xbf16, #tpu.memory_space<vmem>>, vector<1x8x8xbf16>
    %40 = vector.shape_cast %39 : vector<1x8x8xbf16> to vector<8x8xbf16>
    %c0_26 = arith.constant 0 : index
    %c0_27 = arith.constant 0 : index
    %c8_28 = arith.constant 8 : index
    %41 = vector.load %arg4[%c0_26, %c0_27, %c8_28] : memref<1x8x32xbf16, #tpu.memory_space<vmem>>, vector<1x8x8xbf16>
    %42 = vector.shape_cast %41 : vector<1x8x8xbf16> to vector<8x8xbf16>
    %cst_29 = arith.constant dense<0.000000e+00> : vector<8x8xf32>
    %43 = tpu.matmul %38, %40, %cst_29 {dimension_numbers = #tpu.dot_dimension_numbers<[1], [1], [0], [0], [0, 0, 1, 0], [], []>} : vector<8x8xbf16>, vector<8x8xbf16>, vector<8x8xf32> -> vector<8x8xf32>
    %cst_30 = arith.constant 0.000000e+00 : f32
    %44 = vector.broadcast %cst_30 : f32 to vector<8x8xf32>
    %45 = arith.cmpf oeq, %1, %44 : vector<8x8xf32>
    %cst_31 = arith.constant 9.99999971E-10 : f32
    %46 = vector.broadcast %cst_31 : f32 to vector<8x8xf32>
    %47 = arith.select %45, %46, %43 : vector<8x8xi1>, vector<8x8xf32>
    %cst_32 = arith.constant dense<0xFF800000> : vector<8xf32>
    %48 = vector.multi_reduction <maximumf>, %47, %cst_32 [1] : vector<8x8xf32> to vector<8xf32>
    %49 = vector.shape_cast %48 : vector<8xf32> to vector<8x1xf32>
    %50 = vector.broadcast %49 : vector<8x1xf32> to vector<8x8xf32>
    %51 = arith.subf %47, %50 : vector<8x8xf32>
    %52 = math.exp %51 : vector<8x8xf32>
    %cst_33 = arith.constant dense<0.000000e+00> : vector<8xf32>
    %53 = vector.multi_reduction <add>, %52, %cst_33 [1] : vector<8x8xf32> to vector<8xf32>
    %54 = vector.shape_cast %53 : vector<8xf32> to vector<8x1xf32>
    %55 = arith.truncf %52 : vector<8x8xf32> to vector<8x8xbf16>
    %cst_34 = arith.constant dense<0.000000e+00> : vector<8x8xf32>
    %56 = tpu.matmul %55, %42, %cst_34 {dimension_numbers = #tpu.dot_dimension_numbers<[1], [0], [0], [1], [0, 0, 1, 1], [], []>} : vector<8x8xbf16>, vector<8x8xbf16>, vector<8x8xf32> -> vector<8x8xf32>
    %57 = tpu.reciprocal %54 {approx = true} : vector<8x1xf32> -> vector<8x1xf32>
    %58 = vector.broadcast %57 : vector<8x1xf32> to vector<8x8xf32>
    %59 = arith.mulf %56, %58 : vector<8x8xf32>
    %60 = arith.truncf %59 : vector<8x8xf32> to vector<8x8xbf16>
    %c0_35 = arith.constant 0 : index
    %c0_36 = arith.constant 0 : index
    %c8_37 = arith.constant 8 : index
    %61 = vector.load %arg5[%c0_35, %c0_36, %c8_37] : memref<1x8x32xbf16, #tpu.memory_space<vmem>>, vector<1x8x8xbf16>
    %62 = vector.shape_cast %61 : vector<1x8x8xbf16> to vector<8x8xbf16>
    %63 = vector.shape_cast %60 : vector<8x8xbf16> to vector<1x8x8xbf16>
    tpu.vector_store %arg5[%c0_35, %c0_36, %c8_37], %63 {strides = array<i32>} : memref<1x8x32xbf16, #tpu.memory_space<vmem>>, vector<1x8x8xbf16>,
    %c0_38 = arith.constant 0 : index
    %c0_39 = arith.constant 0 : index
    %c16 = arith.constant 16 : index
    %64 = vector.load %arg2[%c0_38, %c0_39, %c16] : memref<1x8x32xbf16, #tpu.memory_space<vmem>>, vector<1x8x8xbf16>
    %65 = vector.shape_cast %64 : vector<1x8x8xbf16> to vector<8x8xbf16>
    %66 = arith.extf %65 : vector<8x8xbf16> to vector<8x8xf32>
    %cst_40 = arith.constant 0.353553385 : f32
    %67 = vector.broadcast %cst_40 : f32 to vector<8x8xf32>
    %68 = arith.mulf %66, %67 : vector<8x8xf32>
    %69 = arith.truncf %68 : vector<8x8xf32> to vector<8x8xbf16>
    %c0_41 = arith.constant 0 : index
    %c0_42 = arith.constant 0 : index
    %c16_43 = arith.constant 16 : index
    %70 = vector.load %arg3[%c0_41, %c0_42, %c16_43] : memref<1x8x32xbf16, #tpu.memory_space<vmem>>, vector<1x8x8xbf16>
    %71 = vector.shape_cast %70 : vector<1x8x8xbf16> to vector<8x8xbf16>
    %c0_44 = arith.constant 0 : index
    %c0_45 = arith.constant 0 : index
    %c16_46 = arith.constant 16 : index
    %72 = vector.load %arg4[%c0_44, %c0_45, %c16_46] : memref<1x8x32xbf16, #tpu.memory_space<vmem>>, vector<1x8x8xbf16>
    %73 = vector.shape_cast %72 : vector<1x8x8xbf16> to vector<8x8xbf16>
    %cst_47 = arith.constant dense<0.000000e+00> : vector<8x8xf32>
    %74 = tpu.matmul %69, %71, %cst_47 {dimension_numbers = #tpu.dot_dimension_numbers<[1], [1], [0], [0], [0, 0, 1, 0], [], []>} : vector<8x8xbf16>, vector<8x8xbf16>, vector<8x8xf32> -> vector<8x8xf32>
    %cst_48 = arith.constant 0.000000e+00 : f32
    %75 = vector.broadcast %cst_48 : f32 to vector<8x8xf32>
    %76 = arith.cmpf oeq, %1, %75 : vector<8x8xf32>
    %cst_49 = arith.constant 9.99999971E-10 : f32
    %77 = vector.broadcast %cst_49 : f32 to vector<8x8xf32>
    %78 = arith.select %76, %77, %74 : vector<8x8xi1>, vector<8x8xf32>
    %cst_50 = arith.constant dense<0xFF800000> : vector<8xf32>
    %79 = vector.multi_reduction <maximumf>, %78, %cst_50 [1] : vector<8x8xf32> to vector<8xf32>
    %80 = vector.shape_cast %79 : vector<8xf32> to vector<8x1xf32>
    %81 = vector.broadcast %80 : vector<8x1xf32> to vector<8x8xf32>
    %82 = arith.subf %78, %81 : vector<8x8xf32>
    %83 = math.exp %82 : vector<8x8xf32>
    %cst_51 = arith.constant dense<0.000000e+00> : vector<8xf32>
    %84 = vector.multi_reduction <add>, %83, %cst_51 [1] : vector<8x8xf32> to vector<8xf32>
    %85 = vector.shape_cast %84 : vector<8xf32> to vector<8x1xf32>
    %86 = arith.truncf %83 : vector<8x8xf32> to vector<8x8xbf16>
    %cst_52 = arith.constant dense<0.000000e+00> : vector<8x8xf32>
    %87 = tpu.matmul %86, %73, %cst_52 {dimension_numbers = #tpu.dot_dimension_numbers<[1], [0], [0], [1], [0, 0, 1, 1], [], []>} : vector<8x8xbf16>, vector<8x8xbf16>, vector<8x8xf32> -> vector<8x8xf32>
    %88 = tpu.reciprocal %85 {approx = true} : vector<8x1xf32> -> vector<8x1xf32>
    %89 = vector.broadcast %88 : vector<8x1xf32> to vector<8x8xf32>
    %90 = arith.mulf %87, %89 : vector<8x8xf32>
    %91 = arith.truncf %90 : vector<8x8xf32> to vector<8x8xbf16>
    %c0_53 = arith.constant 0 : index
    %c0_54 = arith.constant 0 : index
    %c16_55 = arith.constant 16 : index
    %92 = vector.load %arg5[%c0_53, %c0_54, %c16_55] : memref<1x8x32xbf16, #tpu.memory_space<vmem>>, vector<1x8x8xbf16>
    %93 = vector.shape_cast %92 : vector<1x8x8xbf16> to vector<8x8xbf16>
    %94 = vector.shape_cast %91 : vector<8x8xbf16> to vector<1x8x8xbf16>
    tpu.vector_store %arg5[%c0_53, %c0_54, %c16_55], %94 {strides = array<i32>} : memref<1x8x32xbf16, #tpu.memory_space<vmem>>, vector<1x8x8xbf16>,
    %c0_56 = arith.constant 0 : index
    %c0_57 = arith.constant 0 : index
    %c24 = arith.constant 24 : index
    %95 = vector.load %arg2[%c0_56, %c0_57, %c24] : memref<1x8x32xbf16, #tpu.memory_space<vmem>>, vector<1x8x8xbf16>
    %96 = vector.shape_cast %95 : vector<1x8x8xbf16> to vector<8x8xbf16>
    %97 = arith.extf %96 : vector<8x8xbf16> to vector<8x8xf32>
    %cst_58 = arith.constant 0.353553385 : f32
    %98 = vector.broadcast %cst_58 : f32 to vector<8x8xf32>
    %99 = arith.mulf %97, %98 : vector<8x8xf32>
    %100 = arith.truncf %99 : vector<8x8xf32> to vector<8x8xbf16>
    %c0_59 = arith.constant 0 : index
    %c0_60 = arith.constant 0 : index
    %c24_61 = arith.constant 24 : index
    %101 = vector.load %arg3[%c0_59, %c0_60, %c24_61] : memref<1x8x32xbf16, #tpu.memory_space<vmem>>, vector<1x8x8xbf16>
    %102 = vector.shape_cast %101 : vector<1x8x8xbf16> to vector<8x8xbf16>
    %c0_62 = arith.constant 0 : index
    %c0_63 = arith.constant 0 : index
    %c24_64 = arith.constant 24 : index
    %103 = vector.load %arg4[%c0_62, %c0_63, %c24_64] : memref<1x8x32xbf16, #tpu.memory_space<vmem>>, vector<1x8x8xbf16>
    %104 = vector.shape_cast %103 : vector<1x8x8xbf16> to vector<8x8xbf16>
    %cst_65 = arith.constant dense<0.000000e+00> : vector<8x8xf32>
    %105 = tpu.matmul %100, %102, %cst_65 {dimension_numbers = #tpu.dot_dimension_numbers<[1], [1], [0], [0], [0, 0, 1, 0], [], []>} : vector<8x8xbf16>, vector<8x8xbf16>, vector<8x8xf32> -> vector<8x8xf32>
    %cst_66 = arith.constant 0.000000e+00 : f32
    %106 = vector.broadcast %cst_66 : f32 to vector<8x8xf32>
    %107 = arith.cmpf oeq, %1, %106 : vector<8x8xf32>
    %cst_67 = arith.constant 9.99999971E-10 : f32
    %108 = vector.broadcast %cst_67 : f32 to vector<8x8xf32>
    %109 = arith.select %107, %108, %105 : vector<8x8xi1>, vector<8x8xf32>
    %cst_68 = arith.constant dense<0xFF800000> : vector<8xf32>
    %110 = vector.multi_reduction <maximumf>, %109, %cst_68 [1] : vector<8x8xf32> to vector<8xf32>
    %111 = vector.shape_cast %110 : vector<8xf32> to vector<8x1xf32>
    %112 = vector.broadcast %111 : vector<8x1xf32> to vector<8x8xf32>
    %113 = arith.subf %109, %112 : vector<8x8xf32>
    %114 = math.exp %113 : vector<8x8xf32>
    %cst_69 = arith.constant dense<0.000000e+00> : vector<8xf32>
    %115 = vector.multi_reduction <add>, %114, %cst_69 [1] : vector<8x8xf32> to vector<8xf32>
    %116 = vector.shape_cast %115 : vector<8xf32> to vector<8x1xf32>
    %117 = arith.truncf %114 : vector<8x8xf32> to vector<8x8xbf16>
    %cst_70 = arith.constant dense<0.000000e+00> : vector<8x8xf32>
    %118 = tpu.matmul %117, %104, %cst_70 {dimension_numbers = #tpu.dot_dimension_numbers<[1], [0], [0], [1], [0, 0, 1, 1], [], []>} : vector<8x8xbf16>, vector<8x8xbf16>, vector<8x8xf32> -> vector<8x8xf32>
    %119 = tpu.reciprocal %116 {approx = true} : vector<8x1xf32> -> vector<8x1xf32>
    %120 = vector.broadcast %119 : vector<8x1xf32> to vector<8x8xf32>
    %121 = arith.mulf %118, %120 : vector<8x8xf32>
    %122 = arith.truncf %121 : vector<8x8xf32> to vector<8x8xbf16>
    %c0_71 = arith.constant 0 : index
    %c0_72 = arith.constant 0 : index
    %c24_73 = arith.constant 24 : index
    %123 = vector.load %arg5[%c0_71, %c0_72, %c24_73] : memref<1x8x32xbf16, #tpu.memory_space<vmem>>, vector<1x8x8xbf16>
    %124 = vector.shape_cast %123 : vector<1x8x8xbf16> to vector<8x8xbf16>
    %125 = vector.shape_cast %122 : vector<8x8xbf16> to vector<1x8x8xbf16>
    tpu.vector_store %arg5[%c0_71, %c0_72, %c24_73], %125 {strides = array<i32>} : memref<1x8x32xbf16, #tpu.memory_space<vmem>>, vector<1x8x8xbf16>,
    return
  }
  func.func @transform_0(%arg0: i32) -> (i32, i32, i32) {
    %c0_i32 = arith.constant 0 : i32
    %c0_i32_0 = arith.constant 0 : i32
    %c0_i32_1 = arith.constant 0 : i32
    return %arg0, %c0_i32, %c0_i32_0 : i32, i32, i32
  }
  func.func @transform_1(%arg0: i32) -> (i32, i32, i32) {
    %c0_i32 = arith.constant 0 : i32
    %c0_i32_0 = arith.constant 0 : i32
    %c0_i32_1 = arith.constant 0 : i32
    return %arg0, %c0_i32, %c0_i32_0 : i32, i32, i32
  }
  func.func @transform_2(%arg0: i32) -> (i32, i32, i32) {
    %c0_i32 = arith.constant 0 : i32
    %c0_i32_0 = arith.constant 0 : i32
    %c0_i32_1 = arith.constant 0 : i32
    return %arg0, %c0_i32, %c0_i32_0 : i32, i32, i32
  }
  func.func @transform_3(%arg0: i32) -> (i32, i32, i32) {
    %c0_i32 = arith.constant 0 : i32
    %c0_i32_0 = arith.constant 0 : i32
    %c0_i32_1 = arith.constant 0 : i32
    return %arg0, %c0_i32, %c0_i32_0 : i32, i32, i32
  }
  func.func @transform_4(%arg0: i32) -> (i32, i32, i32) {
    %c0_i32 = arith.constant 0 : i32
    %c0_i32_0 = arith.constant 0 : i32
    %c0_i32_1 = arith.constant 0 : i32
    return %arg0, %c0_i32, %c0_i32_0 : i32, i32, i32
  }
}

module attributes {stable_mosaic.version = 11 : i64} {
  func.func @_dense_kernel(%arg0: i32, %arg1: memref<8x32xbf16, #tpu.memory_space<vmem>>, %arg2: memref<32x32xbf16, #tpu.memory_space<vmem>>, %arg3: memref<1x32xf32, #tpu.memory_space<vmem>>, %arg4: memref<8x32xbf16, #tpu.memory_space<vmem>>) attributes {dimension_semantics = [#tpu.dimension_semantics<parallel>], iteration_bounds = array<i64: 2>, scalar_prefetch = 0 : i64, scratch_operands = 0 : i64, tpu.core_type = #tpu.core_type<tc>, window_params = [{transform_indices = @transform_0, window_bounds = array<i64: 8, 32>}, {pipeline_mode = #tpu.pipeline_mode<synchronous>, transform_indices = @transform_1, window_bounds = array<i64: 32, 32>}, {pipeline_mode = #tpu.pipeline_mode<synchronous>, transform_indices = @transform_2, window_bounds = array<i64: 1, 32>}, {transform_indices = @transform_3, window_bounds = array<i64: 8, 32>}]} {
    %c0 = arith.constant 0 : index
    %c0_0 = arith.constant 0 : index
    %0 = vector.load %arg1[%c0, %c0_0] : memref<8x32xbf16, #tpu.memory_space<vmem>>, vector<8x32xbf16>
    %c0_1 = arith.constant 0 : index
    %c0_2 = arith.constant 0 : index
    %1 = vector.load %arg2[%c0_1, %c0_2] : memref<32x32xbf16, #tpu.memory_space<vmem>>, vector<32x32xbf16>
    %cst = arith.constant dense<0.000000e+00> : vector<8x32xf32>
    %2 = tpu.matmul %0, %1, %cst {dimension_numbers = #tpu.dot_dimension_numbers<[1], [0], [0], [1], [0, 0, 1, 1], [], []>} : vector<8x32xbf16>, vector<32x32xbf16>, vector<8x32xf32> -> vector<8x32xf32>
    %c0_3 = arith.constant 0 : index
    %c0_4 = arith.constant 0 : index
    %3 = vector.load %arg3[%c0_3, %c0_4] : memref<1x32xf32, #tpu.memory_space<vmem>>, vector<1x32xf32>
    %4 = vector.broadcast %3 : vector<1x32xf32> to vector<8x32xf32>
    %5 = arith.addf %2, %4 : vector<8x32xf32>
    %6 = arith.truncf %5 : vector<8x32xf32> to vector<8x32xbf16>
    %c0_5 = arith.constant 0 : index
    %c0_6 = arith.constant 0 : index
    %7 = vector.load %arg4[%c0_5, %c0_6] : memref<8x32xbf16, #tpu.memory_space<vmem>>, vector<8x32xbf16>
    tpu.vector_store %arg4[%c0_5, %c0_6], %6 {strides = array<i32>} : memref<8x32xbf16, #tpu.memory_space<vmem>>, vector<8x32xbf16>,
    return
  }
  func.func @transform_0(%arg0: i32) -> (i32, i32) {
    %c0_i32 = arith.constant 0 : i32
    %c0_i32_0 = arith.constant 0 : i32
    return %arg0, %c0_i32 : i32, i32
  }
  func.func @transform_1(%arg0: i32) -> (i32, i32) {
    %c0_i32 = arith.constant 0 : i32
    %c0_i32_0 = arith.constant 0 : i32
    %c0_i32_1 = arith.constant 0 : i32
    return %c0_i32, %c0_i32_0 : i32, i32
  }
  func.func @transform_2(%arg0: i32) -> (i32, i32) {
    %c0_i32 = arith.constant 0 : i32
    %c0_i32_0 = arith.constant 0 : i32
    %c0_i32_1 = arith.constant 0 : i32
    return %c0_i32, %c0_i32_0 : i32, i32
  }
  func.func @transform_3(%arg0: i32) -> (i32, i32) {
    %c0_i32 = arith.constant 0 : i32
    %c0_i32_0 = arith.constant 0 : i32
    return %arg0, %c0_i32 : i32, i32
  }
}

module attributes {stable_mosaic.version = 11 : i64} {
  func.func @_attn_kernel(%arg0: i32, %arg1: memref<1x8x32xbf16, #tpu.memory_space<vmem>>, %arg2: memref<1x8x32xbf16, #tpu.memory_space<vmem>>, %arg3: memref<1x8x32xbf16, #tpu.memory_space<vmem>>, %arg4: memref<1x8x32xbf16, #tpu.memory_space<vmem>>) attributes {dimension_semantics = [#tpu.dimension_semantics<parallel>], iteration_bounds = array<i64: 2>, scalar_prefetch = 0 : i64, scratch_operands = 0 : i64, tpu.core_type = #tpu.core_type<tc>, window_params = [{transform_indices = @transform_0, window_bounds = array<i64: 1, 8, 32>}, {transform_indices = @transform_1, window_bounds = array<i64: 1, 8, 32>}, {transform_indices = @transform_2, window_bounds = array<i64: 1, 8, 32>}, {transform_indices = @transform_3, window_bounds = array<i64: 1, 8, 32>}]} {
    %c0 = arith.constant 0 : index
    %c0_0 = arith.constant 0 : index
    %c0_1 = arith.constant 0 : index
    %0 = vector.load %arg1[%c0, %c0_0, %c0_1] : memref<1x8x32xbf16, #tpu.memory_space<vmem>>, vector<1x8x8xbf16>
    %1 = vector.shape_cast %0 : vector<1x8x8xbf16> to vector<8x8xbf16>
    %2 = arith.extf %1 : vector<8x8xbf16> to vector<8x8xf32>
    %cst = arith.constant 0.353553385 : f32
    %3 = vector.broadcast %cst : f32 to vector<8x8xf32>
    %4 = arith.mulf %2, %3 : vector<8x8xf32>
    %5 = arith.truncf %4 : vector<8x8xf32> to vector<8x8xbf16>
    %c0_2 = arith.constant 0 : index
    %c0_3 = arith.constant 0 : index
    %c0_4 = arith.constant 0 : index
    %6 = vector.load %arg2[%c0_2, %c0_3, %c0_4] : memref<1x8x32xbf16, #tpu.memory_space<vmem>>, vector<1x8x8xbf16>
    %7 = vector.shape_cast %6 : vector<1x8x8xbf16> to vector<8x8xbf16>
    %c0_5 = arith.constant 0 : index
    %c0_6 = arith.constant 0 : index
    %c0_7 = arith.constant 0 : index
    %8 = vector.load %arg3[%c0_5, %c0_6, %c0_7] : memref<1x8x32xbf16, #tpu.memory_space<vmem>>, vector<1x8x8xbf16>
    %9 = vector.shape_cast %8 : vector<1x8x8xbf16> to vector<8x8xbf16>
    %cst_8 = arith.constant dense<0.000000e+00> : vector<8x8xf32>
    %10 = tpu.matmul %5, %7, %cst_8 {dimension_numbers = #tpu.dot_dimension_numbers<[1], [1], [0], [0], [0, 0, 1, 0], [], []>} : vector<8x8xbf16>, vector<8x8xbf16>, vector<8x8xf32> -> vector<8x8xf32>
    %cst_9 = arith.constant dense<0xFF800000> : vector<8xf32>
    %11 = vector.multi_reduction <maximumf>, %10, %cst_9 [1] : vector<8x8xf32> to vector<8xf32>
    %12 = vector.shape_cast %11 : vector<8xf32> to vector<8x1xf32>
    %13 = vector.broadcast %12 : vector<8x1xf32> to vector<8x8xf32>
    %14 = arith.subf %10, %13 : vector<8x8xf32>
    %15 = math.exp %14 : vector<8x8xf32>
    %cst_10 = arith.constant dense<0.000000e+00> : vector<8xf32>
    %16 = vector.multi_reduction <add>, %15, %cst_10 [1] : vector<8x8xf32> to vector<8xf32>
    %17 = vector.shape_cast %16 : vector<8xf32> to vector<8x1xf32>
    %18 = arith.truncf %15 : vector<8x8xf32> to vector<8x8xbf16>
    %cst_11 = arith.constant dense<0.000000e+00> : vector<8x8xf32>
    %19 = tpu.matmul %18, %9, %cst_11 {dimension_numbers = #tpu.dot_dimension_numbers<[1], [0], [0], [1], [0, 0, 1, 1], [], []>} : vector<8x8xbf16>, vector<8x8xbf16>, vector<8x8xf32> -> vector<8x8xf32>
    %20 = tpu.reciprocal %17 {approx = true} : vector<8x1xf32> -> vector<8x1xf32>
    %21 = vector.broadcast %20 : vector<8x1xf32> to vector<8x8xf32>
    %22 = arith.mulf %19, %21 : vector<8x8xf32>
    %23 = arith.truncf %22 : vector<8x8xf32> to vector<8x8xbf16>
    %c0_12 = arith.constant 0 : index
    %c0_13 = arith.constant 0 : index
    %c0_14 = arith.constant 0 : index
    %24 = vector.load %arg4[%c0_12, %c0_13, %c0_14] : memref<1x8x32xbf16, #tpu.memory_space<vmem>>, vector<1x8x8xbf16>
    %25 = vector.shape_cast %24 : vector<1x8x8xbf16> to vector<8x8xbf16>
    %26 = vector.shape_cast %23 : vector<8x8xbf16> to vector<1x8x8xbf16>
    tpu.vector_store %arg4[%c0_12, %c0_13, %c0_14], %26 {strides = array<i32>} : memref<1x8x32xbf16, #tpu.memory_space<vmem>>, vector<1x8x8xbf16>,
    %c0_15 = arith.constant 0 : index
    %c0_16 = arith.constant 0 : index
    %c8 = arith.constant 8 : index
    %27 = vector.load %arg1[%c0_15, %c0_16, %c8] : memref<1x8x32xbf16, #tpu.memory_space<vmem>>, vector<1x8x8xbf16>
    %28 = vector.shape_cast %27 : vector<1x8x8xbf16> to vector<8x8xbf16>
    %29 = arith.extf %28 : vector<8x8xbf16> to vector<8x8xf32>
    %cst_17 = arith.constant 0.353553385 : f32
    %30 = vector.broadcast %cst_17 : f32 to vector<8x8xf32>
    %31 = arith.mulf %29, %30 : vector<8x8xf32>
    %32 = arith.truncf %31 : vector<8x8xf32> to vector<8x8xbf16>
    %c0_18 = arith.constant 0 : index
    %c0_19 = arith.constant 0 : index
    %c8_20 = arith.constant 8 : index
    %33 = vector.load %arg2[%c0_18, %c0_19, %c8_20] : memref<1x8x32xbf16, #tpu.memory_space<vmem>>, vector<1x8x8xbf16>
    %34 = vector.shape_cast %33 : vector<1x8x8xbf16> to vector<8x8xbf16>
    %c0_21 = arith.constant 0 : index
    %c0_22 = arith.constant 0 : index
    %c8_23 = arith.constant 8 : index
    %35 = vector.load %arg3[%c0_21, %c0_22, %c8_23] : memref<1x8x32xbf16, #tpu.memory_space<vmem>>, vector<1x8x8xbf16>
    %36 = vector.shape_cast %35 : vector<1x8x8xbf16> to vector<8x8xbf16>
    %cst_24 = arith.constant dense<0.000000e+00> : vector<8x8xf32>
    %37 = tpu.matmul %32, %34, %cst_24 {dimension_numbers = #tpu.dot_dimension_numbers<[1], [1], [0], [0], [0, 0, 1, 0], [], []>} : vector<8x8xbf16>, vector<8x8xbf16>, vector<8x8xf32> -> vector<8x8xf32>
    %cst_25 = arith.constant dense<0xFF800000> : vector<8xf32>
    %38 = vector.multi_reduction <maximumf>, %37, %cst_25 [1] : vector<8x8xf32> to vector<8xf32>
    %39 = vector.shape_cast %38 : vector<8xf32> to vector<8x1xf32>
    %40 = vector.broadcast %39 : vector<8x1xf32> to vector<8x8xf32>
    %41 = arith.subf %37, %40 : vector<8x8xf32>
    %42 = math.exp %41 : vector<8x8xf32>
    %cst_26 = arith.constant dense<0.000000e+00> : vector<8xf32>
    %43 = vector.multi_reduction <add>, %42, %cst_26 [1] : vector<8x8xf32> to vector<8xf32>
    %44 = vector.shape_cast %43 : vector<8xf32> to vector<8x1xf32>
    %45 = arith.truncf %42 : vector<8x8xf32> to vector<8x8xbf16>
    %cst_27 = arith.constant dense<0.000000e+00> : vector<8x8xf32>
    %46 = tpu.matmul %45, %36, %cst_27 {dimension_numbers = #tpu.dot_dimension_numbers<[1], [0], [0], [1], [0, 0, 1, 1], [], []>} : vector<8x8xbf16>, vector<8x8xbf16>, vector<8x8xf32> -> vector<8x8xf32>
    %47 = tpu.reciprocal %44 {approx = true} : vector<8x1xf32> -> vector<8x1xf32>
    %48 = vector.broadcast %47 : vector<8x1xf32> to vector<8x8xf32>
    %49 = arith.mulf %46, %48 : vector<8x8xf32>
    %50 = arith.truncf %49 : vector<8x8xf32> to vector<8x8xbf16>
    %c0_28 = arith.constant 0 : index
    %c0_29 = arith.constant 0 : index
    %c8_30 = arith.constant 8 : index
    %51 = vector.load %arg4[%c0_28, %c0_29, %c8_30] : memref<1x8x32xbf16, #tpu.memory_space<vmem>>, vector<1x8x8xbf16>
    %52 = vector.shape_cast %51 : vector<1x8x8xbf16> to vector<8x8xbf16>
    %53 = vector.shape_cast %50 : vector<8x8xbf16> to vector<1x8x8xbf16>
    tpu.vector_store %arg4[%c0_28, %c0_29, %c8_30], %53 {strides = array<i32>} : memref<1x8x32xbf16, #tpu.memory_space<vmem>>, vector<1x8x8xbf16>,
    %c0_31 = arith.constant 0 : index
    %c0_32 = arith.constant 0 : index
    %c16 = arith.constant 16 : index
    %54 = vector.load %arg1[%c0_31, %c0_32, %c16] : memref<1x8x32xbf16, #tpu.memory_space<vmem>>, vector<1x8x8xbf16>
    %55 = vector.shape_cast %54 : vector<1x8x8xbf16> to vector<8x8xbf16>
    %56 = arith.extf %55 : vector<8x8xbf16> to vector<8x8xf32>
    %cst_33 = arith.constant 0.353553385 : f32
    %57 = vector.broadcast %cst_33 : f32 to vector<8x8xf32>
    %58 = arith.mulf %56, %57 : vector<8x8xf32>
    %59 = arith.truncf %58 : vector<8x8xf32> to vector<8x8xbf16>
    %c0_34 = arith.constant 0 : index
    %c0_35 = arith.constant 0 : index
    %c16_36 = arith.constant 16 : index
    %60 = vector.load %arg2[%c0_34, %c0_35, %c16_36] : memref<1x8x32xbf16, #tpu.memory_space<vmem>>, vector<1x8x8xbf16>
    %61 = vector.shape_cast %60 : vector<1x8x8xbf16> to vector<8x8xbf16>
    %c0_37 = arith.constant 0 : index
    %c0_38 = arith.constant 0 : index
    %c16_39 = arith.constant 16 : index
    %62 = vector.load %arg3[%c0_37, %c0_38, %c16_39] : memref<1x8x32xbf16, #tpu.memory_space<vmem>>, vector<1x8x8xbf16>
    %63 = vector.shape_cast %62 : vector<1x8x8xbf16> to vector<8x8xbf16>
    %cst_40 = arith.constant dense<0.000000e+00> : vector<8x8xf32>
    %64 = tpu.matmul %59, %61, %cst_40 {dimension_numbers = #tpu.dot_dimension_numbers<[1], [1], [0], [0], [0, 0, 1, 0], [], []>} : vector<8x8xbf16>, vector<8x8xbf16>, vector<8x8xf32> -> vector<8x8xf32>
    %cst_41 = arith.constant dense<0xFF800000> : vector<8xf32>
    %65 = vector.multi_reduction <maximumf>, %64, %cst_41 [1] : vector<8x8xf32> to vector<8xf32>
    %66 = vector.shape_cast %65 : vector<8xf32> to vector<8x1xf32>
    %67 = vector.broadcast %66 : vector<8x1xf32> to vector<8x8xf32>
    %68 = arith.subf %64, %67 : vector<8x8xf32>
    %69 = math.exp %68 : vector<8x8xf32>
    %cst_42 = arith.constant dense<0.000000e+00> : vector<8xf32>
    %70 = vector.multi_reduction <add>, %69, %cst_42 [1] : vector<8x8xf32> to vector<8xf32>
    %71 = vector.shape_cast %70 : vector<8xf32> to vector<8x1xf32>
    %72 = arith.truncf %69 : vector<8x8xf32> to vector<8x8xbf16>
    %cst_43 = arith.constant dense<0.000000e+00> : vector<8x8xf32>
    %73 = tpu.matmul %72, %63, %cst_43 {dimension_numbers = #tpu.dot_dimension_numbers<[1], [0], [0], [1], [0, 0, 1, 1], [], []>} : vector<8x8xbf16>, vector<8x8xbf16>, vector<8x8xf32> -> vector<8x8xf32>
    %74 = tpu.reciprocal %71 {approx = true} : vector<8x1xf32> -> vector<8x1xf32>
    %75 = vector.broadcast %74 : vector<8x1xf32> to vector<8x8xf32>
    %76 = arith.mulf %73, %75 : vector<8x8xf32>
    %77 = arith.truncf %76 : vector<8x8xf32> to vector<8x8xbf16>
    %c0_44 = arith.constant 0 : index
    %c0_45 = arith.constant 0 : index
    %c16_46 = arith.constant 16 : index
    %78 = vector.load %arg4[%c0_44, %c0_45, %c16_46] : memref<1x8x32xbf16, #tpu.memory_space<vmem>>, vector<1x8x8xbf16>
    %79 = vector.shape_cast %78 : vector<1x8x8xbf16> to vector<8x8xbf16>
    %80 = vector.shape_cast %77 : vector<8x8xbf16> to vector<1x8x8xbf16>
    tpu.vector_store %arg4[%c0_44, %c0_45, %c16_46], %80 {strides = array<i32>} : memref<1x8x32xbf16, #tpu.memory_space<vmem>>, vector<1x8x8xbf16>,
    %c0_47 = arith.constant 0 : index
    %c0_48 = arith.constant 0 : index
    %c24 = arith.constant 24 : index
    %81 = vector.load %arg1[%c0_47, %c0_48, %c24] : memref<1x8x32xbf16, #tpu.memory_space<vmem>>, vector<1x8x8xbf16>
    %82 = vector.shape_cast %81 : vector<1x8x8xbf16> to vector<8x8xbf16>
    %83 = arith.extf %82 : vector<8x8xbf16> to vector<8x8xf32>
    %cst_49 = arith.constant 0.353553385 : f32
    %84 = vector.broadcast %cst_49 : f32 to vector<8x8xf32>
    %85 = arith.mulf %83, %84 : vector<8x8xf32>
    %86 = arith.truncf %85 : vector<8x8xf32> to vector<8x8xbf16>
    %c0_50 = arith.constant 0 : index
    %c0_51 = arith.constant 0 : index
    %c24_52 = arith.constant 24 : index
    %87 = vector.load %arg2[%c0_50, %c0_51, %c24_52] : memref<1x8x32xbf16, #tpu.memory_space<vmem>>, vector<1x8x8xbf16>
    %88 = vector.shape_cast %87 : vector<1x8x8xbf16> to vector<8x8xbf16>
    %c0_53 = arith.constant 0 : index
    %c0_54 = arith.constant 0 : index
    %c24_55 = arith.constant 24 : index
    %89 = vector.load %arg3[%c0_53, %c0_54, %c24_55] : memref<1x8x32xbf16, #tpu.memory_space<vmem>>, vector<1x8x8xbf16>
    %90 = vector.shape_cast %89 : vector<1x8x8xbf16> to vector<8x8xbf16>
    %cst_56 = arith.constant dense<0.000000e+00> : vector<8x8xf32>
    %91 = tpu.matmul %86, %88, %cst_56 {dimension_numbers = #tpu.dot_dimension_numbers<[1], [1], [0], [0], [0, 0, 1, 0], [], []>} : vector<8x8xbf16>, vector<8x8xbf16>, vector<8x8xf32> -> vector<8x8xf32>
    %cst_57 = arith.constant dense<0xFF800000> : vector<8xf32>
    %92 = vector.multi_reduction <maximumf>, %91, %cst_57 [1] : vector<8x8xf32> to vector<8xf32>
    %93 = vector.shape_cast %92 : vector<8xf32> to vector<8x1xf32>
    %94 = vector.broadcast %93 : vector<8x1xf32> to vector<8x8xf32>
    %95 = arith.subf %91, %94 : vector<8x8xf32>
    %96 = math.exp %95 : vector<8x8xf32>
    %cst_58 = arith.constant dense<0.000000e+00> : vector<8xf32>
    %97 = vector.multi_reduction <add>, %96, %cst_58 [1] : vector<8x8xf32> to vector<8xf32>
    %98 = vector.shape_cast %97 : vector<8xf32> to vector<8x1xf32>
    %99 = arith.truncf %96 : vector<8x8xf32> to vector<8x8xbf16>
    %cst_59 = arith.constant dense<0.000000e+00> : vector<8x8xf32>
    %100 = tpu.matmul %99, %90, %cst_59 {dimension_numbers = #tpu.dot_dimension_numbers<[1], [0], [0], [1], [0, 0, 1, 1], [], []>} : vector<8x8xbf16>, vector<8x8xbf16>, vector<8x8xf32> -> vector<8x8xf32>
    %101 = tpu.reciprocal %98 {approx = true} : vector<8x1xf32> -> vector<8x1xf32>
    %102 = vector.broadcast %101 : vector<8x1xf32> to vector<8x8xf32>
    %103 = arith.mulf %100, %102 : vector<8x8xf32>
    %104 = arith.truncf %103 : vector<8x8xf32> to vector<8x8xbf16>
    %c0_60 = arith.constant 0 : index
    %c0_61 = arith.constant 0 : index
    %c24_62 = arith.constant 24 : index
    %105 = vector.load %arg4[%c0_60, %c0_61, %c24_62] : memref<1x8x32xbf16, #tpu.memory_space<vmem>>, vector<1x8x8xbf16>
    %106 = vector.shape_cast %105 : vector<1x8x8xbf16> to vector<8x8xbf16>
    %107 = vector.shape_cast %104 : vector<8x8xbf16> to vector<1x8x8xbf16>
    tpu.vector_store %arg4[%c0_60, %c0_61, %c24_62], %107 {strides = array<i32>} : memref<1x8x32xbf16, #tpu.memory_space<vmem>>, vector<1x8x8xbf16>,
    return
  }
  func.func @transform_0(%arg0: i32) -> (i32, i32, i32) {
    %c0_i32 = arith.constant 0 : i32
    %c0_i32_0 = arith.constant 0 : i32
    %c0_i32_1 = arith.constant 0 : i32
    return %arg0, %c0_i32, %c0_i32_0 : i32, i32, i32
  }
  func.func @transform_1(%arg0: i32) -> (i32, i32, i32) {
    %c0_i32 = arith.constant 0 : i32
    %c0_i32_0 = arith.constant 0 : i32
    %c0_i32_1 = arith.constant 0 : i32
    return %arg0, %c0_i32, %c0_i32_0 : i32, i32, i32
  }
  func.func @transform_2(%arg0: i32) -> (i32, i32, i32) {
    %c0_i32 = arith.constant 0 : i32
    %c0_i32_0 = arith.constant 0 : i32
    %c0_i32_1 = arith.constant 0 : i32
    return %arg0, %c0_i32, %c0_i32_0 : i32, i32, i32
  }
  func.func @transform_3(%arg0: i32) -> (i32, i32, i32) {
    %c0_i32 = arith.constant 0 : i32
    %c0_i32_0 = arith.constant 0 : i32
    %c0_i32_1 = arith.constant 0 : i32
    return %arg0, %c0_i32, %c0_i32_0 : i32, i32, i32
  }
}

module attributes {stable_mosaic.version = 11 : i64} {
  func.func @_ffn_add_ln_kernel(%arg0: i32, %arg1: i32, %arg2: memref<8x32xbf16, #tpu.memory_space<vmem>>, %arg3: memref<32x64xbf16, #tpu.memory_space<vmem>>, %arg4: memref<1x64xf32, #tpu.memory_space<vmem>>, %arg5: memref<64x32xbf16, #tpu.memory_space<vmem>>, %arg6: memref<1x32xf32, #tpu.memory_space<vmem>>, %arg7: memref<8x32xf32, #tpu.memory_space<vmem>>, %arg8: memref<1x32xf32, #tpu.memory_space<vmem>>, %arg9: memref<1x32xf32, #tpu.memory_space<vmem>>, %arg10: memref<8x32xf32, #tpu.memory_space<vmem>>, %arg11: memref<8x32xf32, #tpu.memory_space<vmem>>) attributes {dimension_semantics = [#tpu.dimension_semantics<parallel>, #tpu.dimension_semantics<arbitrary>], iteration_bounds = array<i64: 2, 1>, scalar_prefetch = 0 : i64, scratch_operands = 1 : i64, tpu.core_type = #tpu.core_type<tc>, window_params = [{transform_indices = @transform_0, window_bounds = array<i64: 8, 32>}, {transform_indices = @transform_1, window_bounds = array<i64: 32, 64>}, {transform_indices = @transform_2, window_bounds = array<i64: 1, 64>}, {transform_indices = @transform_3, window_bounds = array<i64: 64, 32>}, {pipeline_mode = #tpu.pipeline_mode<synchronous>, transform_indices = @transform_4, window_bounds = array<i64: 1, 32>}, {transform_indices = @transform_5, window_bounds = array<i64: 8, 32>}, {pipeline_mode = #tpu.pipeline_mode<synchronous>, transform_indices = @transform_6, window_bounds = array<i64: 1, 32>}, {pipeline_mode = #tpu.pipeline_mode<synchronous>, transform_indices = @transform_7, window_bounds = array<i64: 1, 32>}, {transform_indices = @transform_8, window_bounds = array<i64: 8, 32>}]} {
    %c0_i32 = arith.constant 0 : i32
    %0 = arith.cmpi eq, %arg1, %c0_i32 : i32
    %1 = arith.extui %0 : i1 to i32
    %c0_i32_0 = arith.constant 0 : i32
    %2 = arith.cmpi ne, %1, %c0_i32_0 : i32
    scf.if %2 {
      %cst_16 = arith.constant 0.000000e+00 : f32
      %20 = vector.broadcast %cst_16 : f32 to vector<8x32xf32>
      %c0_17 = arith.constant 0 : index
      %c0_18 = arith.constant 0 : index
      %21 = vector.load %arg11[%c0_17, %c0_18] : memref<8x32xf32, #tpu.memory_space<vmem>>, vector<8x32xf32>
      tpu.vector_store %arg11[%c0_17, %c0_18], %20 {strides = array<i32>} : memref<8x32xf32, #tpu.memory_space<vmem>>, vector<8x32xf32>,
    } else {
    }
    %c0 = arith.constant 0 : index
    %c0_1 = arith.constant 0 : index
    %3 = vector.load %arg2[%c0, %c0_1] : memref<8x32xbf16, #tpu.memory_space<vmem>>, vector<8x32xbf16>
    %c0_2 = arith.constant 0 : index
    %c0_3 = arith.constant 0 : index
    %4 = vector.load %arg3[%c0_2, %c0_3] : memref<32x64xbf16, #tpu.memory_space<vmem>>, vector<32x64xbf16>
    %cst = arith.constant dense<0.000000e+00> : vector<8x64xf32>
    %5 = tpu.matmul %3, %4, %cst {dimension_numbers = #tpu.dot_dimension_numbers<[1], [0], [0], [1], [0, 0, 1, 1], [], []>} : vector<8x32xbf16>, vector<32x64xbf16>, vector<8x64xf32> -> vector<8x64xf32>
    %c0_4 = arith.constant 0 : index
    %c0_5 = arith.constant 0 : index
    %6 = vector.load %arg4[%c0_4, %c0_5] : memref<1x64xf32, #tpu.memory_space<vmem>>, vector<1x64xf32>
    %7 = vector.broadcast %6 : vector<1x64xf32> to vector<8x64xf32>
    %8 = arith.addf %5, %7 : vector<8x64xf32>
    %cst_6 = arith.constant 0.000000e+00 : f32
    %9 = vector.broadcast %cst_6 : f32 to vector<8x64xf32>
    %10 = arith.maximumf %8, %9 : vector<8x64xf32>
    %11 = arith.truncf %10 : vector<8x64xf32> to vector<8x64xbf16>
    %c0_7 = arith.constant 0 : index
    %c0_8 = arith.constant 0 : index
    %12 = vector.load %arg11[%c0_7, %c0_8] : memref<8x32xf32, #tpu.memory_space<vmem>>, vector<8x32xf32>
    %c0_9 = arith.constant 0 : index
    %c0_10 = arith.constant 0 : index
    %13 = vector.load %arg5[%c0_9, %c0_10] : memref<64x32xbf16, #tpu.memory_space<vmem>>, vector<64x32xbf16>
    %cst_11 = arith.constant dense<0.000000e+00> : vector<8x32xf32>
    %14 = tpu.matmul %11, %13, %cst_11 {dimension_numbers = #tpu.dot_dimension_numbers<[1], [0], [0], [1], [0, 0, 1, 1], [], []>} : vector<8x64xbf16>, vector<64x32xbf16>, vector<8x32xf32> -> vector<8x32xf32>
    %15 = arith.addf %12, %14 : vector<8x32xf32>
    %c0_12 = arith.constant 0 : index
    %c0_13 = arith.constant 0 : index
    %16 = vector.load %arg11[%c0_12, %c0_13] : memref<8x32xf32, #tpu.memory_space<vmem>>, vector<8x32xf32>
    tpu.vector_store %arg11[%c0_12, %c0_13], %15 {strides = array<i32>} : memref<8x32xf32, #tpu.memory_space<vmem>>, vector<8x32xf32>,
    %c0_i32_14 = arith.constant 0 : i32
    %17 = arith.cmpi eq, %arg1, %c0_i32_14 : i32
    %18 = arith.extui %17 : i1 to i32
    %c0_i32_15 = arith.constant 0 : i32
    %19 = arith.cmpi ne, %18, %c0_i32_15 : i32
    scf.if %19 {
      %c0_16 = arith.constant 0 : index
      %c0_17 = arith.constant 0 : index
      %20 = vector.load %arg11[%c0_16, %c0_17] : memref<8x32xf32, #tpu.memory_space<vmem>>, vector<8x32xf32>
      %c0_18 = arith.constant 0 : index
      %c0_19 = arith.constant 0 : index
      %21 = vector.load %arg6[%c0_18, %c0_19] : memref<1x32xf32, #tpu.memory_space<vmem>>, vector<1x32xf32>
      %22 = vector.broadcast %21 : vector<1x32xf32> to vector<8x32xf32>
      %23 = arith.addf %20, %22 : vector<8x32xf32>
      %cst_20 = arith.constant 0.000000e+00 : f32
      %24 = vector.broadcast %cst_20 : f32 to vector<8x32xf32>
      %25 = arith.maximumf %23, %24 : vector<8x32xf32>
      %c0_21 = arith.constant 0 : index
      %c0_22 = arith.constant 0 : index
      %26 = vector.load %arg7[%c0_21, %c0_22] : memref<8x32xf32, #tpu.memory_space<vmem>>, vector<8x32xf32>
      %27 = arith.addf %25, %26 : vector<8x32xf32>
      %cst_23 = arith.constant dense<0.000000e+00> : vector<8xf32>
      %28 = vector.multi_reduction <add>, %27, %cst_23 [1] : vector<8x32xf32> to vector<8xf32>
      %29 = vector.shape_cast %28 : vector<8xf32> to vector<8x1xf32>
      %cst_24 = arith.constant 3.200000e+01 : f32
      %30 = vector.broadcast %cst_24 : f32 to vector<8x1xf32>
      %31 = arith.divf %29, %30 : vector<8x1xf32>
      %32 = vector.broadcast %31 : vector<8x1xf32> to vector<8x32xf32>
      %33 = arith.subf %27, %32 : vector<8x32xf32>
      %34 = arith.mulf %33, %33 : vector<8x32xf32>
      %cst_25 = arith.constant dense<0.000000e+00> : vector<8xf32>
      %35 = vector.multi_reduction <add>, %34, %cst_25 [1] : vector<8x32xf32> to vector<8xf32>
      %36 = vector.shape_cast %35 : vector<8xf32> to vector<8x1xf32>
      %cst_26 = arith.constant 3.200000e+01 : f32
      %37 = vector.broadcast %cst_26 : f32 to vector<8x1xf32>
      %38 = arith.divf %36, %37 : vector<8x1xf32>
      %cst_27 = arith.constant 9.99999974E-6 : f32
      %39 = vector.broadcast %cst_27 : f32 to vector<8x1xf32>
      %40 = arith.addf %38, %39 : vector<8x1xf32>
      %41 = math.rsqrt %40 : vector<8x1xf32>
      %42 = vector.broadcast %41 : vector<8x1xf32> to vector<8x32xf32>
      %43 = arith.mulf %33, %42 : vector<8x32xf32>
      %c0_28 = arith.constant 0 : index
      %c0_29 = arith.constant 0 : index
      %44 = vector.load %arg8[%c0_28, %c0_29] : memref<1x32xf32, #tpu.memory_space<vmem>>, vector<1x32xf32>
      %45 = vector.broadcast %44 : vector<1x32xf32> to vector<8x32xf32>
      %46 = arith.mulf %43, %45 : vector<8x32xf32>
      %c0_30 = arith.constant 0 : index
      %c0_31 = arith.constant 0 : index
      %47 = vector.load %arg9[%c0_30, %c0_31] : memref<1x32xf32, #tpu.memory_space<vmem>>, vector<1x32xf32>
      %48 = vector.broadcast %47 : vector<1x32xf32> to vector<8x32xf32>
      %49 = arith.addf %46, %48 : vector<8x32xf32>
      %c0_32 = arith.constant 0 : index
      %c0_33 = arith.constant 0 : index
      %50 = vector.load %arg10[%c0_32, %c0_33] : memref<8x32xf32, #tpu.memory_space<vmem>>, vector<8x32xf32>
      tpu.vector_store %arg10[%c0_32, %c0_33], %49 {strides = array<i32>} : memref<8x32xf32, #tpu.memory_space<vmem>>, vector<8x32xf32>,
    } else {
    }
    return
  }
  func.func @transform_0(%arg0: i32, %arg1: i32) -> (i32, i32) {
    %c0_i32 = arith.constant 0 : i32
    %c0_i32_0 = arith.constant 0 : i32
    return %arg0, %c0_i32 : i32, i32
  }
  func.func @transform_1(%arg0: i32, %arg1: i32) -> (i32, i32) {
    %c0_i32 = arith.constant 0 : i32
    %c0_i32_0 = arith.constant 0 : i32
    return %c0_i32, %arg1 : i32, i32
  }
  func.func @transform_2(%arg0: i32, %arg1: i32) -> (i32, i32) {
    %c0_i32 = arith.constant 0 : i32
    %c0_i32_0 = arith.constant 0 : i32
    return %c0_i32, %arg1 : i32, i32
  }
  func.func @transform_3(%arg0: i32, %arg1: i32) -> (i32, i32) {
    %c0_i32 = arith.constant 0 : i32
    %c0_i32_0 = arith.constant 0 : i32
    return %arg1, %c0_i32 : i32, i32
  }
  func.func @transform_4(%arg0: i32, %arg1: i32) -> (i32, i32) {
    %c0_i32 = arith.constant 0 : i32
    %c0_i32_0 = arith.constant 0 : i32
    %c0_i32_1 = arith.constant 0 : i32
    return %c0_i32, %c0_i32_0 : i32, i32
  }
  func.func @transform_5(%arg0: i32, %arg1: i32) -> (i32, i32) {
    %c0_i32 = arith.constant 0 : i32
    %c0_i32_0 = arith.constant 0 : i32
    return %arg0, %c0_i32 : i32, i32
  }
  func.func @transform_6(%arg0: i32, %arg1: i32) -> (i32, i32) {
    %c0_i32 = arith.constant 0 : i32
    %c0_i32_0 = arith.constant 0 : i32
    %c0_i32_1 = arith.constant 0 : i32
    return %c0_i32, %c0_i32_0 : i32, i32
  }
  func.func @transform_7(%arg0: i32, %arg1: i32) -> (i32, i32) {
    %c0_i32 = arith.constant 0 : i32
    %c0_i32_0 = arith.constant 0 : i32
    %c0_i32_1 = arith.constant 0 : i32
    return %c0_i32, %c0_i32_0 : i32, i32
  }
  func.func @transform_8(%arg0: i32, %arg1: i32) -> (i32, i32) {
    %c0_i32 = arith.constant 0 : i32
    %c0_i32_0 = arith.constant 0 : i32
    return %arg0, %c0_i32 : i32, i32
  }
}

</mosaic_0001>

<llo_original>
// kernel: decode_layer.8
$region0: #{decode_layer.8}
  #allocation0 [shape = 'u32[]', space=smem, size = 0x4, offset = 0x4, fixed_abs, tag = 'smem constant byte address 0x4 - core index']
  #allocation1 [shape = 'u32[144,128]{1,0:T(1,128)}', space=vmem, size = 0x12000, scoped, tag = 'internal scratch']
  %s0 = inlined_call_operand.vmem [shape: bf16[16,32], index: 0, kind: input, shape index: {}]
  %s1 = inlined_call_operand.vmem [shape: bf16[32,96], index: 1, kind: input, shape index: {}]
  %s2 = inlined_call_operand.vmem [shape: f32[1,96], index: 2, kind: input, shape index: {}]
  %s3 = inlined_call_operand.vmem [shape: bf16[16,96], index: 3, kind: output, shape index: {}]
  %s4 = sld [smem:[#allocation0]]
  $region45: #{decode_layer.8} parent=0
    _
  %s6 = ssub.s32 1, %s4
  %s7 = scalar_select 0, %s6, %s4
  loop: start=0, step=1, limit=4
  $region2: #{decode_layer.8} parent=0 // loop_pre_header
    _
  $region3: #{decode_layer.8} parent=0 // loop_header
    %s9 = sphi 0, %s13
    %p10 = scmp.ge.s32.totalorder %s9, 4
    %s19 = sphi 0, %s21
    %s22 = sphi 0, %s19
    %s23 = sphi 0, %s22
    %s39 = sphi 0, %s23
    %s43 = sphi 0, %s43
    %s45 = sphi 0, %s43
    %s46 = sphi 0, %s45
    %s60 = sphi 0, %s46
    %s64 = sphi 0, %s64
    %s66 = sphi 0, %s64
    %s67 = sphi 0, %s66
    %s81 = sphi 0, %s67
    %s87 = sphi 0, %s89
    %s90 = sphi 0, %s87
    %s91 = sphi 0, %s90
    %s107 = sphi 0, %s91
  $region4: #{decode_layer.8} parent=0 // loop_header_branch
    %12 = sbr.rel (%p10) target = $region8
  $region5: #{decode_layer.8} parent=0 // loop_body
    %s14 = ssub.s32 %s9, 1
    %s15 = ssub.s32 %s9, 2
    %s16 = sadd.s32 %s9, 1
    %s17 = ssub.s32 %s9, %s16
    %p18 = scmp.eq.s32.totalorder %s17, 0
    %s20 = sadd.s32 %s19, 1
    %s21 = scalar_select %p18, %s19, %s20
    %p24 = pneg %p18
    %p25 = scmp.eq.s32.totalorder %s9, 1
    %p26 = por %p24, %p25
    %p27 = scmp.ne.s32.totalorder %s19, %s22
    %p28 = scmp.eq.s32.totalorder %s9, 0
    %p29 = por %p27, %p28
    %p30 = scmp.ne.s32.totalorder %s19, %s22
    %p31 = scmp.eq.s32.totalorder %s14, 1
    %p32 = por %p30, %p31
    %p33 = scmp.ne.s32.totalorder %s22, %s23
    %p34 = scmp.eq.s32.totalorder %s14, 0
    %p35 = por %p33, %p34
    %p36 = scmp.ne.s32.totalorder %s22, %s23
    %p37 = scmp.eq.s32.totalorder %s15, 1
    %p38 = por %p36, %p37
    %p40 = scmp.ne.s32.totalorder %s23, %s39
    %p41 = scmp.eq.s32.totalorder %s15, 0
    %p42 = por %p40, %p41
    %s44 = sadd.s32 %s43, 1
    %p47 = scmp.eq.s32.totalorder %s9, 1
    %p48 = scmp.ne.s32.totalorder %s43, %s45
    %p49 = scmp.eq.s32.totalorder %s9, 0
    %p50 = por %p48, %p49
    %p51 = scmp.ne.s32.totalorder %s43, %s45
    %p52 = scmp.eq.s32.totalorder %s14, 1
    %p53 = por %p51, %p52
    %p54 = scmp.ne.s32.totalorder %s45, %s46
    %p55 = scmp.eq.s32.totalorder %s14, 0
    %p56 = por %p54, %p55
    %p57 = scmp.ne.s32.totalorder %s45, %s46
    %p58 = scmp.eq.s32.totalorder %s15, 1
    %p59 = por %p57, %p58
    %p61 = scmp.ne.s32.totalorder %s46, %s60
    %p62 = scmp.eq.s32.totalorder %s15, 0
    %p63 = por %p61, %p62
    %s65 = sadd.s32 %s64, 1
    %p68 = scmp.eq.s32.totalorder %s9, 1
    %p69 = scmp.ne.s32.totalorder %s64, %s66
    %p70 = scmp.eq.s32.totalorder %s9, 0
    %p71 = por %p69, %p70
    %p72 = scmp.ne.s32.totalorder %s64, %s66
    %p73 = scmp.eq.s32.totalorder %s14, 1
    %p74 = por %p72, %p73
    %p75 = scmp.ne.s32.totalorder %s66, %s67
    %p76 = scmp.eq.s32.totalorder %s14, 0
    %p77 = por %p75, %p76
    %p78 = scmp.ne.s32.totalorder %s66, %s67
    %p79 = scmp.eq.s32.totalorder %s15, 1
    %p80 = por %p78, %p79
    %p82 = scmp.ne.s32.totalorder %s67, %s81
    %p83 = scmp.eq.s32.totalorder %s15, 0
    %p84 = por %p82, %p83
    %s85 = ssub.s32 %s9, %s16
    %p86 = scmp.eq.s32.totalorder %s85, 0
    %s88 = sadd.s32 %s87, 1
    %s89 = scalar_select %p86, %s87, %s88
    %p92 = pneg %p86
    %p93 = scmp.eq.s32.totalorder %s9, 1
    %p94 = por %p92, %p93
    %p95 = scmp.ne.s32.totalorder %s87, %s90
    %p96 = scmp.eq.s32.totalorder %s9, 0
    %p97 = por %p95, %p96
    %p98 = scmp.ne.s32.totalorder %s87, %s90
    %p99 = scmp.eq.s32.totalorder %s14, 1
    %p100 = por %p98, %p99
    %p101 = scmp.ne.s32.totalorder %s90, %s91
    %p102 = scmp.eq.s32.totalorder %s14, 0
    %p103 = por %p101, %p102
    %p104 = scmp.ne.s32.totalorder %s90, %s91
    %p105 = scmp.eq.s32.totalorder %s15, 1
    %p106 = por %p104, %p105
    %p108 = scmp.ne.s32.totalorder %s91, %s107
    %p109 = scmp.eq.s32.totalorder %s15, 0
    %p110 = por %p108, %p109
    %p111 = scmp.le.s32.totalorder 1, %s9
    %p112 = scmp.lt.s32.totalorder %s9, 3
    %p113 = pnand %p111, %p112
    %p114 = pneg %p113
    // Predicated region
    $region9: #{decode_layer.8} parent=5 // pred_check
      _
    $region10: #{decode_layer.8} parent=5 // pred_check_branch
      %116 = sbr.rel (%p113) target = $region12
    $region11: #{decode_layer.8} parent=5 // pred_region
      %s117 = ssub.s32 %s9, 1
      // Predicated region
      $region13: #{decode_layer.8} parent=11 // pred_check
        %p118 = pneg %p56
      $region14: #{decode_layer.8} parent=11 // pred_check_branch
        %120 = sbr.rel (%p118) target = $region16
      $region15: #{decode_layer.8} parent=11 // pred_region
        _
      $region16: #{decode_layer.8} parent=11 // pred_fallthru
        _
      // Predicated region
      $region17: #{decode_layer.8} parent=11 // pred_check
        %p121 = pneg %p77
      $region18: #{decode_layer.8} parent=11 // pred_check_branch
        %123 = sbr.rel (%p121) target = $region20
      $region19: #{decode_layer.8} parent=11 // pred_region
        _
      $region20: #{decode_layer.8} parent=11 // pred_fallthru
        _
    $region12: #{decode_layer.8} parent=5 // pred_fallthru
      _
    %p124 = scmp.lt.s32.totalorder %s9, 2
    // Predicated region
    $region21: #{decode_layer.8} parent=5 // pred_check
      %p125 = pneg %p124
    $region22: #{decode_layer.8} parent=5 // pred_check_branch
      %127 = sbr.rel (%p125) target = $region24
    $region23: #{decode_layer.8} parent=5 // pred_region
      // Predicated region
      $region25: #{decode_layer.8} parent=23 // pred_check
        %p128 = pneg %p29
      $region26: #{decode_layer.8} parent=23 // pred_check_branch
        %130 = sbr.rel (%p128) target = $region28
      $region27: #{decode_layer.8} parent=23 // pred_region
        %p131 = scmp.lt.s32.totalorder %s9, 1
        %s132 = scalar_select %p131, %s9, 1
        %s133 = smul.addr %s132, 4
        %s134 = scalar_lea.vmem %s0, %s133
      $region28: #{decode_layer.8} parent=23 // pred_fallthru
        _
    $region24: #{decode_layer.8} parent=5 // pred_fallthru
      _
    %p135 = scmp.le.s32.totalorder 1, %s9
    %p136 = scmp.lt.s32.totalorder %s9, 3
    %p137 = pnand %p135, %p136
    %p138 = pneg %p137
    // Predicated region
    $region29: #{decode_layer.8} parent=5 // pred_check
      _
    $region30: #{decode_layer.8} parent=5 // pred_check_branch
      %140 = sbr.rel (%p137) target = $region32
    $region31: #{decode_layer.8} parent=5 // pred_region
      %s141 = ssub.s32 %s9, 1
      %p142 = scmp.lt.s32.totalorder %s14, 1
      %s143 = scalar_select %p142, %s14, 1
      %s144 = smul.addr %s143, 4
      %s145 = scalar_lea.vmem %s0, %s144
      %p146 = pneg %p35
      %p147 = pneg %p32
      %p148 = pneg %p56
      %p149 = pneg %p53
      %p150 = pneg %p77
      %p151 = pneg %p74
      %p152 = pneg %p103
      %p153 = pneg %p100
      %p154 = scmp.lt.s32.totalorder %s14, 1
      %s155 = scalar_select %p154, %s14, 1
      %s156 = smul.addr %s155, 4
      %s157 = scalar_lea.vmem %s3, %s156
      %p158 = scmp.lt.s32.totalorder %s14, 1
      %s159 = scalar_select %p158, %s14, 1
      %s160 = smul.addr %s159, 4
      %s161 = scalar_lea.vmem %s0, %s160
      %p162 = scmp.lt.s32.totalorder %s14, 1
      %s163 = scalar_select %p162, %s14, 1
      %s164 = smul.addr %s163, 4
      %s165 = scalar_lea.vmem %s3, %s164
      %v167 = vld [vmem:[%s161] sm:$0xf]
      %v168 = vld [vmem:[%s1] sm:$0xf]
      %v169 = vld [vmem:[%s1 + $0x4] sm:$0xf]
      %v170 = vld [vmem:[%s1 + $0x8] sm:$0xf]
      %v171 = vld [vmem:[%s1 + $0xc] sm:$0xf]
      %v172 = vld [vmem:[%s2] sm:$0x1]
      %v174 = vlaneseq
      %v175 = vshrl.u32 %v174, 7
      %v176 = vsub.s32 0, %v175
      %v177 = vrot.slane %v172, %v176
      %v183 = vunpack.c.l.b16 %v168
      %v184 = vunpack.c.l.b16 %v169
      %v185 = vunpack.c.l.b16 %v170
      %v186 = vunpack.c.l.b16 %v171
      %v187 = vpack.c.b16 %v184, %v183
      %v188 = vpack.c.b16 %v186, %v185
      %vm191 = vcmask 261120
      %v193 = vsel %vm191, %v167, 0
      %195 = vmatprep.subr.bf16.mxu0 0
      %196 = vmatpush1.bf16.msra.mxu0 %v187
      %197 = vmatprep.subr.bf16.mxu0 0
      %198 = vmatpush1.bf16.msra.mxu0 %v188
      %199 = vmatprep.subr.bf16.mxu0 0
      %200 = vmatpush1.bf16.msra.mxu0 0
      %201 = vmatprep.subr.bf16.mxu0 0
      %202 = vmatpush1.bf16.msra.mxu0 0
      %203 = vmatprep.subr.bf16.mxu0 0
      %204 = vmatpush1.bf16.msra.mxu0 0
      %205 = vmatprep.subr.bf16.mxu0 0
      %206 = vmatpush1.bf16.msra.mxu0 0
      %207 = vmatprep.subr.bf16.mxu0 0
      %208 = vmatpush1.bf16.msra.mxu0 0
      %209 = vmatprep.subr.bf16.mxu0 0
      %210 = vmatpush1.bf16.msra.mxu0 0
      %211 = vmatprep.subr.bf16.mxu0 0
      %212 = vmatpush1.bf16.msra.mxu0 0
      %213 = vmatprep.subr.bf16.mxu0 0
      %214 = vmatpush1.bf16.msra.mxu0 0
      %215 = vmatprep.subr.bf16.mxu0 0
      %216 = vmatpush1.bf16.msra.mxu0 0
      %217 = vmatprep.subr.bf16.mxu0 0
      %218 = vmatpush1.bf16.msra.mxu0 0
      %219 = vmatprep.subr.bf16.mxu0 0
      %220 = vmatpush1.bf16.msra.mxu0 0
      %221 = vmatprep.subr.bf16.mxu0 0
      %222 = vmatpush1.bf16.msra.mxu0 0
      %223 = vmatprep.subr.bf16.mxu0 0
      %224 = vmatpush1.bf16.msra.mxu0 0
      %225 = vmatprep.subr.bf16.mxu0 0
      %226 = vmatpush1.bf16.msra.mxu0 0
      %227 = vmatprep.mubr.bf16.mxu0 0
      %228 = vmatmul.mubr.bf16.gmra.mrb[0].mxu0 %v193
      %v229 = vpop.f32.mrb[0].mxu0
      %v230 = vadd.f32 %v177, %v229
      %v231 = vpop.f32.mrb[0].mxu0
      %v232 = vpop.f32.mrb[0].mxu0
      %v233 = vpop.f32.mrb[0].mxu0
      %234 = vdwg.mxu0
      %v235 = vpack.c.bf16 %v230, %v230
      %vm236 = vcmask 781312
      %237 = vst.msk [vmem:[%s165] sm:$0xf] %vm236, %v235
      %p238 = scmp.lt.s32.totalorder %s14, 1
      %s239 = scalar_select %p238, %s14, 1
      %s240 = smul.addr %s239, 4
      %s241 = scalar_lea.vmem %s3, %s240
      // Predicated region
      $region33: #{decode_layer.8} parent=31 // pred_check
        %p242 = pneg %p100
      $region34: #{decode_layer.8} parent=31 // pred_check_branch
        %244 = sbr.rel (%p242) target = $region36
      $region35: #{decode_layer.8} parent=31 // pred_region
        _
      $region36: #{decode_layer.8} parent=31 // pred_fallthru
        _
    $region32: #{decode_layer.8} parent=5 // pred_fallthru
      _
    %p245 = scmp.le.s32.totalorder 2, %s9
    // Predicated region
    $region37: #{decode_layer.8} parent=5 // pred_check
      %p246 = pneg %p245
    $region38: #{decode_layer.8} parent=5 // pred_check_branch
      %248 = sbr.rel (%p246) target = $region40
    $region39: #{decode_layer.8} parent=5 // pred_region
      %s249 = ssub.s32 %s9, 2
      // Predicated region
      $region41: #{decode_layer.8} parent=39 // pred_check
        %p250 = pneg %p106
      $region42: #{decode_layer.8} parent=39 // pred_check_branch
        %252 = sbr.rel (%p250) target = $region44
      $region43: #{decode_layer.8} parent=39 // pred_region
        %p253 = scmp.lt.s32.totalorder %s15, 1
        %s254 = scalar_select %p253, %s15, 1
        %s255 = smul.addr %s254, 4
        %s256 = scalar_lea.vmem %s3, %s255
      $region44: #{decode_layer.8} parent=39 // pred_fallthru
        _
    $region40: #{decode_layer.8} parent=5 // pred_fallthru
      _
  $region6: #{decode_layer.8} parent=0 // loop_footer
    %s13 = sadd.s32 1, %s9
  $region7: #{decode_layer.8} parent=0 // loop_footer_branch
    %8 = sbr.rel target = $region3
  $region8: #{decode_layer.8} parent=0 // loop_exit
    _

// kernel: decode_layer.12
$region0: #{decode_layer.12}
  #allocation0 [shape = 'u32[]', space=smem, size = 0x4, offset = 0x4, fixed_abs, tag = 'smem constant byte address 0x4 - core index']
  #allocation1 [shape = 'u32[144,128]{1,0:T(1,128)}', space=vmem, size = 0x12000, scoped, tag = 'internal scratch']
  %s0 = inlined_call_operand.vmem [shape: bf16[16,32], index: 0, kind: input, shape index: {}]
  %s1 = inlined_call_operand.vmem [shape: bf16[32,64], index: 1, kind: input, shape index: {}]
  %s2 = inlined_call_operand.vmem [shape: f32[1,64], index: 2, kind: input, shape index: {}]
  %s3 = inlined_call_operand.vmem [shape: bf16[16,64], index: 3, kind: output, shape index: {}]
  %s4 = sld [smem:[#allocation0]]
  $region45: #{decode_layer.12} parent=0
    _
  %s6 = ssub.s32 1, %s4
  %s7 = scalar_select 0, %s6, %s4
  loop: start=0, step=1, limit=4
  $region2: #{decode_layer.12} parent=0 // loop_pre_header
    _
  $region3: #{decode_layer.12} parent=0 // loop_header
    %s9 = sphi 0, %s13
    %p10 = scmp.ge.s32.totalorder %s9, 4
    %s19 = sphi 0, %s21
    %s22 = sphi 0, %s19
    %s23 = sphi 0, %s22
    %s39 = sphi 0, %s23
    %s43 = sphi 0, %s43
    %s45 = sphi 0, %s43
    %s46 = sphi 0, %s45
    %s60 = sphi 0, %s46
    %s64 = sphi 0, %s64
    %s66 = sphi 0, %s64
    %s67 = sphi 0, %s66
    %s81 = sphi 0, %s67
    %s87 = sphi 0, %s89
    %s90 = sphi 0, %s87
    %s91 = sphi 0, %s90
    %s107 = sphi 0, %s91
  $region4: #{decode_layer.12} parent=0 // loop_header_branch
    %12 = sbr.rel (%p10) target = $region8
  $region5: #{decode_layer.12} parent=0 // loop_body
    %s14 = ssub.s32 %s9, 1
    %s15 = ssub.s32 %s9, 2
    %s16 = sadd.s32 %s9, 1
    %s17 = ssub.s32 %s9, %s16
    %p18 = scmp.eq.s32.totalorder %s17, 0
    %s20 = sadd.s32 %s19, 1
    %s21 = scalar_select %p18, %s19, %s20
    %p24 = pneg %p18
    %p25 = scmp.eq.s32.totalorder %s9, 1
    %p26 = por %p24, %p25
    %p27 = scmp.ne.s32.totalorder %s19, %s22
    %p28 = scmp.eq.s32.totalorder %s9, 0
    %p29 = por %p27, %p28
    %p30 = scmp.ne.s32.totalorder %s19, %s22
    %p31 = scmp.eq.s32.totalorder %s14, 1
    %p32 = por %p30, %p31
    %p33 = scmp.ne.s32.totalorder %s22, %s23
    %p34 = scmp.eq.s32.totalorder %s14, 0
    %p35 = por %p33, %p34
    %p36 = scmp.ne.s32.totalorder %s22, %s23
    %p37 = scmp.eq.s32.totalorder %s15, 1
    %p38 = por %p36, %p37
    %p40 = scmp.ne.s32.totalorder %s23, %s39
    %p41 = scmp.eq.s32.totalorder %s15, 0
    %p42 = por %p40, %p41
    %s44 = sadd.s32 %s43, 1
    %p47 = scmp.eq.s32.totalorder %s9, 1
    %p48 = scmp.ne.s32.totalorder %s43, %s45
    %p49 = scmp.eq.s32.totalorder %s9, 0
    %p50 = por %p48, %p49
    %p51 = scmp.ne.s32.totalorder %s43, %s45
    %p52 = scmp.eq.s32.totalorder %s14, 1
    %p53 = por %p51, %p52
    %p54 = scmp.ne.s32.totalorder %s45, %s46
    %p55 = scmp.eq.s32.totalorder %s14, 0
    %p56 = por %p54, %p55
    %p57 = scmp.ne.s32.totalorder %s45, %s46
    %p58 = scmp.eq.s32.totalorder %s15, 1
    %p59 = por %p57, %p58
    %p61 = scmp.ne.s32.totalorder %s46, %s60
    %p62 = scmp.eq.s32.totalorder %s15, 0
    %p63 = por %p61, %p62
    %s65 = sadd.s32 %s64, 1
    %p68 = scmp.eq.s32.totalorder %s9, 1
    %p69 = scmp.ne.s32.totalorder %s64, %s66
    %p70 = scmp.eq.s32.totalorder %s9, 0
    %p71 = por %p69, %p70
    %p72 = scmp.ne.s32.totalorder %s64, %s66
    %p73 = scmp.eq.s32.totalorder %s14, 1
    %p74 = por %p72, %p73
    %p75 = scmp.ne.s32.totalorder %s66, %s67
    %p76 = scmp.eq.s32.totalorder %s14, 0
    %p77 = por %p75, %p76
    %p78 = scmp.ne.s32.totalorder %s66, %s67
    %p79 = scmp.eq.s32.totalorder %s15, 1
    %p80 = por %p78, %p79
    %p82 = scmp.ne.s32.totalorder %s67, %s81
    %p83 = scmp.eq.s32.totalorder %s15, 0
    %p84 = por %p82, %p83
    %s85 = ssub.s32 %s9, %s16
    %p86 = scmp.eq.s32.totalorder %s85, 0
    %s88 = sadd.s32 %s87, 1
    %s89 = scalar_select %p86, %s87, %s88
    %p92 = pneg %p86
    %p93 = scmp.eq.s32.totalorder %s9, 1
    %p94 = por %p92, %p93
    %p95 = scmp.ne.s32.totalorder %s87, %s90
    %p96 = scmp.eq.s32.totalorder %s9, 0
    %p97 = por %p95, %p96
    %p98 = scmp.ne.s32.totalorder %s87, %s90
    %p99 = scmp.eq.s32.totalorder %s14, 1
    %p100 = por %p98, %p99
    %p101 = scmp.ne.s32.totalorder %s90, %s91
    %p102 = scmp.eq.s32.totalorder %s14, 0
    %p103 = por %p101, %p102
    %p104 = scmp.ne.s32.totalorder %s90, %s91
    %p105 = scmp.eq.s32.totalorder %s15, 1
    %p106 = por %p104, %p105
    %p108 = scmp.ne.s32.totalorder %s91, %s107
    %p109 = scmp.eq.s32.totalorder %s15, 0
    %p110 = por %p108, %p109
    %p111 = scmp.le.s32.totalorder 1, %s9
    %p112 = scmp.lt.s32.totalorder %s9, 3
    %p113 = pnand %p111, %p112
    %p114 = pneg %p113
    // Predicated region
    $region9: #{decode_layer.12} parent=5 // pred_check
      _
    $region10: #{decode_layer.12} parent=5 // pred_check_branch
      %116 = sbr.rel (%p113) target = $region12
    $region11: #{decode_layer.12} parent=5 // pred_region
      %s117 = ssub.s32 %s9, 1
      // Predicated region
      $region13: #{decode_layer.12} parent=11 // pred_check
        %p118 = pneg %p56
      $region14: #{decode_layer.12} parent=11 // pred_check_branch
        %120 = sbr.rel (%p118) target = $region16
      $region15: #{decode_layer.12} parent=11 // pred_region
        _
      $region16: #{decode_layer.12} parent=11 // pred_fallthru
        _
      // Predicated region
      $region17: #{decode_layer.12} parent=11 // pred_check
        %p121 = pneg %p77
      $region18: #{decode_layer.12} parent=11 // pred_check_branch
        %123 = sbr.rel (%p121) target = $region20
      $region19: #{decode_layer.12} parent=11 // pred_region
        _
      $region20: #{decode_layer.12} parent=11 // pred_fallthru
        _
    $region12: #{decode_layer.12} parent=5 // pred_fallthru
      _
    %p124 = scmp.lt.s32.totalorder %s9, 2
    // Predicated region
    $region21: #{decode_layer.12} parent=5 // pred_check
      %p125 = pneg %p124
    $region22: #{decode_layer.12} parent=5 // pred_check_branch
      %127 = sbr.rel (%p125) target = $region24
    $region23: #{decode_layer.12} parent=5 // pred_region
      // Predicated region
      $region25: #{decode_layer.12} parent=23 // pred_check
        %p128 = pneg %p29
      $region26: #{decode_layer.12} parent=23 // pred_check_branch
        %130 = sbr.rel (%p128) target = $region28
      $region27: #{decode_layer.12} parent=23 // pred_region
        %p131 = scmp.lt.s32.totalorder %s9, 1
        %s132 = scalar_select %p131, %s9, 1
        %s133 = smul.addr %s132, 4
        %s134 = scalar_lea.vmem %s0, %s133
      $region28: #{decode_layer.12} parent=23 // pred_fallthru
        _
    $region24: #{decode_layer.12} parent=5 // pred_fallthru
      _
    %p135 = scmp.le.s32.totalorder 1, %s9
    %p136 = scmp.lt.s32.totalorder %s9, 3
    %p137 = pnand %p135, %p136
    %p138 = pneg %p137
    // Predicated region
    $region29: #{decode_layer.12} parent=5 // pred_check
      _
    $region30: #{decode_layer.12} parent=5 // pred_check_branch
      %140 = sbr.rel (%p137) target = $region32
    $region31: #{decode_layer.12} parent=5 // pred_region
      %s141 = ssub.s32 %s9, 1
      %p142 = scmp.lt.s32.totalorder %s14, 1
      %s143 = scalar_select %p142, %s14, 1
      %s144 = smul.addr %s143, 4
      %s145 = scalar_lea.vmem %s0, %s144
      %p146 = pneg %p35
      %p147 = pneg %p32
      %p148 = pneg %p56
      %p149 = pneg %p53
      %p150 = pneg %p77
      %p151 = pneg %p74
      %p152 = pneg %p103
      %p153 = pneg %p100
      %p154 = scmp.lt.s32.totalorder %s14, 1
      %s155 = scalar_select %p154, %s14, 1
      %s156 = smul.addr %s155, 4
      %s157 = scalar_lea.vmem %s3, %s156
      %p158 = scmp.lt.s32.totalorder %s14, 1
      %s159 = scalar_select %p158, %s14, 1
      %s160 = smul.addr %s159, 4
      %s161 = scalar_lea.vmem %s0, %s160
      %p162 = scmp.lt.s32.totalorder %s14, 1
      %s163 = scalar_select %p162, %s14, 1
      %s164 = smul.addr %s163, 4
      %s165 = scalar_lea.vmem %s3, %s164
      %v167 = vld [vmem:[%s161] sm:$0xf]
      %v168 = vld [vmem:[%s1] sm:$0xf]
      %v169 = vld [vmem:[%s1 + $0x4] sm:$0xf]
      %v170 = vld [vmem:[%s1 + $0x8] sm:$0xf]
      %v171 = vld [vmem:[%s1 + $0xc] sm:$0xf]
      %v172 = vld [vmem:[%s2] sm:$0x1]
      %v174 = vlaneseq
      %v175 = vshrl.u32 %v174, 7
      %v176 = vsub.s32 0, %v175
      %v177 = vrot.slane %v172, %v176
      %v183 = vunpack.c.l.b16 %v168
      %v184 = vunpack.c.l.b16 %v169
      %v185 = vunpack.c.l.b16 %v170
      %v186 = vunpack.c.l.b16 %v171
      %v187 = vpack.c.b16 %v184, %v183
      %v188 = vpack.c.b16 %v186, %v185
      %vm191 = vcmask 261120
      %v193 = vsel %vm191, %v167, 0
      %195 = vmatprep.subr.bf16.mxu0 0
      %196 = vmatpush1.bf16.msra.mxu0 %v187
      %197 = vmatprep.subr.bf16.mxu0 0
      %198 = vmatpush1.bf16.msra.mxu0 %v188
      %199 = vmatprep.subr.bf16.mxu0 0
      %200 = vmatpush1.bf16.msra.mxu0 0
      %201 = vmatprep.subr.bf16.mxu0 0
      %202 = vmatpush1.bf16.msra.mxu0 0
      %203 = vmatprep.subr.bf16.mxu0 0
      %204 = vmatpush1.bf16.msra.mxu0 0
      %205 = vmatprep.subr.bf16.mxu0 0
      %206 = vmatpush1.bf16.msra.mxu0 0
      %207 = vmatprep.subr.bf16.mxu0 0
      %208 = vmatpush1.bf16.msra.mxu0 0
      %209 = vmatprep.subr.bf16.mxu0 0
      %210 = vmatpush1.bf16.msra.mxu0 0
      %211 = vmatprep.subr.bf16.mxu0 0
      %212 = vmatpush1.bf16.msra.mxu0 0
      %213 = vmatprep.subr.bf16.mxu0 0
      %214 = vmatpush1.bf16.msra.mxu0 0
      %215 = vmatprep.subr.bf16.mxu0 0
      %216 = vmatpush1.bf16.msra.mxu0 0
      %217 = vmatprep.subr.bf16.mxu0 0
      %218 = vmatpush1.bf16.msra.mxu0 0
      %219 = vmatprep.subr.bf16.mxu0 0
      %220 = vmatpush1.bf16.msra.mxu0 0
      %221 = vmatprep.subr.bf16.mxu0 0
      %222 = vmatpush1.bf16.msra.mxu0 0
      %223 = vmatprep.subr.bf16.mxu0 0
      %224 = vmatpush1.bf16.msra.mxu0 0
      %225 = vmatprep.subr.bf16.mxu0 0
      %226 = vmatpush1.bf16.msra.mxu0 0
      %227 = vmatprep.mubr.bf16.mxu0 0
      %228 = vmatmul.mubr.bf16.gmra.mrb[0].mxu0 %v193
      %v229 = vpop.f32.mrb[0].mxu0
      %v230 = vadd.f32 %v177, %v229
      %v231 = vpop.f32.mrb[0].mxu0
      %v232 = vpop.f32.mrb[0].mxu0
      %v233 = vpop.f32.mrb[0].mxu0
      %234 = vdwg.mxu0
      %v235 = vpack.c.bf16 %v230, %v230
      %vm236 = vcmask 519168
      %237 = vst.msk [vmem:[%s165] sm:$0xf] %vm236, %v235
      %p238 = scmp.lt.s32.totalorder %s14, 1
      %s239 = scalar_select %p238, %s14, 1
      %s240 = smul.addr %s239, 4
      %s241 = scalar_lea.vmem %s3, %s240
      // Predicated region
      $region33: #{decode_layer.12} parent=31 // pred_check
        %p242 = pneg %p100
      $region34: #{decode_layer.12} parent=31 // pred_check_branch
        %244 = sbr.rel (%p242) target = $region36
      $region35: #{decode_layer.12} parent=31 // pred_region
        _
      $region36: #{decode_layer.12} parent=31 // pred_fallthru
        _
    $region32: #{decode_layer.12} parent=5 // pred_fallthru
      _
    %p245 = scmp.le.s32.totalorder 2, %s9
    // Predicated region
    $region37: #{decode_layer.12} parent=5 // pred_check
      %p246 = pneg %p245
    $region38: #{decode_layer.12} parent=5 // pred_check_branch
      %248 = sbr.rel (%p246) target = $region40
    $region39: #{decode_layer.12} parent=5 // pred_region
      %s249 = ssub.s32 %s9, 2
      // Predicated region
      $region41: #{decode_layer.12} parent=39 // pred_check
        %p250 = pneg %p106
      $region42: #{decode_layer.12} parent=39 // pred_check_branch
        %252 = sbr.rel (%p250) target = $region44
      $region43: #{decode_layer.12} parent=39 // pred_region
        %p253 = scmp.lt.s32.totalorder %s15, 1
        %s254 = scalar_select %p253, %s15, 1
        %s255 = smul.addr %s254, 4
        %s256 = scalar_lea.vmem %s3, %s255
      $region44: #{decode_layer.12} parent=39 // pred_fallthru
        _
    $region40: #{decode_layer.12} parent=5 // pred_fallthru
      _
  $region6: #{decode_layer.12} parent=0 // loop_footer
    %s13 = sadd.s32 1, %s9
  $region7: #{decode_layer.12} parent=0 // loop_footer_branch
    %8 = sbr.rel target = $region3
  $region8: #{decode_layer.12} parent=0 // loop_exit
    _

// kernel: decode_layer.10
$region0: #{decode_layer.10}
  #allocation0 [shape = 'u32[]', space=smem, size = 0x4, offset = 0x4, fixed_abs, tag = 'smem constant byte address 0x4 - core index']
  #allocation1 [shape = 'u32[144,128]{1,0:T(1,128)}', space=vmem, size = 0x12000, scoped, tag = 'internal scratch']
  %s0 = inlined_call_operand.vmem [shape: bf16[16,32], index: 0, kind: input, shape index: {}]
  %s1 = inlined_call_operand.vmem [shape: bf16[32,32], index: 1, kind: input, shape index: {}]
  %s2 = inlined_call_operand.vmem [shape: f32[1,32], index: 2, kind: input, shape index: {}]
  %s3 = inlined_call_operand.vmem [shape: f32[16,32], index: 3, kind: input, shape index: {}]
  %s4 = inlined_call_operand.vmem [shape: f32[1,32], index: 4, kind: input, shape index: {}]
  %s5 = inlined_call_operand.vmem [shape: f32[1,32], index: 5, kind: input, shape index: {}]
  %s6 = inlined_call_operand.vmem [shape: f32[16,32], index: 6, kind: output, shape index: {}]
  %s7 = sld [smem:[#allocation0]]
  $region57: #{decode_layer.10} parent=0
    _
  %s9 = ssub.s32 1, %s7
  %s10 = scalar_select 0, %s9, %s7
  loop: start=0, step=1, limit=4
  $region2: #{decode_layer.10} parent=0 // loop_pre_header
    _
  $region3: #{decode_layer.10} parent=0 // loop_header
    %s12 = sphi 0, %s16
    %p13 = scmp.ge.s32.totalorder %s12, 4
    %s22 = sphi 0, %s24
    %s25 = sphi 0, %s22
    %s26 = sphi 0, %s25
    %s42 = sphi 0, %s26
    %s46 = sphi 0, %s46
    %s48 = sphi 0, %s46
    %s49 = sphi 0, %s48
    %s63 = sphi 0, %s49
    %s67 = sphi 0, %s67
    %s69 = sphi 0, %s67
    %s70 = sphi 0, %s69
    %s84 = sphi 0, %s70
    %s90 = sphi 0, %s92
    %s93 = sphi 0, %s90
    %s94 = sphi 0, %s93
    %s110 = sphi 0, %s94
    %s114 = sphi 0, %s114
    %s116 = sphi 0, %s114
    %s117 = sphi 0, %s116
    %s131 = sphi 0, %s117
    %s135 = sphi 0, %s135
    %s137 = sphi 0, %s135
    %s138 = sphi 0, %s137
    %s152 = sphi 0, %s138
    %s158 = sphi 0, %s160
    %s161 = sphi 0, %s158
    %s162 = sphi 0, %s161
    %s178 = sphi 0, %s162
  $region4: #{decode_layer.10} parent=0 // loop_header_branch
    %15 = sbr.rel (%p13) target = $region8
  $region5: #{decode_layer.10} parent=0 // loop_body
    %s17 = ssub.s32 %s12, 1
    %s18 = ssub.s32 %s12, 2
    %s19 = sadd.s32 %s12, 1
    %s20 = ssub.s32 %s12, %s19
    %p21 = scmp.eq.s32.totalorder %s20, 0
    %s23 = sadd.s32 %s22, 1
    %s24 = scalar_select %p21, %s22, %s23
    %p27 = pneg %p21
    %p28 = scmp.eq.s32.totalorder %s12, 1
    %p29 = por %p27, %p28
    %p30 = scmp.ne.s32.totalorder %s22, %s25
    %p31 = scmp.eq.s32.totalorder %s12, 0
    %p32 = por %p30, %p31
    %p33 = scmp.ne.s32.totalorder %s22, %s25
    %p34 = scmp.eq.s32.totalorder %s17, 1
    %p35 = por %p33, %p34
    %p36 = scmp.ne.s32.totalorder %s25, %s26
    %p37 = scmp.eq.s32.totalorder %s17, 0
    %p38 = por %p36, %p37
    %p39 = scmp.ne.s32.totalorder %s25, %s26
    %p40 = scmp.eq.s32.totalorder %s18, 1
    %p41 = por %p39, %p40
    %p43 = scmp.ne.s32.totalorder %s26, %s42
    %p44 = scmp.eq.s32.totalorder %s18, 0
    %p45 = por %p43, %p44
    %s47 = sadd.s32 %s46, 1
    %p50 = scmp.eq.s32.totalorder %s12, 1
    %p51 = scmp.ne.s32.totalorder %s46, %s48
    %p52 = scmp.eq.s32.totalorder %s12, 0
    %p53 = por %p51, %p52
    %p54 = scmp.ne.s32.totalorder %s46, %s48
    %p55 = scmp.eq.s32.totalorder %s17, 1
    %p56 = por %p54, %p55
    %p57 = scmp.ne.s32.totalorder %s48, %s49
    %p58 = scmp.eq.s32.totalorder %s17, 0
    %p59 = por %p57, %p58
    %p60 = scmp.ne.s32.totalorder %s48, %s49
    %p61 = scmp.eq.s32.totalorder %s18, 1
    %p62 = por %p60, %p61
    %p64 = scmp.ne.s32.totalorder %s49, %s63
    %p65 = scmp.eq.s32.totalorder %s18, 0
    %p66 = por %p64, %p65
    %s68 = sadd.s32 %s67, 1
    %p71 = scmp.eq.s32.totalorder %s12, 1
    %p72 = scmp.ne.s32.totalorder %s67, %s69
    %p73 = scmp.eq.s32.totalorder %s12, 0
    %p74 = por %p72, %p73
    %p75 = scmp.ne.s32.totalorder %s67, %s69
    %p76 = scmp.eq.s32.totalorder %s17, 1
    %p77 = por %p75, %p76
    %p78 = scmp.ne.s32.totalorder %s69, %s70
    %p79 = scmp.eq.s32.totalorder %s17, 0
    %p80 = por %p78, %p79
    %p81 = scmp.ne.s32.totalorder %s69, %s70
    %p82 = scmp.eq.s32.totalorder %s18, 1
    %p83 = por %p81, %p82
    %p85 = scmp.ne.s32.totalorder %s70, %s84
    %p86 = scmp.eq.s32.totalorder %s18, 0
    %p87 = por %p85, %p86
    %s88 = ssub.s32 %s12, %s19
    %p89 = scmp.eq.s32.totalorder %s88, 0
    %s91 = sadd.s32 %s90, 1
    %s92 = scalar_select %p89, %s90, %s91
    %p95 = pneg %p89
    %p96 = scmp.eq.s32.totalorder %s12, 1
    %p97 = por %p95, %p96
    %p98 = scmp.ne.s32.totalorder %s90, %s93
    %p99 = scmp.eq.s32.totalorder %s12, 0
    %p100 = por %p98, %p99
    %p101 = scmp.ne.s32.totalorder %s90, %s93
    %p102 = scmp.eq.s32.totalorder %s17, 1
    %p103 = por %p101, %p102
    %p104 = scmp.ne.s32.totalorder %s93, %s94
    %p105 = scmp.eq.s32.totalorder %s17, 0
    %p106 = por %p104, %p105
    %p107 = scmp.ne.s32.totalorder %s93, %s94
    %p108 = scmp.eq.s32.totalorder %s18, 1
    %p109 = por %p107, %p108
    %p111 = scmp.ne.s32.totalorder %s94, %s110
    %p112 = scmp.eq.s32.totalorder %s18, 0
    %p113 = por %p111, %p112
    %s115 = sadd.s32 %s114, 1
    %p118 = scmp.eq.s32.totalorder %s12, 1
    %p119 = scmp.ne.s32.totalorder %s114, %s116
    %p120 = scmp.eq.s32.totalorder %s12, 0
    %p121 = por %p119, %p120
    %p122 = scmp.ne.s32.totalorder %s114, %s116
    %p123 = scmp.eq.s32.totalorder %s17, 1
    %p124 = por %p122, %p123
    %p125 = scmp.ne.s32.totalorder %s116, %s117
    %p126 = scmp.eq.s32.totalorder %s17, 0
    %p127 = por %p125, %p126
    %p128 = scmp.ne.s32.totalorder %s116, %s117
    %p129 = scmp.eq.s32.totalorder %s18, 1
    %p130 = por %p128, %p129
    %p132 = scmp.ne.s32.totalorder %s117, %s131
    %p133 = scmp.eq.s32.totalorder %s18, 0
    %p134 = por %p132, %p133
    %s136 = sadd.s32 %s135, 1
    %p139 = scmp.eq.s32.totalorder %s12, 1
    %p140 = scmp.ne.s32.totalorder %s135, %s137
    %p141 = scmp.eq.s32.totalorder %s12, 0
    %p142 = por %p140, %p141
    %p143 = scmp.ne.s32.totalorder %s135, %s137
    %p144 = scmp.eq.s32.totalorder %s17, 1
    %p145 = por %p143, %p144
    %p146 = scmp.ne.s32.totalorder %s137, %s138
    %p147 = scmp.eq.s32.totalorder %s17, 0
    %p148 = por %p146, %p147
    %p149 = scmp.ne.s32.totalorder %s137, %s138
    %p150 = scmp.eq.s32.totalorder %s18, 1
    %p151 = por %p149, %p150
    %p153 = scmp.ne.s32.totalorder %s138, %s152
    %p154 = scmp.eq.s32.totalorder %s18, 0
    %p155 = por %p153, %p154
    %s156 = ssub.s32 %s12, %s19
    %p157 = scmp.eq.s32.totalorder %s156, 0
    %s159 = sadd.s32 %s158, 1
    %s160 = scalar_select %p157, %s158, %s159
    %p163 = pneg %p157
    %p164 = scmp.eq.s32.totalorder %s12, 1
    %p165 = por %p163, %p164
    %p166 = scmp.ne.s32.totalorder %s158, %s161
    %p167 = scmp.eq.s32.totalorder %s12, 0
    %p168 = por %p166, %p167
    %p169 = scmp.ne.s32.totalorder %s158, %s161
    %p170 = scmp.eq.s32.totalorder %s17, 1
    %p171 = por %p169, %p170
    %p172 = scmp.ne.s32.totalorder %s161, %s162
    %p173 = scmp.eq.s32.totalorder %s17, 0
    %p174 = por %p172, %p173
    %p175 = scmp.ne.s32.totalorder %s161, %s162
    %p176 = scmp.eq.s32.totalorder %s18, 1
    %p177 = por %p175, %p176
    %p179 = scmp.ne.s32.totalorder %s162, %s178
    %p180 = scmp.eq.s32.totalorder %s18, 0
    %p181 = por %p179, %p180
    %p182 = scmp.le.s32.totalorder 1, %s12
    %p183 = scmp.lt.s32.totalorder %s12, 3
    %p184 = pnand %p182, %p183
    %p185 = pneg %p184
    // Predicated region
    $region9: #{decode_layer.10} parent=5 // pred_check
      _
    $region10: #{decode_layer.10} parent=5 // pred_check_branch
      %187 = sbr.rel (%p184) target = $region12
    $region11: #{decode_layer.10} parent=5 // pred_region
      %s188 = ssub.s32 %s12, 1
      // Predicated region
      $region13: #{decode_layer.10} parent=11 // pred_check
        %p189 = pneg %p59
      $region14: #{decode_layer.10} parent=11 // pred_check_branch
        %191 = sbr.rel (%p189) target = $region16
      $region15: #{decode_layer.10} parent=11 // pred_region
        _
      $region16: #{decode_layer.10} parent=11 // pred_fallthru
        _
      // Predicated region
      $region17: #{decode_layer.10} parent=11 // pred_check
        %p192 = pneg %p80
      $region18: #{decode_layer.10} parent=11 // pred_check_branch
        %194 = sbr.rel (%p192) target = $region20
      $region19: #{decode_layer.10} parent=11 // pred_region
        _
      $region20: #{decode_layer.10} parent=11 // pred_fallthru
        _
      // Predicated region
      $region21: #{decode_layer.10} parent=11 // pred_check
        %p195 = pneg %p127
      $region22: #{decode_layer.10} parent=11 // pred_check_branch
        %197 = sbr.rel (%p195) target = $region24
      $region23: #{decode_layer.10} parent=11 // pred_region
        _
      $region24: #{decode_layer.10} parent=11 // pred_fallthru
        _
      // Predicated region
      $region25: #{decode_layer.10} parent=11 // pred_check
        %p198 = pneg %p148
      $region26: #{decode_layer.10} parent=11 // pred_check_branch
        %200 = sbr.rel (%p198) target = $region28
      $region27: #{decode_layer.10} parent=11 // pred_region
        _
      $region28: #{decode_layer.10} parent=11 // pred_fallthru
        _
    $region12: #{decode_layer.10} parent=5 // pred_fallthru
      _
    %p201 = scmp.lt.s32.totalorder %s12, 2
    // Predicated region
    $region29: #{decode_layer.10} parent=5 // pred_check
      %p202 = pneg %p201
    $region30: #{decode_layer.10} parent=5 // pred_check_branch
      %204 = sbr.rel (%p202) target = $region32
    $region31: #{decode_layer.10} parent=5 // pred_region
      // Predicated region
      $region33: #{decode_layer.10} parent=31 // pred_check
        %p205 = pneg %p32
      $region34: #{decode_layer.10} parent=31 // pred_check_branch
        %207 = sbr.rel (%p205) target = $region36
      $region35: #{decode_layer.10} parent=31 // pred_region
        %p208 = scmp.lt.s32.totalorder %s12, 1
        %s209 = scalar_select %p208, %s12, 1
        %s210 = smul.addr %s209, 4
        %s211 = scalar_lea.vmem %s0, %s210
      $region36: #{decode_layer.10} parent=31 // pred_fallthru
        _
      // Predicated region
      $region37: #{decode_layer.10} parent=31 // pred_check
        %p212 = pneg %p100
      $region38: #{decode_layer.10} parent=31 // pred_check_branch
        %214 = sbr.rel (%p212) target = $region40
      $region39: #{decode_layer.10} parent=31 // pred_region
        %p215 = scmp.lt.s32.totalorder %s12, 1
        %s216 = scalar_select %p215, %s12, 1
        %s217 = smul.addr %s216, 8
        %s218 = scalar_lea.vmem %s3, %s217
      $region40: #{decode_layer.10} parent=31 // pred_fallthru
        _
    $region32: #{decode_layer.10} parent=5 // pred_fallthru
      _
    %p219 = scmp.le.s32.totalorder 1, %s12
    %p220 = scmp.lt.s32.totalorder %s12, 3
    %p221 = pnand %p219, %p220
    %p222 = pneg %p221
    // Predicated region
    $region41: #{decode_layer.10} parent=5 // pred_check
      _
    $region42: #{decode_layer.10} parent=5 // pred_check_branch
      %224 = sbr.rel (%p221) target = $region44
    $region43: #{decode_layer.10} parent=5 // pred_region
      %s225 = ssub.s32 %s12, 1
      %p226 = scmp.lt.s32.totalorder %s17, 1
      %s227 = scalar_select %p226, %s17, 1
      %s228 = smul.addr %s227, 4
      %s229 = scalar_lea.vmem %s0, %s228
      %p230 = pneg %p38
      %p231 = pneg %p35
      %p232 = pneg %p59
      %p233 = pneg %p56
      %p234 = pneg %p80
      %p235 = pneg %p77
      %p236 = scmp.lt.s32.totalorder %s17, 1
      %s237 = scalar_select %p236, %s17, 1
      %s238 = smul.addr %s237, 8
      %s239 = scalar_lea.vmem %s3, %s238
      %p240 = pneg %p106
      %p241 = pneg %p103
      %p242 = pneg %p127
      %p243 = pneg %p124
      %p244 = pneg %p148
      %p245 = pneg %p145
      %p246 = pneg %p174
      %p247 = pneg %p171
      %p248 = scmp.lt.s32.totalorder %s17, 1
      %s249 = scalar_select %p248, %s17, 1
      %s250 = smul.addr %s249, 8
      %s251 = scalar_lea.vmem %s6, %s250
      %p252 = scmp.lt.s32.totalorder %s17, 1
      %s253 = scalar_select %p252, %s17, 1
      %s254 = smul.addr %s253, 4
      %s255 = scalar_lea.vmem %s0, %s254
      %p256 = scmp.lt.s32.totalorder %s17, 1
      %s257 = scalar_select %p256, %s17, 1
      %s258 = smul.addr %s257, 8
      %s259 = scalar_lea.vmem %s3, %s258
      %p260 = scmp.lt.s32.totalorder %s17, 1
      %s261 = scalar_select %p260, %s17, 1
      %s262 = smul.addr %s261, 8
      %s263 = scalar_lea.vmem %s6, %s262
      %v265 = vld [vmem:[%s255] sm:$0xf]
      %v266 = vld [vmem:[%s1] sm:$0xf]
      %v267 = vld [vmem:[%s1 + $0x4] sm:$0xf]
      %v268 = vld [vmem:[%s1 + $0x8] sm:$0xf]
      %v269 = vld [vmem:[%s1 + $0xc] sm:$0xf]
      %v270 = vld [vmem:[%s2] sm:$0x1]
      %v272 = vlaneseq
      %v273 = vshrl.u32 %v272, 7
      %v274 = vsub.s32 0, %v273
      %v275 = vrot.slane %v270, %v274
      %v281 = vunpack.c.l.b16 %v266
      %v282 = vunpack.c.l.b16 %v267
      %v283 = vunpack.c.l.b16 %v268
      %v284 = vunpack.c.l.b16 %v269
      %v285 = vpack.c.b16 %v282, %v281
      %v286 = vpack.c.b16 %v284, %v283
      %vm289 = vcmask 261120
      %v291 = vsel %vm289, %v265, 0
      %293 = vmatprep.subr.bf16.mxu0 0
      %294 = vmatpush1.bf16.msra.mxu0 %v285
      %295 = vmatprep.subr.bf16.mxu0 0
      %296 = vmatpush1.bf16.msra.mxu0 %v286
      %297 = vmatprep.subr.bf16.mxu0 0
      %298 = vmatpush1.bf16.msra.mxu0 0
      %299 = vmatprep.subr.bf16.mxu0 0
      %300 = vmatpush1.bf16.msra.mxu0 0
      %301 = vmatprep.subr.bf16.mxu0 0
      %302 = vmatpush1.bf16.msra.mxu0 0
      %303 = vmatprep.subr.bf16.mxu0 0
      %304 = vmatpush1.bf16.msra.mxu0 0
      %305 = vmatprep.subr.bf16.mxu0 0
      %306 = vmatpush1.bf16.msra.mxu0 0
      %307 = vmatprep.subr.bf16.mxu0 0
      %308 = vmatpush1.bf16.msra.mxu0 0
      %309 = vmatprep.subr.bf16.mxu0 0
      %310 = vmatpush1.bf16.msra.mxu0 0
      %311 = vmatprep.subr.bf16.mxu0 0
      %312 = vmatpush1.bf16.msra.mxu0 0
      %313 = vmatprep.subr.bf16.mxu0 0
      %314 = vmatpush1.bf16.msra.mxu0 0
      %315 = vmatprep.subr.bf16.mxu0 0
      %316 = vmatpush1.bf16.msra.mxu0 0
      %317 = vmatprep.subr.bf16.mxu0 0
      %318 = vmatpush1.bf16.msra.mxu0 0
      %319 = vmatprep.subr.bf16.mxu0 0
      %320 = vmatpush1.bf16.msra.mxu0 0
      %321 = vmatprep.subr.bf16.mxu0 0
      %322 = vmatpush1.bf16.msra.mxu0 0
      %323 = vmatprep.subr.bf16.mxu0 0
      %324 = vmatpush1.bf16.msra.mxu0 0
      %325 = vmatprep.mubr.bf16.mxu0 0
      %326 = vmatmul.mubr.bf16.gmra.mrb[0].mxu0 %v291
      %v327 = vpop.f32.mrb[0].mxu0
      %v328 = vadd.f32 %v275, %v327
      %v329 = vpop.f32.mrb[0].mxu0
      %v330 = vpop.f32.mrb[0].mxu0
      %v331 = vpop.f32.mrb[0].mxu0
      %332 = vdwg.mxu0
      %v333 = vld [vmem:[%s259] sm:$0xff]
      %v334 = vadd.f32 %v328, %v333
      %v335 = vsel %vm289, %v334, 0.0
      %336 = vadd.xlane.f32.xlu0 %v335
      %v337 = vpop.xlane.xlu0 %336
      %v338 = vrcp.pop 32.0
      %v339 = vmul.f32 %v337, %v338
      %v340 = vsub.f32 %v334, %v339
      %v341 = vmul.f32 %v340, %v340
      %v342 = vsel %vm289, %v341, 0.0
      %343 = vadd.xlane.f32.xlu0 %v342
      %v344 = vpop.xlane.xlu0 %343
      %v345 = vmul.f32 %v344, %v338
      %v346 = vadd.f32 %v345, 1e-05
      %v347 = vrsqrt.pop %v346
      %v348 = vmul.f32 %v340, %v347
      %v349 = vld [vmem:[%s4] sm:$0x1]
      %v351 = vlaneseq
      %v352 = vshrl.u32 %v351, 7
      %v353 = vsub.s32 0, %v352
      %v354 = vrot.slane %v349, %v353
      %v356 = vmul.f32 %v348, %v354
      %v357 = vld [vmem:[%s5] sm:$0x1]
      %v359 = vlaneseq
      %v360 = vshrl.u32 %v359, 7
      %v361 = vsub.s32 0, %v360
      %v362 = vrot.slane %v357, %v361
      %v364 = vadd.f32 %v356, %v362
      %365 = vst.msk [vmem:[%s263] sm:$0xff] %vm289, %v364
      %p366 = scmp.lt.s32.totalorder %s17, 1
      %s367 = scalar_select %p366, %s17, 1
      %s368 = smul.addr %s367, 8
      %s369 = scalar_lea.vmem %s6, %s368
      // Predicated region
      $region45: #{decode_layer.10} parent=43 // pred_check
        %p370 = pneg %p171
      $region46: #{decode_layer.10} parent=43 // pred_check_branch
        %372 = sbr.rel (%p370) target = $region48
      $region47: #{decode_layer.10} parent=43 // pred_region
        _
      $region48: #{decode_layer.10} parent=43 // pred_fallthru
        _
    $region44: #{decode_layer.10} parent=5 // pred_fallthru
      _
    %p373 = scmp.le.s32.totalorder 2, %s12
    // Predicated region
    $region49: #{decode_layer.10} parent=5 // pred_check
      %p374 = pneg %p373
    $region50: #{decode_layer.10} parent=5 // pred_check_branch
      %376 = sbr.rel (%p374) target = $region52
    $region51: #{decode_layer.10} parent=5 // pred_region
      %s377 = ssub.s32 %s12, 2
      // Predicated region
      $region53: #{decode_layer.10} parent=51 // pred_check
        %p378 = pneg %p177
      $region54: #{decode_layer.10} parent=51 // pred_check_branch
        %380 = sbr.rel (%p378) target = $region56
      $region55: #{decode_layer.10} parent=51 // pred_region
        %p381 = scmp.lt.s32.totalorder %s18, 1
        %s382 = scalar_select %p381, %s18, 1
        %s383 = smul.addr %s382, 8
        %s384 = scalar_lea.vmem %s6, %s383
      $region56: #{decode_layer.10} parent=51 // pred_fallthru
        _
    $region52: #{decode_layer.10} parent=5 // pred_fallthru
      _
  $region6: #{decode_layer.10} parent=0 // loop_footer
    %s16 = sadd.s32 1, %s12
  $region7: #{decode_layer.10} parent=0 // loop_footer_branch
    %11 = sbr.rel target = $region3
  $region8: #{decode_layer.10} parent=0 // loop_exit
    _

// kernel: decode_layer.9
$region0: #{decode_layer.9}
  #allocation0 [shape = 'u32[]', space=smem, size = 0x4, offset = 0x4, fixed_abs, tag = 'smem constant byte address 0x4 - core index']
  #allocation1 [shape = 'u32[144,128]{1,0:T(1,128)}', space=vmem, size = 0x12000, scoped, tag = 'internal scratch']
  %s0 = inlined_call_operand.vmem [shape: f32[2,8,8], index: 0, kind: input, shape index: {}]
  %s1 = inlined_call_operand.vmem [shape: bf16[2,8,32], index: 1, kind: input, shape index: {}]
  %s2 = inlined_call_operand.vmem [shape: bf16[2,8,32], index: 2, kind: input, shape index: {}]
  %s3 = inlined_call_operand.vmem [shape: bf16[2,8,32], index: 3, kind: input, shape index: {}]
  %s4 = inlined_call_operand.vmem [shape: bf16[2,8,32], index: 4, kind: output, shape index: {}]
  %s5 = sld [smem:[#allocation0]]
  $region49: #{decode_layer.9} parent=0
    _
  %s7 = ssub.s32 1, %s5
  %s8 = scalar_select 0, %s7, %s5
  loop: start=0, step=1, limit=4
  $region2: #{decode_layer.9} parent=0 // loop_pre_header
    _
  $region3: #{decode_layer.9} parent=0 // loop_header
    %s10 = sphi 0, %s14
    %p11 = scmp.ge.s32.totalorder %s10, 4
    %s20 = sphi 0, %s22
    %s23 = sphi 0, %s20
    %s24 = sphi 0, %s23
    %s40 = sphi 0, %s24
    %s46 = sphi 0, %s48
    %s49 = sphi 0, %s46
    %s50 = sphi 0, %s49
    %s66 = sphi 0, %s50
    %s72 = sphi 0, %s74
    %s75 = sphi 0, %s72
    %s76 = sphi 0, %s75
    %s92 = sphi 0, %s76
    %s98 = sphi 0, %s100
    %s101 = sphi 0, %s98
    %s102 = sphi 0, %s101
    %s118 = sphi 0, %s102
    %s124 = sphi 0, %s126
    %s127 = sphi 0, %s124
    %s128 = sphi 0, %s127
    %s144 = sphi 0, %s128
  $region4: #{decode_layer.9} parent=0 // loop_header_branch
    %13 = sbr.rel (%p11) target = $region8
  $region5: #{decode_layer.9} parent=0 // loop_body
    %s15 = ssub.s32 %s10, 1
    %s16 = ssub.s32 %s10, 2
    %s17 = sadd.s32 %s10, 1
    %s18 = ssub.s32 %s10, %s17
    %p19 = scmp.eq.s32.totalorder %s18, 0
    %s21 = sadd.s32 %s20, 1
    %s22 = scalar_select %p19, %s20, %s21
    %p25 = pneg %p19
    %p26 = scmp.eq.s32.totalorder %s10, 1
    %p27 = por %p25, %p26
    %p28 = scmp.ne.s32.totalorder %s20, %s23
    %p29 = scmp.eq.s32.totalorder %s10, 0
    %p30 = por %p28, %p29
    %p31 = scmp.ne.s32.totalorder %s20, %s23
    %p32 = scmp.eq.s32.totalorder %s15, 1
    %p33 = por %p31, %p32
    %p34 = scmp.ne.s32.totalorder %s23, %s24
    %p35 = scmp.eq.s32.totalorder %s15, 0
    %p36 = por %p34, %p35
    %p37 = scmp.ne.s32.totalorder %s23, %s24
    %p38 = scmp.eq.s32.totalorder %s16, 1
    %p39 = por %p37, %p38
    %p41 = scmp.ne.s32.totalorder %s24, %s40
    %p42 = scmp.eq.s32.totalorder %s16, 0
    %p43 = por %p41, %p42
    %s44 = ssub.s32 %s10, %s17
    %p45 = scmp.eq.s32.totalorder %s44, 0
    %s47 = sadd.s32 %s46, 1
    %s48 = scalar_select %p45, %s46, %s47
    %p51 = pneg %p45
    %p52 = scmp.eq.s32.totalorder %s10, 1
    %p53 = por %p51, %p52
    %p54 = scmp.ne.s32.totalorder %s46, %s49
    %p55 = scmp.eq.s32.totalorder %s10, 0
    %p56 = por %p54, %p55
    %p57 = scmp.ne.s32.totalorder %s46, %s49
    %p58 = scmp.eq.s32.totalorder %s15, 1
    %p59 = por %p57, %p58
    %p60 = scmp.ne.s32.totalorder %s49, %s50
    %p61 = scmp.eq.s32.totalorder %s15, 0
    %p62 = por %p60, %p61
    %p63 = scmp.ne.s32.totalorder %s49, %s50
    %p64 = scmp.eq.s32.totalorder %s16, 1
    %p65 = por %p63, %p64
    %p67 = scmp.ne.s32.totalorder %s50, %s66
    %p68 = scmp.eq.s32.totalorder %s16, 0
    %p69 = por %p67, %p68
    %s70 = ssub.s32 %s10, %s17
    %p71 = scmp.eq.s32.totalorder %s70, 0
    %s73 = sadd.s32 %s72, 1
    %s74 = scalar_select %p71, %s72, %s73
    %p77 = pneg %p71
    %p78 = scmp.eq.s32.totalorder %s10, 1
    %p79 = por %p77, %p78
    %p80 = scmp.ne.s32.totalorder %s72, %s75
    %p81 = scmp.eq.s32.totalorder %s10, 0
    %p82 = por %p80, %p81
    %p83 = scmp.ne.s32.totalorder %s72, %s75
    %p84 = scmp.eq.s32.totalorder %s15, 1
    %p85 = por %p83, %p84
    %p86 = scmp.ne.s32.totalorder %s75, %s76
    %p87 = scmp.eq.s32.totalorder %s15, 0
    %p88 = por %p86, %p87
    %p89 = scmp.ne.s32.totalorder %s75, %s76
    %p90 = scmp.eq.s32.totalorder %s16, 1
    %p91 = por %p89, %p90
    %p93 = scmp.ne.s32.totalorder %s76, %s92
    %p94 = scmp.eq.s32.totalorder %s16, 0
    %p95 = por %p93, %p94
    %s96 = ssub.s32 %s10, %s17
    %p97 = scmp.eq.s32.totalorder %s96, 0
    %s99 = sadd.s32 %s98, 1
    %s100 = scalar_select %p97, %s98, %s99
    %p103 = pneg %p97
    %p104 = scmp.eq.s32.totalorder %s10, 1
    %p105 = por %p103, %p104
    %p106 = scmp.ne.s32.totalorder %s98, %s101
    %p107 = scmp.eq.s32.totalorder %s10, 0
    %p108 = por %p106, %p107
    %p109 = scmp.ne.s32.totalorder %s98, %s101
    %p110 = scmp.eq.s32.totalorder %s15, 1
    %p111 = por %p109, %p110
    %p112 = scmp.ne.s32.totalorder %s101, %s102
    %p113 = scmp.eq.s32.totalorder %s15, 0
    %p114 = por %p112, %p113
    %p115 = scmp.ne.s32.totalorder %s101, %s102
    %p116 = scmp.eq.s32.totalorder %s16, 1
    %p117 = por %p115, %p116
    %p119 = scmp.ne.s32.totalorder %s102, %s118
    %p120 = scmp.eq.s32.totalorder %s16, 0
    %p121 = por %p119, %p120
    %s122 = ssub.s32 %s10, %s17
    %p123 = scmp.eq.s32.totalorder %s122, 0
    %s125 = sadd.s32 %s124, 1
    %s126 = scalar_select %p123, %s124, %s125
    %p129 = pneg %p123
    %p130 = scmp.eq.s32.totalorder %s10, 1
    %p131 = por %p129, %p130
    %p132 = scmp.ne.s32.totalorder %s124, %s127
    %p133 = scmp.eq.s32.totalorder %s10, 0
    %p134 = por %p132, %p133
    %p135 = scmp.ne.s32.totalorder %s124, %s127
    %p136 = scmp.eq.s32.totalorder %s15, 1
    %p137 = por %p135, %p136
    %p138 = scmp.ne.s32.totalorder %s127, %s128
    %p139 = scmp.eq.s32.totalorder %s15, 0
    %p140 = por %p138, %p139
    %p141 = scmp.ne.s32.totalorder %s127, %s128
    %p142 = scmp.eq.s32.totalorder %s16, 1
    %p143 = por %p141, %p142
    %p145 = scmp.ne.s32.totalorder %s128, %s144
    %p146 = scmp.eq.s32.totalorder %s16, 0
    %p147 = por %p145, %p146
    %p148 = scmp.le.s32.totalorder 1, %s10
    %p149 = scmp.lt.s32.totalorder %s10, 3
    %p150 = pnand %p148, %p149
    %p151 = pneg %p150
    // Predicated region
    $region9: #{decode_layer.9} parent=5 // pred_check
      _
    $region10: #{decode_layer.9} parent=5 // pred_check_branch
      %153 = sbr.rel (%p150) target = $region12
    $region11: #{decode_layer.9} parent=5 // pred_region
      %s154 = ssub.s32 %s10, 1
    $region12: #{decode_layer.9} parent=5 // pred_fallthru
      _
    %p155 = scmp.lt.s32.totalorder %s10, 2
    // Predicated region
    $region13: #{decode_layer.9} parent=5 // pred_check
      %p156 = pneg %p155
    $region14: #{decode_layer.9} parent=5 // pred_check_branch
      %158 = sbr.rel (%p156) target = $region16
    $region15: #{decode_layer.9} parent=5 // pred_region
      // Predicated region
      $region17: #{decode_layer.9} parent=15 // pred_check
        %p159 = pneg %p30
      $region18: #{decode_layer.9} parent=15 // pred_check_branch
        %161 = sbr.rel (%p159) target = $region20
      $region19: #{decode_layer.9} parent=15 // pred_region
        %p162 = scmp.lt.s32.totalorder %s10, 1
        %s163 = scalar_select %p162, %s10, 1
        %s164 = smul.addr %s163, 8
        %s165 = scalar_lea.vmem %s0, %s164
      $region20: #{decode_layer.9} parent=15 // pred_fallthru
        _
      // Predicated region
      $region21: #{decode_layer.9} parent=15 // pred_check
        %p166 = pneg %p56
      $region22: #{decode_layer.9} parent=15 // pred_check_branch
        %168 = sbr.rel (%p166) target = $region24
      $region23: #{decode_layer.9} parent=15 // pred_region
        %p169 = scmp.lt.s32.totalorder %s10, 1
        %s170 = scalar_select %p169, %s10, 1
        %s171 = smul.addr %s170, 4
        %s172 = scalar_lea.vmem %s1, %s171
      $region24: #{decode_layer.9} parent=15 // pred_fallthru
        _
      // Predicated region
      $region25: #{decode_layer.9} parent=15 // pred_check
        %p173 = pneg %p82
      $region26: #{decode_layer.9} parent=15 // pred_check_branch
        %175 = sbr.rel (%p173) target = $region28
      $region27: #{decode_layer.9} parent=15 // pred_region
        %p176 = scmp.lt.s32.totalorder %s10, 1
        %s177 = scalar_select %p176, %s10, 1
        %s178 = smul.addr %s177, 4
        %s179 = scalar_lea.vmem %s2, %s178
      $region28: #{decode_layer.9} parent=15 // pred_fallthru
        _
      // Predicated region
      $region29: #{decode_layer.9} parent=15 // pred_check
        %p180 = pneg %p108
      $region30: #{decode_layer.9} parent=15 // pred_check_branch
        %182 = sbr.rel (%p180) target = $region32
      $region31: #{decode_layer.9} parent=15 // pred_region
        %p183 = scmp.lt.s32.totalorder %s10, 1
        %s184 = scalar_select %p183, %s10, 1
        %s185 = smul.addr %s184, 4
        %s186 = scalar_lea.vmem %s3, %s185
      $region32: #{decode_layer.9} parent=15 // pred_fallthru
        _
    $region16: #{decode_layer.9} parent=5 // pred_fallthru
      _
    %p187 = scmp.le.s32.totalorder 1, %s10
    %p188 = scmp.lt.s32.totalorder %s10, 3
    %p189 = pnand %p187, %p188
    %p190 = pneg %p189
    // Predicated region
    $region33: #{decode_layer.9} parent=5 // pred_check
      _
    $region34: #{decode_layer.9} parent=5 // pred_check_branch
      %192 = sbr.rel (%p189) target = $region36
    $region35: #{decode_layer.9} parent=5 // pred_region
      %s193 = ssub.s32 %s10, 1
      %p194 = scmp.lt.s32.totalorder %s15, 1
      %s195 = scalar_select %p194, %s15, 1
      %s196 = smul.addr %s195, 8
      %s197 = scalar_lea.vmem %s0, %s196
      %p198 = pneg %p36
      %p199 = pneg %p33
      %p200 = scmp.lt.s32.totalorder %s15, 1
      %s201 = scalar_select %p200, %s15, 1
      %s202 = smul.addr %s201, 4
      %s203 = scalar_lea.vmem %s1, %s202
      %p204 = pneg %p62
      %p205 = pneg %p59
      %p206 = scmp.lt.s32.totalorder %s15, 1
      %s207 = scalar_select %p206, %s15, 1
      %s208 = smul.addr %s207, 4
      %s209 = scalar_lea.vmem %s2, %s208
      %p210 = pneg %p88
      %p211 = pneg %p85
      %p212 = scmp.lt.s32.totalorder %s15, 1
      %s213 = scalar_select %p212, %s15, 1
      %s214 = smul.addr %s213, 4
      %s215 = scalar_lea.vmem %s3, %s214
      %p216 = pneg %p114
      %p217 = pneg %p111
      %p218 = pneg %p140
      %p219 = pneg %p137
      %p220 = scmp.lt.s32.totalorder %s15, 1
      %s221 = scalar_select %p220, %s15, 1
      %s222 = smul.addr %s221, 4
      %s223 = scalar_lea.vmem %s4, %s222
      %p224 = scmp.lt.s32.totalorder %s15, 1
      %s225 = scalar_select %p224, %s15, 1
      %s226 = smul.addr %s225, 8
      %s227 = scalar_lea.vmem %s0, %s226
      %p228 = scmp.lt.s32.totalorder %s15, 1
      %s229 = scalar_select %p228, %s15, 1
      %s230 = smul.addr %s229, 4
      %s231 = scalar_lea.vmem %s1, %s230
      %p232 = scmp.lt.s32.totalorder %s15, 1
      %s233 = scalar_select %p232, %s15, 1
      %s234 = smul.addr %s233, 4
      %s235 = scalar_lea.vmem %s2, %s234
      %p236 = scmp.lt.s32.totalorder %s15, 1
      %s237 = scalar_select %p236, %s15, 1
      %s238 = smul.addr %s237, 4
      %s239 = scalar_lea.vmem %s3, %s238
      %p240 = scmp.lt.s32.totalorder %s15, 1
      %s241 = scalar_select %p240, %s15, 1
      %s242 = smul.addr %s241, 4
      %s243 = scalar_lea.vmem %s4, %s242
      %v245 = vld [vmem:[%s227] sm:$0xff]
      %v246 = vld [vmem:[%s231] sm:$0xf]
      %v247 = vunpack.c.l.bf16 %v246
      %v248 = vmul.f32 %v247, 0.35355338
      %v249 = vpack.c.bf16 %v248, %v248
      %v250 = vld [vmem:[%s235] sm:$0xf]
      %v251 = vld [vmem:[%s239] sm:$0xf]
      %vm252 = vcmask 64512
      %v254 = vsel %vm252, %v249, 0
      %v257 = vsel %vm252, %v250, 0
      %259 = vmatprep.subr.bf16.mxu0 0
      %260 = vmatpush1.bf16.xpose.msra.mxu0 %v257
      %261 = vmatprep.subr.bf16.mxu0 0
      %262 = vmatpush1.bf16.xpose.msra.mxu0 0
      %263 = vmatprep.subr.bf16.mxu0 0
      %264 = vmatpush1.bf16.xpose.msra.mxu0 0
      %265 = vmatprep.subr.bf16.mxu0 0
      %266 = vmatpush1.bf16.xpose.msra.mxu0 0
      %267 = vmatprep.subr.bf16.mxu0 0
      %268 = vmatpush1.bf16.xpose.msra.mxu0 0
      %269 = vmatprep.subr.bf16.mxu0 0
      %270 = vmatpush1.bf16.xpose.msra.mxu0 0
      %271 = vmatprep.subr.bf16.mxu0 0
      %272 = vmatpush1.bf16.xpose.msra.mxu0 0
      %273 = vmatprep.subr.bf16.mxu0 0
      %274 = vmatpush1.bf16.xpose.msra.mxu0 0
      %275 = vmatprep.subr.bf16.mxu0 0
      %276 = vmatpush1.bf16.xpose.msra.mxu0 0
      %277 = vmatprep.subr.bf16.mxu0 0
      %278 = vmatpush1.bf16.xpose.msra.mxu0 0
      %279 = vmatprep.subr.bf16.mxu0 0
      %280 = vmatpush1.bf16.xpose.msra.mxu0 0
      %281 = vmatprep.subr.bf16.mxu0 0
      %282 = vmatpush1.bf16.xpose.msra.mxu0 0
      %283 = vmatprep.subr.bf16.mxu0 0
      %284 = vmatpush1.bf16.xpose.msra.mxu0 0
      %285 = vmatprep.subr.bf16.mxu0 0
      %286 = vmatpush1.bf16.xpose.msra.mxu0 0
      %287 = vmatprep.subr.bf16.mxu0 0
      %288 = vmatpush1.bf16.xpose.msra.mxu0 0
      %289 = vmatprep.subr.bf16.mxu0 0
      %290 = vmatpush1.bf16.xpose.msra.mxu0 0
      %291 = vmatprep.mubr.bf16.mxu0 0
      %292 = vmatmul.mubr.bf16.gmra.mrb[0].mxu0 %v254
      %v293 = vpop.f32.mrb[0].mxu0
      %v294 = vadd.f32 0.0, %v293
      %v295 = vpop.f32.mrb[0].mxu0
      %v296 = vpop.f32.mrb[0].mxu0
      %v297 = vpop.f32.mrb[0].mxu0
      %298 = vdwg.mxu0
      %vm299 = vcmp.eq.f32.partialorder %v245, 0.0
      %v300 = vsel %vm299, 1e-09, %v294
      %v301 = vsel %vm252, %v300, -inf
      %302 = vmax.xlane.f32.xlu0 %v301
      %v303 = vpop.xlane.xlu0 %302
      %v304 = vsub.f32 %v300, %v303
      %v305 = vmul.f32 %v304, 1.442695
      %v306 = vpow.pop %v305
      %v307 = vsel %vm252, %v306, 0.0
      %308 = vadd.xlane.f32.xlu0 %v307
      %v309 = vpop.xlane.xlu0 %308
      %v310 = vpack.c.bf16 %v306, %v306
      %v312 = vsel %vm252, %v310, 0
      %vm314 = vcmask 1043456
      %v316 = vsel %vm314, %v251, 0
      %318 = vmatprep.subr.bf16.mxu0 0
      %319 = vmatpush1.bf16.msra.mxu0 %v316
      %320 = vmatprep.subr.bf16.mxu0 0
      %321 = vmatpush1.bf16.msra.mxu0 0
      %322 = vmatprep.subr.bf16.mxu0 0
      %323 = vmatpush1.bf16.msra.mxu0 0
      %324 = vmatprep.subr.bf16.mxu0 0
      %325 = vmatpush1.bf16.msra.mxu0 0
      %326 = vmatprep.subr.bf16.mxu0 0
      %327 = vmatpush1.bf16.msra.mxu0 0
      %328 = vmatprep.subr.bf16.mxu0 0
      %329 = vmatpush1.bf16.msra.mxu0 0
      %330 = vmatprep.subr.bf16.mxu0 0
      %331 = vmatpush1.bf16.msra.mxu0 0
      %332 = vmatprep.subr.bf16.mxu0 0
      %333 = vmatpush1.bf16.msra.mxu0 0
      %334 = vmatprep.subr.bf16.mxu0 0
      %335 = vmatpush1.bf16.msra.mxu0 0
      %336 = vmatprep.subr.bf16.mxu0 0
      %337 = vmatpush1.bf16.msra.mxu0 0
      %338 = vmatprep.subr.bf16.mxu0 0
      %339 = vmatpush1.bf16.msra.mxu0 0
      %340 = vmatprep.subr.bf16.mxu0 0
      %341 = vmatpush1.bf16.msra.mxu0 0
      %342 = vmatprep.subr.bf16.mxu0 0
      %343 = vmatpush1.bf16.msra.mxu0 0
      %344 = vmatprep.subr.bf16.mxu0 0
      %345 = vmatpush1.bf16.msra.mxu0 0
      %346 = vmatprep.subr.bf16.mxu0 0
      %347 = vmatpush1.bf16.msra.mxu0 0
      %348 = vmatprep.subr.bf16.mxu0 0
      %349 = vmatpush1.bf16.msra.mxu0 0
      %350 = vmatprep.mubr.bf16.mxu0 0
      %351 = vmatmul.mubr.bf16.gmra.mrb[0].mxu0 %v312
      %v352 = vpop.f32.mrb[0].mxu0
      %v353 = vadd.f32 0.0, %v352
      %v354 = vpop.f32.mrb[0].mxu0
      %v355 = vpop.f32.mrb[0].mxu0
      %v356 = vpop.f32.mrb[0].mxu0
      %357 = vdwg.mxu0
      %v358 = vrcp.pop %v309
      %v359 = vmul.f32 %v353, %v358
      %v360 = vpack.c.bf16 %v359, %v359
      %vm361 = vcmask 60416
      %362 = vst.msk [vmem:[%s243] sm:$0xf] %vm361, %v360
      %v363 = vld [vmem:[%s231] sm:$0xf]
      %v364 = vunpack.c.l.bf16 %v363
      %v365 = vmul.f32 %v364, 0.35355338
      %v366 = vpack.c.bf16 %v365, %v365
      %v367 = vld [vmem:[%s235] sm:$0xf]
      %v368 = vld [vmem:[%s239] sm:$0xf]
      %370 = vrot.lane.b32.xlu0 %v366, 120
      %v371 = vpop.permute.xlu0 %370
      %v373 = vunpack.c.l.b16 %v367
      %v374 = vpack.c.b16 %v373, %v373
      %375 = vrot.lane.b32.xlu0 %v374, 120
      %v376 = vpop.permute.xlu0 %375
      %v378 = vsel %vm252, %v371, 0
      %v381 = vsel %vm252, %v376, 0
      %383 = vmatprep.subr.bf16.mxu0 0
      %384 = vmatpush1.bf16.xpose.msra.mxu0 %v381
      %385 = vmatprep.subr.bf16.mxu0 0
      %386 = vmatpush1.bf16.xpose.msra.mxu0 0
      %387 = vmatprep.subr.bf16.mxu0 0
      %388 = vmatpush1.bf16.xpose.msra.mxu0 0
      %389 = vmatprep.subr.bf16.mxu0 0
      %390 = vmatpush1.bf16.xpose.msra.mxu0 0
      %391 = vmatprep.subr.bf16.mxu0 0
      %392 = vmatpush1.bf16.xpose.msra.mxu0 0
      %393 = vmatprep.subr.bf16.mxu0 0
      %394 = vmatpush1.bf16.xpose.msra.mxu0 0
      %395 = vmatprep.subr.bf16.mxu0 0
      %396 = vmatpush1.bf16.xpose.msra.mxu0 0
      %397 = vmatprep.subr.bf16.mxu0 0
      %398 = vmatpush1.bf16.xpose.msra.mxu0 0
      %399 = vmatprep.subr.bf16.mxu0 0
      %400 = vmatpush1.bf16.xpose.msra.mxu0 0
      %401 = vmatprep.subr.bf16.mxu0 0
      %402 = vmatpush1.bf16.xpose.msra.mxu0 0
      %403 = vmatprep.subr.bf16.mxu0 0
      %404 = vmatpush1.bf16.xpose.msra.mxu0 0
      %405 = vmatprep.subr.bf16.mxu0 0
      %406 = vmatpush1.bf16.xpose.msra.mxu0 0
      %407 = vmatprep.subr.bf16.mxu0 0
      %408 = vmatpush1.bf16.xpose.msra.mxu0 0
      %409 = vmatprep.subr.bf16.mxu0 0
      %410 = vmatpush1.bf16.xpose.msra.mxu0 0
      %411 = vmatprep.subr.bf16.mxu0 0
      %412 = vmatpush1.bf16.xpose.msra.mxu0 0
      %413 = vmatprep.subr.bf16.mxu0 0
      %414 = vmatpush1.bf16.xpose.msra.mxu0 0
      %415 = vmatprep.mubr.bf16.mxu0 0
      %416 = vmatmul.mubr.bf16.gmra.mrb[0].mxu0 %v378
      %v417 = vpop.f32.mrb[0].mxu0
      %v418 = vadd.f32 0.0, %v417
      %v419 = vpop.f32.mrb[0].mxu0
      %v420 = vpop.f32.mrb[0].mxu0
      %v421 = vpop.f32.mrb[0].mxu0
      %422 = vdwg.mxu0
      %v423 = vsel %vm299, 1e-09, %v418
      %v424 = vsel %vm252, %v423, -inf
      %425 = vmax.xlane.f32.xlu0 %v424
      %v426 = vpop.xlane.xlu0 %425
      %v427 = vsub.f32 %v423, %v426
      %v428 = vmul.f32 %v427, 1.442695
      %v429 = vpow.pop %v428
      %v430 = vsel %vm252, %v429, 0.0
      %431 = vadd.xlane.f32.xlu0 %v430
      %v432 = vpop.xlane.xlu0 %431
      %v433 = vpack.c.bf16 %v429, %v429
      %v435 = vunpack.c.l.b16 %v368
      %v436 = vpack.c.b16 %v435, %v435
      %437 = vrot.lane.b32.xlu0 %v436, 120
      %v438 = vpop.permute.xlu0 %437
      %v440 = vsel %vm252, %v433, 0
      %v443 = vsel %vm314, %v438, 0
      %445 = vmatprep.subr.bf16.mxu0 0
      %446 = vmatpush1.bf16.msra.mxu0 %v443
      %447 = vmatprep.subr.bf16.mxu0 0
      %448 = vmatpush1.bf16.msra.mxu0 0
      %449 = vmatprep.subr.bf16.mxu0 0
      %450 = vmatpush1.bf16.msra.mxu0 0
      %451 = vmatprep.subr.bf16.mxu0 0
      %452 = vmatpush1.bf16.msra.mxu0 0
      %453 = vmatprep.subr.bf16.mxu0 0
      %454 = vmatpush1.bf16.msra.mxu0 0
      %455 = vmatprep.subr.bf16.mxu0 0
      %456 = vmatpush1.bf16.msra.mxu0 0
      %457 = vmatprep.subr.bf16.mxu0 0
      %458 = vmatpush1.bf16.msra.mxu0 0
      %459 = vmatprep.subr.bf16.mxu0 0
      %460 = vmatpush1.bf16.msra.mxu0 0
      %461 = vmatprep.subr.bf16.mxu0 0
      %462 = vmatpush1.bf16.msra.mxu0 0
      %463 = vmatprep.subr.bf16.mxu0 0
      %464 = vmatpush1.bf16.msra.mxu0 0
      %465 = vmatprep.subr.bf16.mxu0 0
      %466 = vmatpush1.bf16.msra.mxu0 0
      %467 = vmatprep.subr.bf16.mxu0 0
      %468 = vmatpush1.bf16.msra.mxu0 0
      %469 = vmatprep.subr.bf16.mxu0 0
      %470 = vmatpush1.bf16.msra.mxu0 0
      %471 = vmatprep.subr.bf16.mxu0 0
      %472 = vmatpush1.bf16.msra.mxu0 0
      %473 = vmatprep.subr.bf16.mxu0 0
      %474 = vmatpush1.bf16.msra.mxu0 0
      %475 = vmatprep.subr.bf16.mxu0 0
      %476 = vmatpush1.bf16.msra.mxu0 0
      %477 = vmatprep.mubr.bf16.mxu0 0
      %478 = vmatmul.mubr.bf16.gmra.mrb[0].mxu0 %v440
      %v479 = vpop.f32.mrb[0].mxu0
      %v480 = vadd.f32 0.0, %v479
      %v481 = vpop.f32.mrb[0].mxu0
      %v482 = vpop.f32.mrb[0].mxu0
      %v483 = vpop.f32.mrb[0].mxu0
      %484 = vdwg.mxu0
      %v485 = vrcp.pop %v432
      %v486 = vmul.f32 %v480, %v485
      %v487 = vpack.c.bf16 %v486, %v486
      %v489 = vunpack.c.l.b16 %v487
      %v490 = vpack.c.b16 %v489, %v489
      %491 = vrot.lane.b32.xlu0 %v490, 8
      %v492 = vpop.permute.xlu0 %491
      %vm494 = vcmask 126016
      %495 = vst.msk [vmem:[%s243] sm:$0xf] %vm494, %v492
      %v496 = vld [vmem:[%s231] sm:$0xf]
      %v497 = vunpack.c.l.bf16 %v496
      %v498 = vmul.f32 %v497, 0.35355338
      %v499 = vpack.c.bf16 %v498, %v498
      %v500 = vld [vmem:[%s235] sm:$0xf]
      %v501 = vld [vmem:[%s239] sm:$0xf]
      %503 = vrot.lane.b32.xlu0 %v499, 112
      %v504 = vpop.permute.xlu0 %503
      %v506 = vunpack.c.l.b16 %v500
      %v507 = vpack.c.b16 %v506, %v506
      %508 = vrot.lane.b32.xlu0 %v507, 112
      %v509 = vpop.permute.xlu0 %508
      %v511 = vsel %vm252, %v504, 0
      %v514 = vsel %vm252, %v509, 0
      %516 = vmatprep.subr.bf16.mxu0 0
      %517 = vmatpush1.bf16.xpose.msra.mxu0 %v514
      %518 = vmatprep.subr.bf16.mxu0 0
      %519 = vmatpush1.bf16.xpose.msra.mxu0 0
      %520 = vmatprep.subr.bf16.mxu0 0
      %521 = vmatpush1.bf16.xpose.msra.mxu0 0
      %522 = vmatprep.subr.bf16.mxu0 0
      %523 = vmatpush1.bf16.xpose.msra.mxu0 0
      %524 = vmatprep.subr.bf16.mxu0 0
      %525 = vmatpush1.bf16.xpose.msra.mxu0 0
      %526 = vmatprep.subr.bf16.mxu0 0
      %527 = vmatpush1.bf16.xpose.msra.mxu0 0
      %528 = vmatprep.subr.bf16.mxu0 0
      %529 = vmatpush1.bf16.xpose.msra.mxu0 0
      %530 = vmatprep.subr.bf16.mxu0 0
      %531 = vmatpush1.bf16.xpose.msra.mxu0 0
      %532 = vmatprep.subr.bf16.mxu0 0
      %533 = vmatpush1.bf16.xpose.msra.mxu0 0
      %534 = vmatprep.subr.bf16.mxu0 0
      %535 = vmatpush1.bf16.xpose.msra.mxu0 0
      %536 = vmatprep.subr.bf16.mxu0 0
      %537 = vmatpush1.bf16.xpose.msra.mxu0 0
      %538 = vmatprep.subr.bf16.mxu0 0
      %539 = vmatpush1.bf16.xpose.msra.mxu0 0
      %540 = vmatprep.subr.bf16.mxu0 0
      %541 = vmatpush1.bf16.xpose.msra.mxu0 0
      %542 = vmatprep.subr.bf16.mxu0 0
      %543 = vmatpush1.bf16.xpose.msra.mxu0 0
      %544 = vmatprep.subr.bf16.mxu0 0
      %545 = vmatpush1.bf16.xpose.msra.mxu0 0
      %546 = vmatprep.subr.bf16.mxu0 0
      %547 = vmatpush1.bf16.xpose.msra.mxu0 0
      %548 = vmatprep.mubr.bf16.mxu0 0
      %549 = vmatmul.mubr.bf16.gmra.mrb[0].mxu0 %v511
      %v550 = vpop.f32.mrb[0].mxu0
      %v551 = vadd.f32 0.0, %v550
      %v552 = vpop.f32.mrb[0].mxu0
      %v553 = vpop.f32.mrb[0].mxu0
      %v554 = vpop.f32.mrb[0].mxu0
      %555 = vdwg.mxu0
      %v556 = vsel %vm299, 1e-09, %v551
      %v557 = vsel %vm252, %v556, -inf
      %558 = vmax.xlane.f32.xlu0 %v557
      %v559 = vpop.xlane.xlu0 %558
      %v560 = vsub.f32 %v556, %v559
      %v561 = vmul.f32 %v560, 1.442695
      %v562 = vpow.pop %v561
      %v563 = vsel %vm252, %v562, 0.0
      %564 = vadd.xlane.f32.xlu0 %v563
      %v565 = vpop.xlane.xlu0 %564
      %v566 = vpack.c.bf16 %v562, %v562
      %v568 = vunpack.c.l.b16 %v501
      %v569 = vpack.c.b16 %v568, %v568
      %570 = vrot.lane.b32.xlu0 %v569, 112
      %v571 = vpop.permute.xlu0 %570
      %v573 = vsel %vm252, %v566, 0
      %v576 = vsel %vm314, %v571, 0
      %578 = vmatprep.subr.bf16.mxu0 0
      %579 = vmatpush1.bf16.msra.mxu0 %v576
      %580 = vmatprep.subr.bf16.mxu0 0
      %581 = vmatpush1.bf16.msra.mxu0 0
      %582 = vmatprep.subr.bf16.mxu0 0
      %583 = vmatpush1.bf16.msra.mxu0 0
      %584 = vmatprep.subr.bf16.mxu0 0
      %585 = vmatpush1.bf16.msra.mxu0 0
      %586 = vmatprep.subr.bf16.mxu0 0
      %587 = vmatpush1.bf16.msra.mxu0 0
      %588 = vmatprep.subr.bf16.mxu0 0
      %589 = vmatpush1.bf16.msra.mxu0 0
      %590 = vmatprep.subr.bf16.mxu0 0
      %591 = vmatpush1.bf16.msra.mxu0 0
      %592 = vmatprep.subr.bf16.mxu0 0
      %593 = vmatpush1.bf16.msra.mxu0 0
      %594 = vmatprep.subr.bf16.mxu0 0
      %595 = vmatpush1.bf16.msra.mxu0 0
      %596 = vmatprep.subr.bf16.mxu0 0
      %597 = vmatpush1.bf16.msra.mxu0 0
      %598 = vmatprep.subr.bf16.mxu0 0
      %599 = vmatpush1.bf16.msra.mxu0 0
      %600 = vmatprep.subr.bf16.mxu0 0
      %601 = vmatpush1.bf16.msra.mxu0 0
      %602 = vmatprep.subr.bf16.mxu0 0
      %603 = vmatpush1.bf16.msra.mxu0 0
      %604 = vmatprep.subr.bf16.mxu0 0
      %605 = vmatpush1.bf16.msra.mxu0 0
      %606 = vmatprep.subr.bf16.mxu0 0
      %607 = vmatpush1.bf16.msra.mxu0 0
      %608 = vmatprep.subr.bf16.mxu0 0
      %609 = vmatpush1.bf16.msra.mxu0 0
      %610 = vmatprep.mubr.bf16.mxu0 0
      %611 = vmatmul.mubr.bf16.gmra.mrb[0].mxu0 %v573
      %v612 = vpop.f32.mrb[0].mxu0
      %v613 = vadd.f32 0.0, %v612
      %v614 = vpop.f32.mrb[0].mxu0
      %v615 = vpop.f32.mrb[0].mxu0
      %v616 = vpop.f32.mrb[0].mxu0
      %617 = vdwg.mxu0
      %v618 = vrcp.pop %v565
      %v619 = vmul.f32 %v613, %v618
      %v620 = vpack.c.bf16 %v619, %v619
      %v622 = vunpack.c.l.b16 %v620
      %v623 = vpack.c.b16 %v622, %v622
      %624 = vrot.lane.b32.xlu0 %v623, 16
      %v625 = vpop.permute.xlu0 %624
      %vm627 = vcmask 191616
      %628 = vst.msk [vmem:[%s243] sm:$0xf] %vm627, %v625
      %v629 = vld [vmem:[%s231] sm:$0xf]
      %v630 = vunpack.c.l.bf16 %v629
      %v631 = vmul.f32 %v630, 0.35355338
      %v632 = vpack.c.bf16 %v631, %v631
      %v633 = vld [vmem:[%s235] sm:$0xf]
      %v634 = vld [vmem:[%s239] sm:$0xf]
      %636 = vrot.lane.b32.xlu0 %v632, 104
      %v637 = vpop.permute.xlu0 %636
      %v639 = vunpack.c.l.b16 %v633
      %v640 = vpack.c.b16 %v639, %v639
      %641 = vrot.lane.b32.xlu0 %v640, 104
      %v642 = vpop.permute.xlu0 %641
      %v644 = vsel %vm252, %v637, 0
      %v647 = vsel %vm252, %v642, 0
      %649 = vmatprep.subr.bf16.mxu0 0
      %650 = vmatpush1.bf16.xpose.msra.mxu0 %v647
      %651 = vmatprep.subr.bf16.mxu0 0
      %652 = vmatpush1.bf16.xpose.msra.mxu0 0
      %653 = vmatprep.subr.bf16.mxu0 0
      %654 = vmatpush1.bf16.xpose.msra.mxu0 0
      %655 = vmatprep.subr.bf16.mxu0 0
      %656 = vmatpush1.bf16.xpose.msra.mxu0 0
      %657 = vmatprep.subr.bf16.mxu0 0
      %658 = vmatpush1.bf16.xpose.msra.mxu0 0
      %659 = vmatprep.subr.bf16.mxu0 0
      %660 = vmatpush1.bf16.xpose.msra.mxu0 0
      %661 = vmatprep.subr.bf16.mxu0 0
      %662 = vmatpush1.bf16.xpose.msra.mxu0 0
      %663 = vmatprep.subr.bf16.mxu0 0
      %664 = vmatpush1.bf16.xpose.msra.mxu0 0
      %665 = vmatprep.subr.bf16.mxu0 0
      %666 = vmatpush1.bf16.xpose.msra.mxu0 0
      %667 = vmatprep.subr.bf16.mxu0 0
      %668 = vmatpush1.bf16.xpose.msra.mxu0 0
      %669 = vmatprep.subr.bf16.mxu0 0
      %670 = vmatpush1.bf16.xpose.msra.mxu0 0
      %671 = vmatprep.subr.bf16.mxu0 0
      %672 = vmatpush1.bf16.xpose.msra.mxu0 0
      %673 = vmatprep.subr.bf16.mxu0 0
      %674 = vmatpush1.bf16.xpose.msra.mxu0 0
      %675 = vmatprep.subr.bf16.mxu0 0
      %676 = vmatpush1.bf16.xpose.msra.mxu0 0
      %677 = vmatprep.subr.bf16.mxu0 0
      %678 = vmatpush1.bf16.xpose.msra.mxu0 0
      %679 = vmatprep.subr.bf16.mxu0 0
      %680 = vmatpush1.bf16.xpose.msra.mxu0 0
      %681 = vmatprep.mubr.bf16.mxu0 0
      %682 = vmatmul.mubr.bf16.gmra.mrb[0].mxu0 %v644
      %v683 = vpop.f32.mrb[0].mxu0
      %v684 = vadd.f32 0.0, %v683
      %v685 = vpop.f32.mrb[0].mxu0
      %v686 = vpop.f32.mrb[0].mxu0
      %v687 = vpop.f32.mrb[0].mxu0
      %688 = vdwg.mxu0
      %v689 = vsel %vm299, 1e-09, %v684
      %v690 = vsel %vm252, %v689, -inf
      %691 = vmax.xlane.f32.xlu0 %v690
      %v692 = vpop.xlane.xlu0 %691
      %v693 = vsub.f32 %v689, %v692
      %v694 = vmul.f32 %v693, 1.442695
      %v695 = vpow.pop %v694
      %v696 = vsel %vm252, %v695, 0.0
      %697 = vadd.xlane.f32.xlu0 %v696
      %v698 = vpop.xlane.xlu0 %697
      %v699 = vpack.c.bf16 %v695, %v695
      %v701 = vunpack.c.l.b16 %v634
      %v702 = vpack.c.b16 %v701, %v701
      %703 = vrot.lane.b32.xlu0 %v702, 104
      %v704 = vpop.permute.xlu0 %703
      %v706 = vsel %vm252, %v699, 0
      %v709 = vsel %vm314, %v704, 0
      %711 = vmatprep.subr.bf16.mxu0 0
      %712 = vmatpush1.bf16.msra.mxu0 %v709
      %713 = vmatprep.subr.bf16.mxu0 0
      %714 = vmatpush1.bf16.msra.mxu0 0
      %715 = vmatprep.subr.bf16.mxu0 0
      %716 = vmatpush1.bf16.msra.mxu0 0
      %717 = vmatprep.subr.bf16.mxu0 0
      %718 = vmatpush1.bf16.msra.mxu0 0
      %719 = vmatprep.subr.bf16.mxu0 0
      %720 = vmatpush1.bf16.msra.mxu0 0
      %721 = vmatprep.subr.bf16.mxu0 0
      %722 = vmatpush1.bf16.msra.mxu0 0
      %723 = vmatprep.subr.bf16.mxu0 0
      %724 = vmatpush1.bf16.msra.mxu0 0
      %725 = vmatprep.subr.bf16.mxu0 0
      %726 = vmatpush1.bf16.msra.mxu0 0
      %727 = vmatprep.subr.bf16.mxu0 0
      %728 = vmatpush1.bf16.msra.mxu0 0
      %729 = vmatprep.subr.bf16.mxu0 0
      %730 = vmatpush1.bf16.msra.mxu0 0
      %731 = vmatprep.subr.bf16.mxu0 0
      %732 = vmatpush1.bf16.msra.mxu0 0
      %733 = vmatprep.subr.bf16.mxu0 0
      %734 = vmatpush1.bf16.msra.mxu0 0
      %735 = vmatprep.subr.bf16.mxu0 0
      %736 = vmatpush1.bf16.msra.mxu0 0
      %737 = vmatprep.subr.bf16.mxu0 0
      %738 = vmatpush1.bf16.msra.mxu0 0
      %739 = vmatprep.subr.bf16.mxu0 0
      %740 = vmatpush1.bf16.msra.mxu0 0
      %741 = vmatprep.subr.bf16.mxu0 0
      %742 = vmatpush1.bf16.msra.mxu0 0
      %743 = vmatprep.mubr.bf16.mxu0 0
      %744 = vmatmul.mubr.bf16.gmra.mrb[0].mxu0 %v706
      %v745 = vpop.f32.mrb[0].mxu0
      %v746 = vadd.f32 0.0, %v745
      %v747 = vpop.f32.mrb[0].mxu0
      %v748 = vpop.f32.mrb[0].mxu0
      %v749 = vpop.f32.mrb[0].mxu0
      %750 = vdwg.mxu0
      %v751 = vrcp.pop %v698
      %v752 = vmul.f32 %v746, %v751
      %v753 = vpack.c.bf16 %v752, %v752
      %v755 = vunpack.c.l.b16 %v753
      %v756 = vpack.c.b16 %v755, %v755
      %757 = vrot.lane.b32.xlu0 %v756, 24
      %v758 = vpop.permute.xlu0 %757
      %vm760 = vcmask 257216
      %761 = vst.msk [vmem:[%s243] sm:$0xf] %vm760, %v758
      %p762 = scmp.lt.s32.totalorder %s15, 1
      %s763 = scalar_select %p762, %s15, 1
      %s764 = smul.addr %s763, 4
      %s765 = scalar_lea.vmem %s4, %s764
      // Predicated region
      $region37: #{decode_layer.9} parent=35 // pred_check
        %p766 = pneg %p137
      $region38: #{decode_layer.9} parent=35 // pred_check_branch
        %768 = sbr.rel (%p766) target = $region40
      $region39: #{decode_layer.9} parent=35 // pred_region
        _
      $region40: #{decode_layer.9} parent=35 // pred_fallthru
        _
    $region36: #{decode_layer.9} parent=5 // pred_fallthru
      _
    %p769 = scmp.le.s32.totalorder 2, %s10
    // Predicated region
    $region41: #{decode_layer.9} parent=5 // pred_check
      %p770 = pneg %p769
    $region42: #{decode_layer.9} parent=5 // pred_check_branch
      %772 = sbr.rel (%p770) target = $region44
    $region43: #{decode_layer.9} parent=5 // pred_region
      %s773 = ssub.s32 %s10, 2
      // Predicated region
      $region45: #{decode_layer.9} parent=43 // pred_check
        %p774 = pneg %p143
      $region46: #{decode_layer.9} parent=43 // pred_check_branch
        %776 = sbr.rel (%p774) target = $region48
      $region47: #{decode_layer.9} parent=43 // pred_region
        %p777 = scmp.lt.s32.totalorder %s16, 1
        %s778 = scalar_select %p777, %s16, 1
        %s779 = smul.addr %s778, 4
        %s780 = scalar_lea.vmem %s4, %s779
      $region48: #{decode_layer.9} parent=43 // pred_fallthru
        _
    $region44: #{decode_layer.9} parent=5 // pred_fallthru
      _
  $region6: #{decode_layer.9} parent=0 // loop_footer
    %s14 = sadd.s32 1, %s10
  $region7: #{decode_layer.9} parent=0 // loop_footer_branch
    %9 = sbr.rel target = $region3
  $region8: #{decode_layer.9} parent=0 // loop_exit
    _

// kernel: decode_layer.11
$region0: #{decode_layer.11}
  #allocation0 [shape = 'u32[]', space=smem, size = 0x4, offset = 0x4, fixed_abs, tag = 'smem constant byte address 0x4 - core index']
  #allocation1 [shape = 'u32[144,128]{1,0:T(1,128)}', space=vmem, size = 0x12000, scoped, tag = 'internal scratch']
  %s0 = inlined_call_operand.vmem [shape: bf16[16,32], index: 0, kind: input, shape index: {}]
  %s1 = inlined_call_operand.vmem [shape: bf16[32,32], index: 1, kind: input, shape index: {}]
  %s2 = inlined_call_operand.vmem [shape: f32[1,32], index: 2, kind: input, shape index: {}]
  %s3 = inlined_call_operand.vmem [shape: bf16[16,32], index: 3, kind: output, shape index: {}]
  %s4 = sld [smem:[#allocation0]]
  $region45: #{decode_layer.11} parent=0
    _
  %s6 = ssub.s32 1, %s4
  %s7 = scalar_select 0, %s6, %s4
  loop: start=0, step=1, limit=4
  $region2: #{decode_layer.11} parent=0 // loop_pre_header
    _
  $region3: #{decode_layer.11} parent=0 // loop_header
    %s9 = sphi 0, %s13
    %p10 = scmp.ge.s32.totalorder %s9, 4
    %s19 = sphi 0, %s21
    %s22 = sphi 0, %s19
    %s23 = sphi 0, %s22
    %s39 = sphi 0, %s23
    %s43 = sphi 0, %s43
    %s45 = sphi 0, %s43
    %s46 = sphi 0, %s45
    %s60 = sphi 0, %s46
    %s64 = sphi 0, %s64
    %s66 = sphi 0, %s64
    %s67 = sphi 0, %s66
    %s81 = sphi 0, %s67
    %s87 = sphi 0, %s89
    %s90 = sphi 0, %s87
    %s91 = sphi 0, %s90
    %s107 = sphi 0, %s91
  $region4: #{decode_layer.11} parent=0 // loop_header_branch
    %12 = sbr.rel (%p10) target = $region8
  $region5: #{decode_layer.11} parent=0 // loop_body
    %s14 = ssub.s32 %s9, 1
    %s15 = ssub.s32 %s9, 2
    %s16 = sadd.s32 %s9, 1
    %s17 = ssub.s32 %s9, %s16
    %p18 = scmp.eq.s32.totalorder %s17, 0
    %s20 = sadd.s32 %s19, 1
    %s21 = scalar_select %p18, %s19, %s20
    %p24 = pneg %p18
    %p25 = scmp.eq.s32.totalorder %s9, 1
    %p26 = por %p24, %p25
    %p27 = scmp.ne.s32.totalorder %s19, %s22
    %p28 = scmp.eq.s32.totalorder %s9, 0
    %p29 = por %p27, %p28
    %p30 = scmp.ne.s32.totalorder %s19, %s22
    %p31 = scmp.eq.s32.totalorder %s14, 1
    %p32 = por %p30, %p31
    %p33 = scmp.ne.s32.totalorder %s22, %s23
    %p34 = scmp.eq.s32.totalorder %s14, 0
    %p35 = por %p33, %p34
    %p36 = scmp.ne.s32.totalorder %s22, %s23
    %p37 = scmp.eq.s32.totalorder %s15, 1
    %p38 = por %p36, %p37
    %p40 = scmp.ne.s32.totalorder %s23, %s39
    %p41 = scmp.eq.s32.totalorder %s15, 0
    %p42 = por %p40, %p41
    %s44 = sadd.s32 %s43, 1
    %p47 = scmp.eq.s32.totalorder %s9, 1
    %p48 = scmp.ne.s32.totalorder %s43, %s45
    %p49 = scmp.eq.s32.totalorder %s9, 0
    %p50 = por %p48, %p49
    %p51 = scmp.ne.s32.totalorder %s43, %s45
    %p52 = scmp.eq.s32.totalorder %s14, 1
    %p53 = por %p51, %p52
    %p54 = scmp.ne.s32.totalorder %s45, %s46
    %p55 = scmp.eq.s32.totalorder %s14, 0
    %p56 = por %p54, %p55
    %p57 = scmp.ne.s32.totalorder %s45, %s46
    %p58 = scmp.eq.s32.totalorder %s15, 1
    %p59 = por %p57, %p58
    %p61 = scmp.ne.s32.totalorder %s46, %s60
    %p62 = scmp.eq.s32.totalorder %s15, 0
    %p63 = por %p61, %p62
    %s65 = sadd.s32 %s64, 1
    %p68 = scmp.eq.s32.totalorder %s9, 1
    %p69 = scmp.ne.s32.totalorder %s64, %s66
    %p70 = scmp.eq.s32.totalorder %s9, 0
    %p71 = por %p69, %p70
    %p72 = scmp.ne.s32.totalorder %s64, %s66
    %p73 = scmp.eq.s32.totalorder %s14, 1
    %p74 = por %p72, %p73
    %p75 = scmp.ne.s32.totalorder %s66, %s67
    %p76 = scmp.eq.s32.totalorder %s14, 0
    %p77 = por %p75, %p76
    %p78 = scmp.ne.s32.totalorder %s66, %s67
    %p79 = scmp.eq.s32.totalorder %s15, 1
    %p80 = por %p78, %p79
    %p82 = scmp.ne.s32.totalorder %s67, %s81
    %p83 = scmp.eq.s32.totalorder %s15, 0
    %p84 = por %p82, %p83
    %s85 = ssub.s32 %s9, %s16
    %p86 = scmp.eq.s32.totalorder %s85, 0
    %s88 = sadd.s32 %s87, 1
    %s89 = scalar_select %p86, %s87, %s88
    %p92 = pneg %p86
    %p93 = scmp.eq.s32.totalorder %s9, 1
    %p94 = por %p92, %p93
    %p95 = scmp.ne.s32.totalorder %s87, %s90
    %p96 = scmp.eq.s32.totalorder %s9, 0
    %p97 = por %p95, %p96
    %p98 = scmp.ne.s32.totalorder %s87, %s90
    %p99 = scmp.eq.s32.totalorder %s14, 1
    %p100 = por %p98, %p99
    %p101 = scmp.ne.s32.totalorder %s90, %s91
    %p102 = scmp.eq.s32.totalorder %s14, 0
    %p103 = por %p101, %p102
    %p104 = scmp.ne.s32.totalorder %s90, %s91
    %p105 = scmp.eq.s32.totalorder %s15, 1
    %p106 = por %p104, %p105
    %p108 = scmp.ne.s32.totalorder %s91, %s107
    %p109 = scmp.eq.s32.totalorder %s15, 0
    %p110 = por %p108, %p109
    %p111 = scmp.le.s32.totalorder 1, %s9
    %p112 = scmp.lt.s32.totalorder %s9, 3
    %p113 = pnand %p111, %p112
    %p114 = pneg %p113
    // Predicated region
    $region9: #{decode_layer.11} parent=5 // pred_check
      _
    $region10: #{decode_layer.11} parent=5 // pred_check_branch
      %116 = sbr.rel (%p113) target = $region12
    $region11: #{decode_layer.11} parent=5 // pred_region
      %s117 = ssub.s32 %s9, 1
      // Predicated region
      $region13: #{decode_layer.11} parent=11 // pred_check
        %p118 = pneg %p56
      $region14: #{decode_layer.11} parent=11 // pred_check_branch
        %120 = sbr.rel (%p118) target = $region16
      $region15: #{decode_layer.11} parent=11 // pred_region
        _
      $region16: #{decode_layer.11} parent=11 // pred_fallthru
        _
      // Predicated region
      $region17: #{decode_layer.11} parent=11 // pred_check
        %p121 = pneg %p77
      $region18: #{decode_layer.11} parent=11 // pred_check_branch
        %123 = sbr.rel (%p121) target = $region20
      $region19: #{decode_layer.11} parent=11 // pred_region
        _
      $region20: #{decode_layer.11} parent=11 // pred_fallthru
        _
    $region12: #{decode_layer.11} parent=5 // pred_fallthru
      _
    %p124 = scmp.lt.s32.totalorder %s9, 2
    // Predicated region
    $region21: #{decode_layer.11} parent=5 // pred_check
      %p125 = pneg %p124
    $region22: #{decode_layer.11} parent=5 // pred_check_branch
      %127 = sbr.rel (%p125) target = $region24
    $region23: #{decode_layer.11} parent=5 // pred_region
      // Predicated region
      $region25: #{decode_layer.11} parent=23 // pred_check
        %p128 = pneg %p29
      $region26: #{decode_layer.11} parent=23 // pred_check_branch
        %130 = sbr.rel (%p128) target = $region28
      $region27: #{decode_layer.11} parent=23 // pred_region
        %p131 = scmp.lt.s32.totalorder %s9, 1
        %s132 = scalar_select %p131, %s9, 1
        %s133 = smul.addr %s132, 4
        %s134 = scalar_lea.vmem %s0, %s133
      $region28: #{decode_layer.11} parent=23 // pred_fallthru
        _
    $region24: #{decode_layer.11} parent=5 // pred_fallthru
      _
    %p135 = scmp.le.s32.totalorder 1, %s9
    %p136 = scmp.lt.s32.totalorder %s9, 3
    %p137 = pnand %p135, %p136
    %p138 = pneg %p137
    // Predicated region
    $region29: #{decode_layer.11} parent=5 // pred_check
      _
    $region30: #{decode_layer.11} parent=5 // pred_check_branch
      %140 = sbr.rel (%p137) target = $region32
    $region31: #{decode_layer.11} parent=5 // pred_region
      %s141 = ssub.s32 %s9, 1
      %p142 = scmp.lt.s32.totalorder %s14, 1
      %s143 = scalar_select %p142, %s14, 1
      %s144 = smul.addr %s143, 4
      %s145 = scalar_lea.vmem %s0, %s144
      %p146 = pneg %p35
      %p147 = pneg %p32
      %p148 = pneg %p56
      %p149 = pneg %p53
      %p150 = pneg %p77
      %p151 = pneg %p74
      %p152 = pneg %p103
      %p153 = pneg %p100
      %p154 = scmp.lt.s32.totalorder %s14, 1
      %s155 = scalar_select %p154, %s14, 1
      %s156 = smul.addr %s155, 4
      %s157 = scalar_lea.vmem %s3, %s156
      %p158 = scmp.lt.s32.totalorder %s14, 1
      %s159 = scalar_select %p158, %s14, 1
      %s160 = smul.addr %s159, 4
      %s161 = scalar_lea.vmem %s0, %s160
      %p162 = scmp.lt.s32.totalorder %s14, 1
      %s163 = scalar_select %p162, %s14, 1
      %s164 = smul.addr %s163, 4
      %s165 = scalar_lea.vmem %s3, %s164
      %v167 = vld [vmem:[%s161] sm:$0xf]
      %v168 = vld [vmem:[%s1] sm:$0xf]
      %v169 = vld [vmem:[%s1 + $0x4] sm:$0xf]
      %v170 = vld [vmem:[%s1 + $0x8] sm:$0xf]
      %v171 = vld [vmem:[%s1 + $0xc] sm:$0xf]
      %v172 = vld [vmem:[%s2] sm:$0x1]
      %v174 = vlaneseq
      %v175 = vshrl.u32 %v174, 7
      %v176 = vsub.s32 0, %v175
      %v177 = vrot.slane %v172, %v176
      %v183 = vunpack.c.l.b16 %v168
      %v184 = vunpack.c.l.b16 %v169
      %v185 = vunpack.c.l.b16 %v170
      %v186 = vunpack.c.l.b16 %v171
      %v187 = vpack.c.b16 %v184, %v183
      %v188 = vpack.c.b16 %v186, %v185
      %vm191 = vcmask 261120
      %v193 = vsel %vm191, %v167, 0
      %195 = vmatprep.subr.bf16.mxu0 0
      %196 = vmatpush1.bf16.msra.mxu0 %v187
      %197 = vmatprep.subr.bf16.mxu0 0
      %198 = vmatpush1.bf16.msra.mxu0 %v188
      %199 = vmatprep.subr.bf16.mxu0 0
      %200 = vmatpush1.bf16.msra.mxu0 0
      %201 = vmatprep.subr.bf16.mxu0 0
      %202 = vmatpush1.bf16.msra.mxu0 0
      %203 = vmatprep.subr.bf16.mxu0 0
      %204 = vmatpush1.bf16.msra.mxu0 0
      %205 = vmatprep.subr.bf16.mxu0 0
      %206 = vmatpush1.bf16.msra.mxu0 0
      %207 = vmatprep.subr.bf16.mxu0 0
      %208 = vmatpush1.bf16.msra.mxu0 0
      %209 = vmatprep.subr.bf16.mxu0 0
      %210 = vmatpush1.bf16.msra.mxu0 0
      %211 = vmatprep.subr.bf16.mxu0 0
      %212 = vmatpush1.bf16.msra.mxu0 0
      %213 = vmatprep.subr.bf16.mxu0 0
      %214 = vmatpush1.bf16.msra.mxu0 0
      %215 = vmatprep.subr.bf16.mxu0 0
      %216 = vmatpush1.bf16.msra.mxu0 0
      %217 = vmatprep.subr.bf16.mxu0 0
      %218 = vmatpush1.bf16.msra.mxu0 0
      %219 = vmatprep.subr.bf16.mxu0 0
      %220 = vmatpush1.bf16.msra.mxu0 0
      %221 = vmatprep.subr.bf16.mxu0 0
      %222 = vmatpush1.bf16.msra.mxu0 0
      %223 = vmatprep.subr.bf16.mxu0 0
      %224 = vmatpush1.bf16.msra.mxu0 0
      %225 = vmatprep.subr.bf16.mxu0 0
      %226 = vmatpush1.bf16.msra.mxu0 0
      %227 = vmatprep.mubr.bf16.mxu0 0
      %228 = vmatmul.mubr.bf16.gmra.mrb[0].mxu0 %v193
      %v229 = vpop.f32.mrb[0].mxu0
      %v230 = vadd.f32 %v177, %v229
      %v231 = vpop.f32.mrb[0].mxu0
      %v232 = vpop.f32.mrb[0].mxu0
      %v233 = vpop.f32.mrb[0].mxu0
      %234 = vdwg.mxu0
      %v235 = vpack.c.bf16 %v230, %v230
      %vm236 = vcmask 257024
      %237 = vst.msk [vmem:[%s165] sm:$0xf] %vm236, %v235
      %p238 = scmp.lt.s32.totalorder %s14, 1
      %s239 = scalar_select %p238, %s14, 1
      %s240 = smul.addr %s239, 4
      %s241 = scalar_lea.vmem %s3, %s240
      // Predicated region
      $region33: #{decode_layer.11} parent=31 // pred_check
        %p242 = pneg %p100
      $region34: #{decode_layer.11} parent=31 // pred_check_branch
        %244 = sbr.rel (%p242) target = $region36
      $region35: #{decode_layer.11} parent=31 // pred_region
        _
      $region36: #{decode_layer.11} parent=31 // pred_fallthru
        _
    $region32: #{decode_layer.11} parent=5 // pred_fallthru
      _
    %p245 = scmp.le.s32.totalorder 2, %s9
    // Predicated region
    $region37: #{decode_layer.11} parent=5 // pred_check
      %p246 = pneg %p245
    $region38: #{decode_layer.11} parent=5 // pred_check_branch
      %248 = sbr.rel (%p246) target = $region40
    $region39: #{decode_layer.11} parent=5 // pred_region
      %s249 = ssub.s32 %s9, 2
      // Predicated region
      $region41: #{decode_layer.11} parent=39 // pred_check
        %p250 = pneg %p106
      $region42: #{decode_layer.11} parent=39 // pred_check_branch
        %252 = sbr.rel (%p250) target = $region44
      $region43: #{decode_layer.11} parent=39 // pred_region
        %p253 = scmp.lt.s32.totalorder %s15, 1
        %s254 = scalar_select %p253, %s15, 1
        %s255 = smul.addr %s254, 4
        %s256 = scalar_lea.vmem %s3, %s255
      $region44: #{decode_layer.11} parent=39 // pred_fallthru
        _
    $region40: #{decode_layer.11} parent=5 // pred_fallthru
      _
  $region6: #{decode_layer.11} parent=0 // loop_footer
    %s13 = sadd.s32 1, %s9
  $region7: #{decode_layer.11} parent=0 // loop_footer_branch
    %8 = sbr.rel target = $region3
  $region8: #{decode_layer.11} parent=0 // loop_exit
    _

// kernel: decode_layer.13
$region0: #{decode_layer.13}
  #allocation0 [shape = 'u32[]', space=smem, size = 0x4, offset = 0x4, fixed_abs, tag = 'smem constant byte address 0x4 - core index']
  #allocation1 [shape = 'u32[144,128]{1,0:T(1,128)}', space=vmem, size = 0x12000, scoped, tag = 'internal scratch']
  %s0 = inlined_call_operand.vmem [shape: bf16[2,8,32], index: 0, kind: input, shape index: {}]
  %s1 = inlined_call_operand.vmem [shape: bf16[2,8,32], index: 1, kind: input, shape index: {}]
  %s2 = inlined_call_operand.vmem [shape: bf16[2,8,32], index: 2, kind: input, shape index: {}]
  %s3 = inlined_call_operand.vmem [shape: bf16[2,8,32], index: 3, kind: output, shape index: {}]
  %s4 = sld [smem:[#allocation0]]
  $region45: #{decode_layer.13} parent=0
    _
  %s6 = ssub.s32 1, %s4
  %s7 = scalar_select 0, %s6, %s4
  loop: start=0, step=1, limit=4
  $region2: #{decode_layer.13} parent=0 // loop_pre_header
    _
  $region3: #{decode_layer.13} parent=0 // loop_header
    %s9 = sphi 0, %s13
    %p10 = scmp.ge.s32.totalorder %s9, 4
    %s19 = sphi 0, %s21
    %s22 = sphi 0, %s19
    %s23 = sphi 0, %s22
    %s39 = sphi 0, %s23
    %s45 = sphi 0, %s47
    %s48 = sphi 0, %s45
    %s49 = sphi 0, %s48
    %s65 = sphi 0, %s49
    %s71 = sphi 0, %s73
    %s74 = sphi 0, %s71
    %s75 = sphi 0, %s74
    %s91 = sphi 0, %s75
    %s97 = sphi 0, %s99
    %s100 = sphi 0, %s97
    %s101 = sphi 0, %s100
    %s117 = sphi 0, %s101
  $region4: #{decode_layer.13} parent=0 // loop_header_branch
    %12 = sbr.rel (%p10) target = $region8
  $region5: #{decode_layer.13} parent=0 // loop_body
    %s14 = ssub.s32 %s9, 1
    %s15 = ssub.s32 %s9, 2
    %s16 = sadd.s32 %s9, 1
    %s17 = ssub.s32 %s9, %s16
    %p18 = scmp.eq.s32.totalorder %s17, 0
    %s20 = sadd.s32 %s19, 1
    %s21 = scalar_select %p18, %s19, %s20
    %p24 = pneg %p18
    %p25 = scmp.eq.s32.totalorder %s9, 1
    %p26 = por %p24, %p25
    %p27 = scmp.ne.s32.totalorder %s19, %s22
    %p28 = scmp.eq.s32.totalorder %s9, 0
    %p29 = por %p27, %p28
    %p30 = scmp.ne.s32.totalorder %s19, %s22
    %p31 = scmp.eq.s32.totalorder %s14, 1
    %p32 = por %p30, %p31
    %p33 = scmp.ne.s32.totalorder %s22, %s23
    %p34 = scmp.eq.s32.totalorder %s14, 0
    %p35 = por %p33, %p34
    %p36 = scmp.ne.s32.totalorder %s22, %s23
    %p37 = scmp.eq.s32.totalorder %s15, 1
    %p38 = por %p36, %p37
    %p40 = scmp.ne.s32.totalorder %s23, %s39
    %p41 = scmp.eq.s32.totalorder %s15, 0
    %p42 = por %p40, %p41
    %s43 = ssub.s32 %s9, %s16
    %p44 = scmp.eq.s32.totalorder %s43, 0
    %s46 = sadd.s32 %s45, 1
    %s47 = scalar_select %p44, %s45, %s46
    %p50 = pneg %p44
    %p51 = scmp.eq.s32.totalorder %s9, 1
    %p52 = por %p50, %p51
    %p53 = scmp.ne.s32.totalorder %s45, %s48
    %p54 = scmp.eq.s32.totalorder %s9, 0
    %p55 = por %p53, %p54
    %p56 = scmp.ne.s32.totalorder %s45, %s48
    %p57 = scmp.eq.s32.totalorder %s14, 1
    %p58 = por %p56, %p57
    %p59 = scmp.ne.s32.totalorder %s48, %s49
    %p60 = scmp.eq.s32.totalorder %s14, 0
    %p61 = por %p59, %p60
    %p62 = scmp.ne.s32.totalorder %s48, %s49
    %p63 = scmp.eq.s32.totalorder %s15, 1
    %p64 = por %p62, %p63
    %p66 = scmp.ne.s32.totalorder %s49, %s65
    %p67 = scmp.eq.s32.totalorder %s15, 0
    %p68 = por %p66, %p67
    %s69 = ssub.s32 %s9, %s16
    %p70 = scmp.eq.s32.totalorder %s69, 0
    %s72 = sadd.s32 %s71, 1
    %s73 = scalar_select %p70, %s71, %s72
    %p76 = pneg %p70
    %p77 = scmp.eq.s32.totalorder %s9, 1
    %p78 = por %p76, %p77
    %p79 = scmp.ne.s32.totalorder %s71, %s74
    %p80 = scmp.eq.s32.totalorder %s9, 0
    %p81 = por %p79, %p80
    %p82 = scmp.ne.s32.totalorder %s71, %s74
    %p83 = scmp.eq.s32.totalorder %s14, 1
    %p84 = por %p82, %p83
    %p85 = scmp.ne.s32.totalorder %s74, %s75
    %p86 = scmp.eq.s32.totalorder %s14, 0
    %p87 = por %p85, %p86
    %p88 = scmp.ne.s32.totalorder %s74, %s75
    %p89 = scmp.eq.s32.totalorder %s15, 1
    %p90 = por %p88, %p89
    %p92 = scmp.ne.s32.totalorder %s75, %s91
    %p93 = scmp.eq.s32.totalorder %s15, 0
    %p94 = por %p92, %p93
    %s95 = ssub.s32 %s9, %s16
    %p96 = scmp.eq.s32.totalorder %s95, 0
    %s98 = sadd.s32 %s97, 1
    %s99 = scalar_select %p96, %s97, %s98
    %p102 = pneg %p96
    %p103 = scmp.eq.s32.totalorder %s9, 1
    %p104 = por %p102, %p103
    %p105 = scmp.ne.s32.totalorder %s97, %s100
    %p106 = scmp.eq.s32.totalorder %s9, 0
    %p107 = por %p105, %p106
    %p108 = scmp.ne.s32.totalorder %s97, %s100
    %p109 = scmp.eq.s32.totalorder %s14, 1
    %p110 = por %p108, %p109
    %p111 = scmp.ne.s32.totalorder %s100, %s101
    %p112 = scmp.eq.s32.totalorder %s14, 0
    %p113 = por %p111, %p112
    %p114 = scmp.ne.s32.totalorder %s100, %s101
    %p115 = scmp.eq.s32.totalorder %s15, 1
    %p116 = por %p114, %p115
    %p118 = scmp.ne.s32.totalorder %s101, %s117
    %p119 = scmp.eq.s32.totalorder %s15, 0
    %p120 = por %p118, %p119
    %p121 = scmp.le.s32.totalorder 1, %s9
    %p122 = scmp.lt.s32.totalorder %s9, 3
    %p123 = pnand %p121, %p122
    %p124 = pneg %p123
    // Predicated region
    $region9: #{decode_layer.13} parent=5 // pred_check
      _
    $region10: #{decode_layer.13} parent=5 // pred_check_branch
      %126 = sbr.rel (%p123) target = $region12
    $region11: #{decode_layer.13} parent=5 // pred_region
      %s127 = ssub.s32 %s9, 1
    $region12: #{decode_layer.13} parent=5 // pred_fallthru
      _
    %p128 = scmp.lt.s32.totalorder %s9, 2
    // Predicated region
    $region13: #{decode_layer.13} parent=5 // pred_check
      %p129 = pneg %p128
    $region14: #{decode_layer.13} parent=5 // pred_check_branch
      %131 = sbr.rel (%p129) target = $region16
    $region15: #{decode_layer.13} parent=5 // pred_region
      // Predicated region
      $region17: #{decode_layer.13} parent=15 // pred_check
        %p132 = pneg %p29
      $region18: #{decode_layer.13} parent=15 // pred_check_branch
        %134 = sbr.rel (%p132) target = $region20
      $region19: #{decode_layer.13} parent=15 // pred_region
        %p135 = scmp.lt.s32.totalorder %s9, 1
        %s136 = scalar_select %p135, %s9, 1
        %s137 = smul.addr %s136, 4
        %s138 = scalar_lea.vmem %s0, %s137
      $region20: #{decode_layer.13} parent=15 // pred_fallthru
        _
      // Predicated region
      $region21: #{decode_layer.13} parent=15 // pred_check
        %p139 = pneg %p55
      $region22: #{decode_layer.13} parent=15 // pred_check_branch
        %141 = sbr.rel (%p139) target = $region24
      $region23: #{decode_layer.13} parent=15 // pred_region
        %p142 = scmp.lt.s32.totalorder %s9, 1
        %s143 = scalar_select %p142, %s9, 1
        %s144 = smul.addr %s143, 4
        %s145 = scalar_lea.vmem %s1, %s144
      $region24: #{decode_layer.13} parent=15 // pred_fallthru
        _
      // Predicated region
      $region25: #{decode_layer.13} parent=15 // pred_check
        %p146 = pneg %p81
      $region26: #{decode_layer.13} parent=15 // pred_check_branch
        %148 = sbr.rel (%p146) target = $region28
      $region27: #{decode_layer.13} parent=15 // pred_region
        %p149 = scmp.lt.s32.totalorder %s9, 1
        %s150 = scalar_select %p149, %s9, 1
        %s151 = smul.addr %s150, 4
        %s152 = scalar_lea.vmem %s2, %s151
      $region28: #{decode_layer.13} parent=15 // pred_fallthru
        _
    $region16: #{decode_layer.13} parent=5 // pred_fallthru
      _
    %p153 = scmp.le.s32.totalorder 1, %s9
    %p154 = scmp.lt.s32.totalorder %s9, 3
    %p155 = pnand %p153, %p154
    %p156 = pneg %p155
    // Predicated region
    $region29: #{decode_layer.13} parent=5 // pred_check
      _
    $region30: #{decode_layer.13} parent=5 // pred_check_branch
      %158 = sbr.rel (%p155) target = $region32
    $region31: #{decode_layer.13} parent=5 // pred_region
      %s159 = ssub.s32 %s9, 1
      %p160 = scmp.lt.s32.totalorder %s14, 1
      %s161 = scalar_select %p160, %s14, 1
      %s162 = smul.addr %s161, 4
      %s163 = scalar_lea.vmem %s0, %s162
      %p164 = pneg %p35
      %p165 = pneg %p32
      %p166 = scmp.lt.s32.totalorder %s14, 1
      %s167 = scalar_select %p166, %s14, 1
      %s168 = smul.addr %s167, 4
      %s169 = scalar_lea.vmem %s1, %s168
      %p170 = pneg %p61
      %p171 = pneg %p58
      %p172 = scmp.lt.s32.totalorder %s14, 1
      %s173 = scalar_select %p172, %s14, 1
      %s174 = smul.addr %s173, 4
      %s175 = scalar_lea.vmem %s2, %s174
      %p176 = pneg %p87
      %p177 = pneg %p84
      %p178 = pneg %p113
      %p179 = pneg %p110
      %p180 = scmp.lt.s32.totalorder %s14, 1
      %s181 = scalar_select %p180, %s14, 1
      %s182 = smul.addr %s181, 4
      %s183 = scalar_lea.vmem %s3, %s182
      %p184 = scmp.lt.s32.totalorder %s14, 1
      %s185 = scalar_select %p184, %s14, 1
      %s186 = smul.addr %s185, 4
      %s187 = scalar_lea.vmem %s0, %s186
      %p188 = scmp.lt.s32.totalorder %s14, 1
      %s189 = scalar_select %p188, %s14, 1
      %s190 = smul.addr %s189, 4
      %s191 = scalar_lea.vmem %s1, %s190
      %p192 = scmp.lt.s32.totalorder %s14, 1
      %s193 = scalar_select %p192, %s14, 1
      %s194 = smul.addr %s193, 4
      %s195 = scalar_lea.vmem %s2, %s194
      %p196 = scmp.lt.s32.totalorder %s14, 1
      %s197 = scalar_select %p196, %s14, 1
      %s198 = smul.addr %s197, 4
      %s199 = scalar_lea.vmem %s3, %s198
      %v201 = vld [vmem:[%s187] sm:$0xf]
      %v202 = vunpack.c.l.bf16 %v201
      %v203 = vmul.f32 %v202, 0.35355338
      %v204 = vpack.c.bf16 %v203, %v203
      %v205 = vld [vmem:[%s191] sm:$0xf]
      %v206 = vld [vmem:[%s195] sm:$0xf]
      %vm207 = vcmask 64512
      %v209 = vsel %vm207, %v204, 0
      %v212 = vsel %vm207, %v205, 0
      %214 = vmatprep.subr.bf16.mxu0 0
      %215 = vmatpush1.bf16.xpose.msra.mxu0 %v212
      %216 = vmatprep.subr.bf16.mxu0 0
      %217 = vmatpush1.bf16.xpose.msra.mxu0 0
      %218 = vmatprep.subr.bf16.mxu0 0
      %219 = vmatpush1.bf16.xpose.msra.mxu0 0
      %220 = vmatprep.subr.bf16.mxu0 0
      %221 = vmatpush1.bf16.xpose.msra.mxu0 0
      %222 = vmatprep.subr.bf16.mxu0 0
      %223 = vmatpush1.bf16.xpose.msra.mxu0 0
      %224 = vmatprep.subr.bf16.mxu0 0
      %225 = vmatpush1.bf16.xpose.msra.mxu0 0
      %226 = vmatprep.subr.bf16.mxu0 0
      %227 = vmatpush1.bf16.xpose.msra.mxu0 0
      %228 = vmatprep.subr.bf16.mxu0 0
      %229 = vmatpush1.bf16.xpose.msra.mxu0 0
      %230 = vmatprep.subr.bf16.mxu0 0
      %231 = vmatpush1.bf16.xpose.msra.mxu0 0
      %232 = vmatprep.subr.bf16.mxu0 0
      %233 = vmatpush1.bf16.xpose.msra.mxu0 0
      %234 = vmatprep.subr.bf16.mxu0 0
      %235 = vmatpush1.bf16.xpose.msra.mxu0 0
      %236 = vmatprep.subr.bf16.mxu0 0
      %237 = vmatpush1.bf16.xpose.msra.mxu0 0
      %238 = vmatprep.subr.bf16.mxu0 0
      %239 = vmatpush1.bf16.xpose.msra.mxu0 0
      %240 = vmatprep.subr.bf16.mxu0 0
      %241 = vmatpush1.bf16.xpose.msra.mxu0 0
      %242 = vmatprep.subr.bf16.mxu0 0
      %243 = vmatpush1.bf16.xpose.msra.mxu0 0
      %244 = vmatprep.subr.bf16.mxu0 0
      %245 = vmatpush1.bf16.xpose.msra.mxu0 0
      %246 = vmatprep.mubr.bf16.mxu0 0
      %247 = vmatmul.mubr.bf16.gmra.mrb[0].mxu0 %v209
      %v248 = vpop.f32.mrb[0].mxu0
      %v249 = vadd.f32 0.0, %v248
      %v250 = vpop.f32.mrb[0].mxu0
      %v251 = vpop.f32.mrb[0].mxu0
      %v252 = vpop.f32.mrb[0].mxu0
      %253 = vdwg.mxu0
      %v254 = vsel %vm207, %v249, -inf
      %255 = vmax.xlane.f32.xlu0 %v254
      %v256 = vpop.xlane.xlu0 %255
      %v257 = vsub.f32 %v249, %v256
      %v258 = vmul.f32 %v257, 1.442695
      %v259 = vpow.pop %v258
      %v260 = vsel %vm207, %v259, 0.0
      %261 = vadd.xlane.f32.xlu0 %v260
      %v262 = vpop.xlane.xlu0 %261
      %v263 = vpack.c.bf16 %v259, %v259
      %v265 = vsel %vm207, %v263, 0
      %vm267 = vcmask 1043456
      %v269 = vsel %vm267, %v206, 0
      %271 = vmatprep.subr.bf16.mxu0 0
      %272 = vmatpush1.bf16.msra.mxu0 %v269
      %273 = vmatprep.subr.bf16.mxu0 0
      %274 = vmatpush1.bf16.msra.mxu0 0
      %275 = vmatprep.subr.bf16.mxu0 0
      %276 = vmatpush1.bf16.msra.mxu0 0
      %277 = vmatprep.subr.bf16.mxu0 0
      %278 = vmatpush1.bf16.msra.mxu0 0
      %279 = vmatprep.subr.bf16.mxu0 0
      %280 = vmatpush1.bf16.msra.mxu0 0
      %281 = vmatprep.subr.bf16.mxu0 0
      %282 = vmatpush1.bf16.msra.mxu0 0
      %283 = vmatprep.subr.bf16.mxu0 0
      %284 = vmatpush1.bf16.msra.mxu0 0
      %285 = vmatprep.subr.bf16.mxu0 0
      %286 = vmatpush1.bf16.msra.mxu0 0
      %287 = vmatprep.subr.bf16.mxu0 0
      %288 = vmatpush1.bf16.msra.mxu0 0
      %289 = vmatprep.subr.bf16.mxu0 0
      %290 = vmatpush1.bf16.msra.mxu0 0
      %291 = vmatprep.subr.bf16.mxu0 0
      %292 = vmatpush1.bf16.msra.mxu0 0
      %293 = vmatprep.subr.bf16.mxu0 0
      %294 = vmatpush1.bf16.msra.mxu0 0
      %295 = vmatprep.subr.bf16.mxu0 0
      %296 = vmatpush1.bf16.msra.mxu0 0
      %297 = vmatprep.subr.bf16.mxu0 0
      %298 = vmatpush1.bf16.msra.mxu0 0
      %299 = vmatprep.subr.bf16.mxu0 0
      %300 = vmatpush1.bf16.msra.mxu0 0
      %301 = vmatprep.subr.bf16.mxu0 0
      %302 = vmatpush1.bf16.msra.mxu0 0
      %303 = vmatprep.mubr.bf16.mxu0 0
      %304 = vmatmul.mubr.bf16.gmra.mrb[0].mxu0 %v265
      %v305 = vpop.f32.mrb[0].mxu0
      %v306 = vadd.f32 0.0, %v305
      %v307 = vpop.f32.mrb[0].mxu0
      %v308 = vpop.f32.mrb[0].mxu0
      %v309 = vpop.f32.mrb[0].mxu0
      %310 = vdwg.mxu0
      %v311 = vrcp.pop %v262
      %v312 = vmul.f32 %v306, %v311
      %v313 = vpack.c.bf16 %v312, %v312
      %vm314 = vcmask 60416
      %315 = vst.msk [vmem:[%s199] sm:$0xf] %vm314, %v313
      %v316 = vld [vmem:[%s187] sm:$0xf]
      %v317 = vunpack.c.l.bf16 %v316
      %v318 = vmul.f32 %v317, 0.35355338
      %v319 = vpack.c.bf16 %v318, %v318
      %v320 = vld [vmem:[%s191] sm:$0xf]
      %v321 = vld [vmem:[%s195] sm:$0xf]
      %323 = vrot.lane.b32.xlu0 %v319, 120
      %v324 = vpop.permute.xlu0 %323
      %v326 = vunpack.c.l.b16 %v320
      %v327 = vpack.c.b16 %v326, %v326
      %328 = vrot.lane.b32.xlu0 %v327, 120
      %v329 = vpop.permute.xlu0 %328
      %v331 = vsel %vm207, %v324, 0
      %v334 = vsel %vm207, %v329, 0
      %336 = vmatprep.subr.bf16.mxu0 0
      %337 = vmatpush1.bf16.xpose.msra.mxu0 %v334
      %338 = vmatprep.subr.bf16.mxu0 0
      %339 = vmatpush1.bf16.xpose.msra.mxu0 0
      %340 = vmatprep.subr.bf16.mxu0 0
      %341 = vmatpush1.bf16.xpose.msra.mxu0 0
      %342 = vmatprep.subr.bf16.mxu0 0
      %343 = vmatpush1.bf16.xpose.msra.mxu0 0
      %344 = vmatprep.subr.bf16.mxu0 0
      %345 = vmatpush1.bf16.xpose.msra.mxu0 0
      %346 = vmatprep.subr.bf16.mxu0 0
      %347 = vmatpush1.bf16.xpose.msra.mxu0 0
      %348 = vmatprep.subr.bf16.mxu0 0
      %349 = vmatpush1.bf16.xpose.msra.mxu0 0
      %350 = vmatprep.subr.bf16.mxu0 0
      %351 = vmatpush1.bf16.xpose.msra.mxu0 0
      %352 = vmatprep.subr.bf16.mxu0 0
      %353 = vmatpush1.bf16.xpose.msra.mxu0 0
      %354 = vmatprep.subr.bf16.mxu0 0
      %355 = vmatpush1.bf16.xpose.msra.mxu0 0
      %356 = vmatprep.subr.bf16.mxu0 0
      %357 = vmatpush1.bf16.xpose.msra.mxu0 0
      %358 = vmatprep.subr.bf16.mxu0 0
      %359 = vmatpush1.bf16.xpose.msra.mxu0 0
      %360 = vmatprep.subr.bf16.mxu0 0
      %361 = vmatpush1.bf16.xpose.msra.mxu0 0
      %362 = vmatprep.subr.bf16.mxu0 0
      %363 = vmatpush1.bf16.xpose.msra.mxu0 0
      %364 = vmatprep.subr.bf16.mxu0 0
      %365 = vmatpush1.bf16.xpose.msra.mxu0 0
      %366 = vmatprep.subr.bf16.mxu0 0
      %367 = vmatpush1.bf16.xpose.msra.mxu0 0
      %368 = vmatprep.mubr.bf16.mxu0 0
      %369 = vmatmul.mubr.bf16.gmra.mrb[0].mxu0 %v331
      %v370 = vpop.f32.mrb[0].mxu0
      %v371 = vadd.f32 0.0, %v370
      %v372 = vpop.f32.mrb[0].mxu0
      %v373 = vpop.f32.mrb[0].mxu0
      %v374 = vpop.f32.mrb[0].mxu0
      %375 = vdwg.mxu0
      %v376 = vsel %vm207, %v371, -inf
      %377 = vmax.xlane.f32.xlu0 %v376
      %v378 = vpop.xlane.xlu0 %377
      %v379 = vsub.f32 %v371, %v378
      %v380 = vmul.f32 %v379, 1.442695
      %v381 = vpow.pop %v380
      %v382 = vsel %vm207, %v381, 0.0
      %383 = vadd.xlane.f32.xlu0 %v382
      %v384 = vpop.xlane.xlu0 %383
      %v385 = vpack.c.bf16 %v381, %v381
      %v387 = vunpack.c.l.b16 %v321
      %v388 = vpack.c.b16 %v387, %v387
      %389 = vrot.lane.b32.xlu0 %v388, 120
      %v390 = vpop.permute.xlu0 %389
      %v392 = vsel %vm207, %v385, 0
      %v395 = vsel %vm267, %v390, 0
      %397 = vmatprep.subr.bf16.mxu0 0
      %398 = vmatpush1.bf16.msra.mxu0 %v395
      %399 = vmatprep.subr.bf16.mxu0 0
      %400 = vmatpush1.bf16.msra.mxu0 0
      %401 = vmatprep.subr.bf16.mxu0 0
      %402 = vmatpush1.bf16.msra.mxu0 0
      %403 = vmatprep.subr.bf16.mxu0 0
      %404 = vmatpush1.bf16.msra.mxu0 0
      %405 = vmatprep.subr.bf16.mxu0 0
      %406 = vmatpush1.bf16.msra.mxu0 0
      %407 = vmatprep.subr.bf16.mxu0 0
      %408 = vmatpush1.bf16.msra.mxu0 0
      %409 = vmatprep.subr.bf16.mxu0 0
      %410 = vmatpush1.bf16.msra.mxu0 0
      %411 = vmatprep.subr.bf16.mxu0 0
      %412 = vmatpush1.bf16.msra.mxu0 0
      %413 = vmatprep.subr.bf16.mxu0 0
      %414 = vmatpush1.bf16.msra.mxu0 0
      %415 = vmatprep.subr.bf16.mxu0 0
      %416 = vmatpush1.bf16.msra.mxu0 0
      %417 = vmatprep.subr.bf16.mxu0 0
      %418 = vmatpush1.bf16.msra.mxu0 0
      %419 = vmatprep.subr.bf16.mxu0 0
      %420 = vmatpush1.bf16.msra.mxu0 0
      %421 = vmatprep.subr.bf16.mxu0 0
      %422 = vmatpush1.bf16.msra.mxu0 0
      %423 = vmatprep.subr.bf16.mxu0 0
      %424 = vmatpush1.bf16.msra.mxu0 0
      %425 = vmatprep.subr.bf16.mxu0 0
      %426 = vmatpush1.bf16.msra.mxu0 0
      %427 = vmatprep.subr.bf16.mxu0 0
      %428 = vmatpush1.bf16.msra.mxu0 0
      %429 = vmatprep.mubr.bf16.mxu0 0
      %430 = vmatmul.mubr.bf16.gmra.mrb[0].mxu0 %v392
      %v431 = vpop.f32.mrb[0].mxu0
      %v432 = vadd.f32 0.0, %v431
      %v433 = vpop.f32.mrb[0].mxu0
      %v434 = vpop.f32.mrb[0].mxu0
      %v435 = vpop.f32.mrb[0].mxu0
      %436 = vdwg.mxu0
      %v437 = vrcp.pop %v384
      %v438 = vmul.f32 %v432, %v437
      %v439 = vpack.c.bf16 %v438, %v438
      %v441 = vunpack.c.l.b16 %v439
      %v442 = vpack.c.b16 %v441, %v441
      %443 = vrot.lane.b32.xlu0 %v442, 8
      %v444 = vpop.permute.xlu0 %443
      %vm446 = vcmask 126016
      %447 = vst.msk [vmem:[%s199] sm:$0xf] %vm446, %v444
      %v448 = vld [vmem:[%s187] sm:$0xf]
      %v449 = vunpack.c.l.bf16 %v448
      %v450 = vmul.f32 %v449, 0.35355338
      %v451 = vpack.c.bf16 %v450, %v450
      %v452 = vld [vmem:[%s191] sm:$0xf]
      %v453 = vld [vmem:[%s195] sm:$0xf]
      %455 = vrot.lane.b32.xlu0 %v451, 112
      %v456 = vpop.permute.xlu0 %455
      %v458 = vunpack.c.l.b16 %v452
      %v459 = vpack.c.b16 %v458, %v458
      %460 = vrot.lane.b32.xlu0 %v459, 112
      %v461 = vpop.permute.xlu0 %460
      %v463 = vsel %vm207, %v456, 0
      %v466 = vsel %vm207, %v461, 0
      %468 = vmatprep.subr.bf16.mxu0 0
      %469 = vmatpush1.bf16.xpose.msra.mxu0 %v466
      %470 = vmatprep.subr.bf16.mxu0 0
      %471 = vmatpush1.bf16.xpose.msra.mxu0 0
      %472 = vmatprep.subr.bf16.mxu0 0
      %473 = vmatpush1.bf16.xpose.msra.mxu0 0
      %474 = vmatprep.subr.bf16.mxu0 0
      %475 = vmatpush1.bf16.xpose.msra.mxu0 0
      %476 = vmatprep.subr.bf16.mxu0 0
      %477 = vmatpush1.bf16.xpose.msra.mxu0 0
      %478 = vmatprep.subr.bf16.mxu0 0
      %479 = vmatpush1.bf16.xpose.msra.mxu0 0
      %480 = vmatprep.subr.bf16.mxu0 0
      %481 = vmatpush1.bf16.xpose.msra.mxu0 0
      %482 = vmatprep.subr.bf16.mxu0 0
      %483 = vmatpush1.bf16.xpose.msra.mxu0 0
      %484 = vmatprep.subr.bf16.mxu0 0
      %485 = vmatpush1.bf16.xpose.msra.mxu0 0
      %486 = vmatprep.subr.bf16.mxu0 0
      %487 = vmatpush1.bf16.xpose.msra.mxu0 0
      %488 = vmatprep.subr.bf16.mxu0 0
      %489 = vmatpush1.bf16.xpose.msra.mxu0 0
      %490 = vmatprep.subr.bf16.mxu0 0
      %491 = vmatpush1.bf16.xpose.msra.mxu0 0
      %492 = vmatprep.subr.bf16.mxu0 0
      %493 = vmatpush1.bf16.xpose.msra.mxu0 0
      %494 = vmatprep.subr.bf16.mxu0 0
      %495 = vmatpush1.bf16.xpose.msra.mxu0 0
      %496 = vmatprep.subr.bf16.mxu0 0
      %497 = vmatpush1.bf16.xpose.msra.mxu0 0
      %498 = vmatprep.subr.bf16.mxu0 0
      %499 = vmatpush1.bf16.xpose.msra.mxu0 0
      %500 = vmatprep.mubr.bf16.mxu0 0
      %501 = vmatmul.mubr.bf16.gmra.mrb[0].mxu0 %v463
      %v502 = vpop.f32.mrb[0].mxu0
      %v503 = vadd.f32 0.0, %v502
      %v504 = vpop.f32.mrb[0].mxu0
      %v505 = vpop.f32.mrb[0].mxu0
      %v506 = vpop.f32.mrb[0].mxu0
      %507 = vdwg.mxu0
      %v508 = vsel %vm207, %v503, -inf
      %509 = vmax.xlane.f32.xlu0 %v508
      %v510 = vpop.xlane.xlu0 %509
      %v511 = vsub.f32 %v503, %v510
      %v512 = vmul.f32 %v511, 1.442695
      %v513 = vpow.pop %v512
      %v514 = vsel %vm207, %v513, 0.0
      %515 = vadd.xlane.f32.xlu0 %v514
      %v516 = vpop.xlane.xlu0 %515
      %v517 = vpack.c.bf16 %v513, %v513
      %v519 = vunpack.c.l.b16 %v453
      %v520 = vpack.c.b16 %v519, %v519
      %521 = vrot.lane.b32.xlu0 %v520, 112
      %v522 = vpop.permute.xlu0 %521
      %v524 = vsel %vm207, %v517, 0
      %v527 = vsel %vm267, %v522, 0
      %529 = vmatprep.subr.bf16.mxu0 0
      %530 = vmatpush1.bf16.msra.mxu0 %v527
      %531 = vmatprep.subr.bf16.mxu0 0
      %532 = vmatpush1.bf16.msra.mxu0 0
      %533 = vmatprep.subr.bf16.mxu0 0
      %534 = vmatpush1.bf16.msra.mxu0 0
      %535 = vmatprep.subr.bf16.mxu0 0
      %536 = vmatpush1.bf16.msra.mxu0 0
      %537 = vmatprep.subr.bf16.mxu0 0
      %538 = vmatpush1.bf16.msra.mxu0 0
      %539 = vmatprep.subr.bf16.mxu0 0
      %540 = vmatpush1.bf16.msra.mxu0 0
      %541 = vmatprep.subr.bf16.mxu0 0
      %542 = vmatpush1.bf16.msra.mxu0 0
      %543 = vmatprep.subr.bf16.mxu0 0
      %544 = vmatpush1.bf16.msra.mxu0 0
      %545 = vmatprep.subr.bf16.mxu0 0
      %546 = vmatpush1.bf16.msra.mxu0 0
      %547 = vmatprep.subr.bf16.mxu0 0
      %548 = vmatpush1.bf16.msra.mxu0 0
      %549 = vmatprep.subr.bf16.mxu0 0
      %550 = vmatpush1.bf16.msra.mxu0 0
      %551 = vmatprep.subr.bf16.mxu0 0
      %552 = vmatpush1.bf16.msra.mxu0 0
      %553 = vmatprep.subr.bf16.mxu0 0
      %554 = vmatpush1.bf16.msra.mxu0 0
      %555 = vmatprep.subr.bf16.mxu0 0
      %556 = vmatpush1.bf16.msra.mxu0 0
      %557 = vmatprep.subr.bf16.mxu0 0
      %558 = vmatpush1.bf16.msra.mxu0 0
      %559 = vmatprep.subr.bf16.mxu0 0
      %560 = vmatpush1.bf16.msra.mxu0 0
      %561 = vmatprep.mubr.bf16.mxu0 0
      %562 = vmatmul.mubr.bf16.gmra.mrb[0].mxu0 %v524
      %v563 = vpop.f32.mrb[0].mxu0
      %v564 = vadd.f32 0.0, %v563
      %v565 = vpop.f32.mrb[0].mxu0
      %v566 = vpop.f32.mrb[0].mxu0
      %v567 = vpop.f32.mrb[0].mxu0
      %568 = vdwg.mxu0
      %v569 = vrcp.pop %v516
      %v570 = vmul.f32 %v564, %v569
      %v571 = vpack.c.bf16 %v570, %v570
      %v573 = vunpack.c.l.b16 %v571
      %v574 = vpack.c.b16 %v573, %v573
      %575 = vrot.lane.b32.xlu0 %v574, 16
      %v576 = vpop.permute.xlu0 %575
      %vm578 = vcmask 191616
      %579 = vst.msk [vmem:[%s199] sm:$0xf] %vm578, %v576
      %v580 = vld [vmem:[%s187] sm:$0xf]
      %v581 = vunpack.c.l.bf16 %v580
      %v582 = vmul.f32 %v581, 0.35355338
      %v583 = vpack.c.bf16 %v582, %v582
      %v584 = vld [vmem:[%s191] sm:$0xf]
      %v585 = vld [vmem:[%s195] sm:$0xf]
      %587 = vrot.lane.b32.xlu0 %v583, 104
      %v588 = vpop.permute.xlu0 %587
      %v590 = vunpack.c.l.b16 %v584
      %v591 = vpack.c.b16 %v590, %v590
      %592 = vrot.lane.b32.xlu0 %v591, 104
      %v593 = vpop.permute.xlu0 %592
      %v595 = vsel %vm207, %v588, 0
      %v598 = vsel %vm207, %v593, 0
      %600 = vmatprep.subr.bf16.mxu0 0
      %601 = vmatpush1.bf16.xpose.msra.mxu0 %v598
      %602 = vmatprep.subr.bf16.mxu0 0
      %603 = vmatpush1.bf16.xpose.msra.mxu0 0
      %604 = vmatprep.subr.bf16.mxu0 0
      %605 = vmatpush1.bf16.xpose.msra.mxu0 0
      %606 = vmatprep.subr.bf16.mxu0 0
      %607 = vmatpush1.bf16.xpose.msra.mxu0 0
      %608 = vmatprep.subr.bf16.mxu0 0
      %609 = vmatpush1.bf16.xpose.msra.mxu0 0
      %610 = vmatprep.subr.bf16.mxu0 0
      %611 = vmatpush1.bf16.xpose.msra.mxu0 0
      %612 = vmatprep.subr.bf16.mxu0 0
      %613 = vmatpush1.bf16.xpose.msra.mxu0 0
      %614 = vmatprep.subr.bf16.mxu0 0
      %615 = vmatpush1.bf16.xpose.msra.mxu0 0
      %616 = vmatprep.subr.bf16.mxu0 0
      %617 = vmatpush1.bf16.xpose.msra.mxu0 0
      %618 = vmatprep.subr.bf16.mxu0 0
      %619 = vmatpush1.bf16.xpose.msra.mxu0 0
      %620 = vmatprep.subr.bf16.mxu0 0
      %621 = vmatpush1.bf16.xpose.msra.mxu0 0
      %622 = vmatprep.subr.bf16.mxu0 0
      %623 = vmatpush1.bf16.xpose.msra.mxu0 0
      %624 = vmatprep.subr.bf16.mxu0 0
      %625 = vmatpush1.bf16.xpose.msra.mxu0 0
      %626 = vmatprep.subr.bf16.mxu0 0
      %627 = vmatpush1.bf16.xpose.msra.mxu0 0
      %628 = vmatprep.subr.bf16.mxu0 0
      %629 = vmatpush1.bf16.xpose.msra.mxu0 0
      %630 = vmatprep.subr.bf16.mxu0 0
      %631 = vmatpush1.bf16.xpose.msra.mxu0 0
      %632 = vmatprep.mubr.bf16.mxu0 0
      %633 = vmatmul.mubr.bf16.gmra.mrb[0].mxu0 %v595
      %v634 = vpop.f32.mrb[0].mxu0
      %v635 = vadd.f32 0.0, %v634
      %v636 = vpop.f32.mrb[0].mxu0
      %v637 = vpop.f32.mrb[0].mxu0
      %v638 = vpop.f32.mrb[0].mxu0
      %639 = vdwg.mxu0
      %v640 = vsel %vm207, %v635, -inf
      %641 = vmax.xlane.f32.xlu0 %v640
      %v642 = vpop.xlane.xlu0 %641
      %v643 = vsub.f32 %v635, %v642
      %v644 = vmul.f32 %v643, 1.442695
      %v645 = vpow.pop %v644
      %v646 = vsel %vm207, %v645, 0.0
      %647 = vadd.xlane.f32.xlu0 %v646
      %v648 = vpop.xlane.xlu0 %647
      %v649 = vpack.c.bf16 %v645, %v645
      %v651 = vunpack.c.l.b16 %v585
      %v652 = vpack.c.b16 %v651, %v651
      %653 = vrot.lane.b32.xlu0 %v652, 104
      %v654 = vpop.permute.xlu0 %653
      %v656 = vsel %vm207, %v649, 0
      %v659 = vsel %vm267, %v654, 0
      %661 = vmatprep.subr.bf16.mxu0 0
      %662 = vmatpush1.bf16.msra.mxu0 %v659
      %663 = vmatprep.subr.bf16.mxu0 0
      %664 = vmatpush1.bf16.msra.mxu0 0
      %665 = vmatprep.subr.bf16.mxu0 0
      %666 = vmatpush1.bf16.msra.mxu0 0
      %667 = vmatprep.subr.bf16.mxu0 0
      %668 = vmatpush1.bf16.msra.mxu0 0
      %669 = vmatprep.subr.bf16.mxu0 0
      %670 = vmatpush1.bf16.msra.mxu0 0
      %671 = vmatprep.subr.bf16.mxu0 0
      %672 = vmatpush1.bf16.msra.mxu0 0
      %673 = vmatprep.subr.bf16.mxu0 0
      %674 = vmatpush1.bf16.msra.mxu0 0
      %675 = vmatprep.subr.bf16.mxu0 0
      %676 = vmatpush1.bf16.msra.mxu0 0
      %677 = vmatprep.subr.bf16.mxu0 0
      %678 = vmatpush1.bf16.msra.mxu0 0
      %679 = vmatprep.subr.bf16.mxu0 0
      %680 = vmatpush1.bf16.msra.mxu0 0
      %681 = vmatprep.subr.bf16.mxu0 0
      %682 = vmatpush1.bf16.msra.mxu0 0
      %683 = vmatprep.subr.bf16.mxu0 0
      %684 = vmatpush1.bf16.msra.mxu0 0
      %685 = vmatprep.subr.bf16.mxu0 0
      %686 = vmatpush1.bf16.msra.mxu0 0
      %687 = vmatprep.subr.bf16.mxu0 0
      %688 = vmatpush1.bf16.msra.mxu0 0
      %689 = vmatprep.subr.bf16.mxu0 0
      %690 = vmatpush1.bf16.msra.mxu0 0
      %691 = vmatprep.subr.bf16.mxu0 0
      %692 = vmatpush1.bf16.msra.mxu0 0
      %693 = vmatprep.mubr.bf16.mxu0 0
      %694 = vmatmul.mubr.bf16.gmra.mrb[0].mxu0 %v656
      %v695 = vpop.f32.mrb[0].mxu0
      %v696 = vadd.f32 0.0, %v695
      %v697 = vpop.f32.mrb[0].mxu0
      %v698 = vpop.f32.mrb[0].mxu0
      %v699 = vpop.f32.mrb[0].mxu0
      %700 = vdwg.mxu0
      %v701 = vrcp.pop %v648
      %v702 = vmul.f32 %v696, %v701
      %v703 = vpack.c.bf16 %v702, %v702
      %v705 = vunpack.c.l.b16 %v703
      %v706 = vpack.c.b16 %v705, %v705
      %707 = vrot.lane.b32.xlu0 %v706, 24
      %v708 = vpop.permute.xlu0 %707
      %vm710 = vcmask 257216
      %711 = vst.msk [vmem:[%s199] sm:$0xf] %vm710, %v708
      %p712 = scmp.lt.s32.totalorder %s14, 1
      %s713 = scalar_select %p712, %s14, 1
      %s714 = smul.addr %s713, 4
      %s715 = scalar_lea.vmem %s3, %s714
      // Predicated region
      $region33: #{decode_layer.13} parent=31 // pred_check
        %p716 = pneg %p110
      $region34: #{decode_layer.13} parent=31 // pred_check_branch
        %718 = sbr.rel (%p716) target = $region36
      $region35: #{decode_layer.13} parent=31 // pred_region
        _
      $region36: #{decode_layer.13} parent=31 // pred_fallthru
        _
    $region32: #{decode_layer.13} parent=5 // pred_fallthru
      _
    %p719 = scmp.le.s32.totalorder 2, %s9
    // Predicated region
    $region37: #{decode_layer.13} parent=5 // pred_check
      %p720 = pneg %p719
    $region38: #{decode_layer.13} parent=5 // pred_check_branch
      %722 = sbr.rel (%p720) target = $region40
    $region39: #{decode_layer.13} parent=5 // pred_region
      %s723 = ssub.s32 %s9, 2
      // Predicated region
      $region41: #{decode_layer.13} parent=39 // pred_check
        %p724 = pneg %p116
      $region42: #{decode_layer.13} parent=39 // pred_check_branch
        %726 = sbr.rel (%p724) target = $region44
      $region43: #{decode_layer.13} parent=39 // pred_region
        %p727 = scmp.lt.s32.totalorder %s15, 1
        %s728 = scalar_select %p727, %s15, 1
        %s729 = smul.addr %s728, 4
        %s730 = scalar_lea.vmem %s3, %s729
      $region44: #{decode_layer.13} parent=39 // pred_fallthru
        _
    $region40: #{decode_layer.13} parent=5 // pred_fallthru
      _
  $region6: #{decode_layer.13} parent=0 // loop_footer
    %s13 = sadd.s32 1, %s9
  $region7: #{decode_layer.13} parent=0 // loop_footer_branch
    %8 = sbr.rel target = $region3
  $region8: #{decode_layer.13} parent=0 // loop_exit
    _

// kernel: decode_layer.15
$region0: #{decode_layer.15}
  #allocation0 [shape = 'u32[]', space=smem, size = 0x4, offset = 0x4, fixed_abs, tag = 'smem constant byte address 0x4 - core index']
  #allocation1 [shape = 'u32[144,128]{1,0:T(1,128)}', space=vmem, size = 0x12000, scoped, tag = 'internal scratch']
  #allocation2 [shape = 'f32[8,32]{1,0:T(8,128)}', space=vmem, size = 0x1000, scoped, tag = 'scratch operand']
  %s0 = inlined_call_operand.vmem [shape: bf16[16,32], index: 0, kind: input, shape index: {}]
  %s1 = inlined_call_operand.vmem [shape: bf16[32,64], index: 1, kind: input, shape index: {}]
  %s2 = inlined_call_operand.vmem [shape: f32[1,64], index: 2, kind: input, shape index: {}]
  %s3 = inlined_call_operand.vmem [shape: bf16[64,32], index: 3, kind: input, shape index: {}]
  %s4 = inlined_call_operand.vmem [shape: f32[1,32], index: 4, kind: input, shape index: {}]
  %s5 = inlined_call_operand.vmem [shape: f32[16,32], index: 5, kind: input, shape index: {}]
  %s6 = inlined_call_operand.vmem [shape: f32[1,32], index: 6, kind: input, shape index: {}]
  %s7 = inlined_call_operand.vmem [shape: f32[1,32], index: 7, kind: input, shape index: {}]
  %s8 = inlined_call_operand.hbm [shape: f32[16,32], index: 8, kind: output, shape index: {}]
  %s9 = sld [smem:[#allocation0]]
  $region73: #{decode_layer.15} parent=0
    _
  %s11 = ssub.s32 1, %s9
  %s12 = scalar_select 0, %s11, %s9
  $region1: #{decode_layer.15} parent=0
    #allocation3 [shape = 'u8[8192]{0}', space=vmem, size = 0x2000, scoped, tag = 'output window, operand 0']
    #allocation4 [shape = 's32[2]{0}', space=sflag, size = 0x8, scoped, tag = 'scoped memory for decode_layer.15']
    %13 = vsyncpa [#allocation4], 0
    %s14 = scalar_lea.sflag [#allocation4], 1
    %15 = vsyncpa %s14, 0
    loop: start=0, step=1, limit=4
    $region2: #{decode_layer.15} parent=1 // loop_pre_header
      _
    $region3: #{decode_layer.15} parent=1 // loop_header
      %s17 = sphi 0, %s21
      %p18 = scmp.ge.s32.totalorder %s17, 4
      %s24 = sphi 0, %s36
      %s25 = sphi 0, %s32
      %s26 = sphi 0, %s24
      %s27 = sphi 0, %s25
      %s28 = sphi 0, %s26
      %s29 = sphi 0, %s27
      %s39 = sphi 0, %s41
      %s42 = sphi 0, %s39
      %s43 = sphi 0, %s42
      %s59 = sphi 0, %s43
      %s65 = sphi 0, %s67
      %s68 = sphi 0, %s65
      %s69 = sphi 0, %s68
      %s85 = sphi 0, %s69
      %s91 = sphi 0, %s93
      %s94 = sphi 0, %s91
      %s95 = sphi 0, %s94
      %s111 = sphi 0, %s95
      %s117 = sphi 0, %s119
      %s120 = sphi 0, %s117
      %s121 = sphi 0, %s120
      %s137 = sphi 0, %s121
      %s141 = sphi 0, %s141
      %s143 = sphi 0, %s141
      %s144 = sphi 0, %s143
      %s158 = sphi 0, %s144
      %s164 = sphi 0, %s166
      %s167 = sphi 0, %s164
      %s168 = sphi 0, %s167
      %s184 = sphi 0, %s168
      %s188 = sphi 0, %s188
      %s190 = sphi 0, %s188
      %s191 = sphi 0, %s190
      %s205 = sphi 0, %s191
      %s209 = sphi 0, %s209
      %s211 = sphi 0, %s209
      %s212 = sphi 0, %s211
      %s226 = sphi 0, %s212
      %s232 = sphi 0, %s234
      %s235 = sphi 0, %s232
      %s236 = sphi 0, %s235
      %s252 = sphi 0, %s236
    $region4: #{decode_layer.15} parent=1 // loop_header_branch
      %20 = sbr.rel (%p18) target = $region8
    $region5: #{decode_layer.15} parent=1 // loop_body
      %s22 = ssub.s32 %s17, 1
      %s23 = ssub.s32 %s17, 2
      %s30 = sadd.s32 1, %s25
      %p31 = scmp.ge.s32.totalorder %s30, 1
      %s32 = scalar_select %p31, 0, %s30
      %s33 = sadd.s32 1, %s24
      %s34 = scalar_select %p31, %s33, %s24
      %p35 = scmp.ge.s32.totalorder %s34, 2
      %s36 = scalar_select %p35, 0, %s34
      %s37 = ssub.s32 %s24, %s36
      %p38 = scmp.eq.s32.totalorder %s37, 0
      %s40 = sadd.s32 %s39, 1
      %s41 = scalar_select %p38, %s39, %s40
      %p44 = pneg %p38
      %p45 = scmp.eq.s32.totalorder %s17, 1
      %p46 = por %p44, %p45
      %p47 = scmp.ne.s32.totalorder %s39, %s42
      %p48 = scmp.eq.s32.totalorder %s17, 0
      %p49 = por %p47, %p48
      %p50 = scmp.ne.s32.totalorder %s39, %s42
      %p51 = scmp.eq.s32.totalorder %s22, 1
      %p52 = por %p50, %p51
      %p53 = scmp.ne.s32.totalorder %s42, %s43
      %p54 = scmp.eq.s32.totalorder %s22, 0
      %p55 = por %p53, %p54
      %p56 = scmp.ne.s32.totalorder %s42, %s43
      %p57 = scmp.eq.s32.totalorder %s23, 1
      %p58 = por %p56, %p57
      %p60 = scmp.ne.s32.totalorder %s43, %s59
      %p61 = scmp.eq.s32.totalorder %s23, 0
      %p62 = por %p60, %p61
      %s63 = ssub.s32 %s25, %s32
      %p64 = scmp.eq.s32.totalorder %s63, 0
      %s66 = sadd.s32 %s65, 1
      %s67 = scalar_select %p64, %s65, %s66
      %p70 = pneg %p64
      %p71 = scmp.eq.s32.totalorder %s17, 1
      %p72 = por %p70, %p71
      %p73 = scmp.ne.s32.totalorder %s65, %s68
      %p74 = scmp.eq.s32.totalorder %s17, 0
      %p75 = por %p73, %p74
      %p76 = scmp.ne.s32.totalorder %s65, %s68
      %p77 = scmp.eq.s32.totalorder %s22, 1
      %p78 = por %p76, %p77
      %p79 = scmp.ne.s32.totalorder %s68, %s69
      %p80 = scmp.eq.s32.totalorder %s22, 0
      %p81 = por %p79, %p80
      %p82 = scmp.ne.s32.totalorder %s68, %s69
      %p83 = scmp.eq.s32.totalorder %s23, 1
      %p84 = por %p82, %p83
      %p86 = scmp.ne.s32.totalorder %s69, %s85
      %p87 = scmp.eq.s32.totalorder %s23, 0
      %p88 = por %p86, %p87
      %s89 = ssub.s32 %s25, %s32
      %p90 = scmp.eq.s32.totalorder %s89, 0
      %s92 = sadd.s32 %s91, 1
      %s93 = scalar_select %p90, %s91, %s92
      %p96 = pneg %p90
      %p97 = scmp.eq.s32.totalorder %s17, 1
      %p98 = por %p96, %p97
      %p99 = scmp.ne.s32.totalorder %s91, %s94
      %p100 = scmp.eq.s32.totalorder %s17, 0
      %p101 = por %p99, %p100
      %p102 = scmp.ne.s32.totalorder %s91, %s94
      %p103 = scmp.eq.s32.totalorder %s22, 1
      %p104 = por %p102, %p103
      %p105 = scmp.ne.s32.totalorder %s94, %s95
      %p106 = scmp.eq.s32.totalorder %s22, 0
      %p107 = por %p105, %p106
      %p108 = scmp.ne.s32.totalorder %s94, %s95
      %p109 = scmp.eq.s32.totalorder %s23, 1
      %p110 = por %p108, %p109
      %p112 = scmp.ne.s32.totalorder %s95, %s111
      %p113 = scmp.eq.s32.totalorder %s23, 0
      %p114 = por %p112, %p113
      %s115 = ssub.s32 %s25, %s32
      %p116 = scmp.eq.s32.totalorder %s115, 0
      %s118 = sadd.s32 %s117, 1
      %s119 = scalar_select %p116, %s117, %s118
      %p122 = pneg %p116
      %p123 = scmp.eq.s32.totalorder %s17, 1
      %p124 = por %p122, %p123
      %p125 = scmp.ne.s32.totalorder %s117, %s120
      %p126 = scmp.eq.s32.totalorder %s17, 0
      %p127 = por %p125, %p126
      %p128 = scmp.ne.s32.totalorder %s117, %s120
      %p129 = scmp.eq.s32.totalorder %s22, 1
      %p130 = por %p128, %p129
      %p131 = scmp.ne.s32.totalorder %s120, %s121
      %p132 = scmp.eq.s32.totalorder %s22, 0
      %p133 = por %p131, %p132
      %p134 = scmp.ne.s32.totalorder %s120, %s121
      %p135 = scmp.eq.s32.totalorder %s23, 1
      %p136 = por %p134, %p135
      %p138 = scmp.ne.s32.totalorder %s121, %s137
      %p139 = scmp.eq.s32.totalorder %s23, 0
      %p140 = por %p138, %p139
      %s142 = sadd.s32 %s141, 1
      %p145 = scmp.eq.s32.totalorder %s17, 1
      %p146 = scmp.ne.s32.totalorder %s141, %s143
      %p147 = scmp.eq.s32.totalorder %s17, 0
      %p148 = por %p146, %p147
      %p149 = scmp.ne.s32.totalorder %s141, %s143
      %p150 = scmp.eq.s32.totalorder %s22, 1
      %p151 = por %p149, %p150
      %p152 = scmp.ne.s32.totalorder %s143, %s144
      %p153 = scmp.eq.s32.totalorder %s22, 0
      %p154 = por %p152, %p153
      %p155 = scmp.ne.s32.totalorder %s143, %s144
      %p156 = scmp.eq.s32.totalorder %s23, 1
      %p157 = por %p155, %p156
      %p159 = scmp.ne.s32.totalorder %s144, %s158
      %p160 = scmp.eq.s32.totalorder %s23, 0
      %p161 = por %p159, %p160
      %s162 = ssub.s32 %s24, %s36
      %p163 = scmp.eq.s32.totalorder %s162, 0
      %s165 = sadd.s32 %s164, 1
      %s166 = scalar_select %p163, %s164, %s165
      %p169 = pneg %p163
      %p170 = scmp.eq.s32.totalorder %s17, 1
      %p171 = por %p169, %p170
      %p172 = scmp.ne.s32.totalorder %s164, %s167
      %p173 = scmp.eq.s32.totalorder %s17, 0
      %p174 = por %p172, %p173
      %p175 = scmp.ne.s32.totalorder %s164, %s167
      %p176 = scmp.eq.s32.totalorder %s22, 1
      %p177 = por %p175, %p176
      %p178 = scmp.ne.s32.totalorder %s167, %s168
      %p179 = scmp.eq.s32.totalorder %s22, 0
      %p180 = por %p178, %p179
      %p181 = scmp.ne.s32.totalorder %s167, %s168
      %p182 = scmp.eq.s32.totalorder %s23, 1
      %p183 = por %p181, %p182
      %p185 = scmp.ne.s32.totalorder %s168, %s184
      %p186 = scmp.eq.s32.totalorder %s23, 0
      %p187 = por %p185, %p186
      %s189 = sadd.s32 %s188, 1
      %p192 = scmp.eq.s32.totalorder %s17, 1
      %p193 = scmp.ne.s32.totalorder %s188, %s190
      %p194 = scmp.eq.s32.totalorder %s17, 0
      %p195 = por %p193, %p194
      %p196 = scmp.ne.s32.totalorder %s188, %s190
      %p197 = scmp.eq.s32.totalorder %s22, 1
      %p198 = por %p196, %p197
      %p199 = scmp.ne.s32.totalorder %s190, %s191
      %p200 = scmp.eq.s32.totalorder %s22, 0
      %p201 = por %p199, %p200
      %p202 = scmp.ne.s32.totalorder %s190, %s191
      %p203 = scmp.eq.s32.totalorder %s23, 1
      %p204 = por %p202, %p203
      %p206 = scmp.ne.s32.totalorder %s191, %s205
      %p207 = scmp.eq.s32.totalorder %s23, 0
      %p208 = por %p206, %p207
      %s210 = sadd.s32 %s209, 1
      %p213 = scmp.eq.s32.totalorder %s17, 1
      %p214 = scmp.ne.s32.totalorder %s209, %s211
      %p215 = scmp.eq.s32.totalorder %s17, 0
      %p216 = por %p214, %p215
      %p217 = scmp.ne.s32.totalorder %s209, %s211
      %p218 = scmp.eq.s32.totalorder %s22, 1
      %p219 = por %p217, %p218
      %p220 = scmp.ne.s32.totalorder %s211, %s212
      %p221 = scmp.eq.s32.totalorder %s22, 0
      %p222 = por %p220, %p221
      %p223 = scmp.ne.s32.totalorder %s211, %s212
      %p224 = scmp.eq.s32.totalorder %s23, 1
      %p225 = por %p223, %p224
      %p227 = scmp.ne.s32.totalorder %s212, %s226
      %p228 = scmp.eq.s32.totalorder %s23, 0
      %p229 = por %p227, %p228
      %s230 = ssub.s32 %s24, %s36
      %p231 = scmp.eq.s32.totalorder %s230, 0
      %s233 = sadd.s32 %s232, 1
      %s234 = scalar_select %p231, %s232, %s233
      %p237 = pneg %p231
      %p238 = scmp.eq.s32.totalorder %s17, 1
      %p239 = por %p237, %p238
      %p240 = scmp.ne.s32.totalorder %s232, %s235
      %p241 = scmp.eq.s32.totalorder %s17, 0
      %p242 = por %p240, %p241
      %p243 = scmp.ne.s32.totalorder %s232, %s235
      %p244 = scmp.eq.s32.totalorder %s22, 1
      %p245 = por %p243, %p244
      %p246 = scmp.ne.s32.totalorder %s235, %s236
      %p247 = scmp.eq.s32.totalorder %s22, 0
      %p248 = por %p246, %p247
      %p249 = scmp.ne.s32.totalorder %s235, %s236
      %p250 = scmp.eq.s32.totalorder %s23, 1
      %p251 = por %p249, %p250
      %p253 = scmp.ne.s32.totalorder %s236, %s252
      %p254 = scmp.eq.s32.totalorder %s23, 0
      %p255 = por %p253, %p254
      %p256 = scmp.le.s32.totalorder 1, %s17
      %p257 = scmp.lt.s32.totalorder %s17, 3
      %p258 = pnand %p256, %p257
      %p259 = pneg %p258
      // Predicated region
      $region9: #{decode_layer.15} parent=5 // pred_check
        _
      $region10: #{decode_layer.15} parent=5 // pred_check_branch
        %261 = sbr.rel (%p258) target = $region12
      $region11: #{decode_layer.15} parent=5 // pred_region
        %s262 = ssub.s32 %s17, 1
        // Predicated region
        $region13: #{decode_layer.15} parent=11 // pred_check
          %p263 = pneg %p81
        $region14: #{decode_layer.15} parent=11 // pred_check_branch
          %265 = sbr.rel (%p263) target = $region16
        $region15: #{decode_layer.15} parent=11 // pred_region
          %p266 = scmp.lt.s32.totalorder %s27, 0
          %s267 = scalar_select %p266, %s27, 0
          %s268 = smul.addr %s267, 4
          %s269 = scalar_lea.vmem %s1, %s268
        $region16: #{decode_layer.15} parent=11 // pred_fallthru
          _
        // Predicated region
        $region17: #{decode_layer.15} parent=11 // pred_check
          %p270 = pneg %p107
        $region18: #{decode_layer.15} parent=11 // pred_check_branch
          %272 = sbr.rel (%p270) target = $region20
        $region19: #{decode_layer.15} parent=11 // pred_region
          %p273 = scmp.lt.s32.totalorder %s27, 0
          %s274 = scalar_select %p273, %s27, 0
          %s275 = scalar_lea.vmem %s2, %s274
        $region20: #{decode_layer.15} parent=11 // pred_fallthru
          _
        // Predicated region
        $region21: #{decode_layer.15} parent=11 // pred_check
          %p276 = pneg %p133
        $region22: #{decode_layer.15} parent=11 // pred_check_branch
          %278 = sbr.rel (%p276) target = $region24
        $region23: #{decode_layer.15} parent=11 // pred_region
          %s279 = smul.u32 8, %s27
          %p280 = scmp.lt.s32.totalorder %s279, 7
          %s281 = scalar_select %p280, %s279, 7
          %s282 = smul.addr %s281, 4
          %s283 = scalar_lea.vmem %s3, %s282
          %s284 = smul.u32 8, %s27
        $region24: #{decode_layer.15} parent=11 // pred_fallthru
          _
        // Predicated region
        $region25: #{decode_layer.15} parent=11 // pred_check
          %p285 = pneg %p154
        $region26: #{decode_layer.15} parent=11 // pred_check_branch
          %287 = sbr.rel (%p285) target = $region28
        $region27: #{decode_layer.15} parent=11 // pred_region
          _
        $region28: #{decode_layer.15} parent=11 // pred_fallthru
          _
        // Predicated region
        $region29: #{decode_layer.15} parent=11 // pred_check
          %p288 = pneg %p201
        $region30: #{decode_layer.15} parent=11 // pred_check_branch
          %290 = sbr.rel (%p288) target = $region32
        $region31: #{decode_layer.15} parent=11 // pred_region
          _
        $region32: #{decode_layer.15} parent=11 // pred_fallthru
          _
        // Predicated region
        $region33: #{decode_layer.15} parent=11 // pred_check
          %p291 = pneg %p222
        $region34: #{decode_layer.15} parent=11 // pred_check_branch
          %293 = sbr.rel (%p291) target = $region36
        $region35: #{decode_layer.15} parent=11 // pred_region
          _
        $region36: #{decode_layer.15} parent=11 // pred_fallthru
          _
      $region12: #{decode_layer.15} parent=5 // pred_fallthru
        _
      %p294 = scmp.lt.s32.totalorder %s17, 2
      // Predicated region
      $region37: #{decode_layer.15} parent=5 // pred_check
        %p295 = pneg %p294
      $region38: #{decode_layer.15} parent=5 // pred_check_branch
        %297 = sbr.rel (%p295) target = $region40
      $region39: #{decode_layer.15} parent=5 // pred_region
        // Predicated region
        $region41: #{decode_layer.15} parent=39 // pred_check
          %p298 = pneg %p49
        $region42: #{decode_layer.15} parent=39 // pred_check_branch
          %300 = sbr.rel (%p298) target = $region44
        $region43: #{decode_layer.15} parent=39 // pred_region
          %p301 = scmp.lt.s32.totalorder %s24, 1
          %s302 = scalar_select %p301, %s24, 1
          %s303 = smul.addr %s302, 4
          %s304 = scalar_lea.vmem %s0, %s303
        $region44: #{decode_layer.15} parent=39 // pred_fallthru
          _
        // Predicated region
        $region45: #{decode_layer.15} parent=39 // pred_check
          %p305 = pneg %p174
        $region46: #{decode_layer.15} parent=39 // pred_check_branch
          %307 = sbr.rel (%p305) target = $region48
        $region47: #{decode_layer.15} parent=39 // pred_region
          %p308 = scmp.lt.s32.totalorder %s24, 1
          %s309 = scalar_select %p308, %s24, 1
          %s310 = smul.addr %s309, 8
          %s311 = scalar_lea.vmem %s5, %s310
        $region48: #{decode_layer.15} parent=39 // pred_fallthru
          _
      $region40: #{decode_layer.15} parent=5 // pred_fallthru
        _
      %p312 = scmp.le.s32.totalorder 1, %s17
      %p313 = scmp.lt.s32.totalorder %s17, 3
      %p314 = pnand %p312, %p313
      %p315 = pneg %p314
      // Predicated region
      $region49: #{decode_layer.15} parent=5 // pred_check
        _
      $region50: #{decode_layer.15} parent=5 // pred_check_branch
        %317 = sbr.rel (%p314) target = $region52
      $region51: #{decode_layer.15} parent=5 // pred_region
        %s318 = ssub.s32 %s17, 1
        %p319 = scmp.lt.s32.totalorder %s26, 1
        %s320 = scalar_select %p319, %s26, 1
        %s321 = smul.addr %s320, 4
        %s322 = scalar_lea.vmem %s0, %s321
        %p323 = pneg %p55
        %p324 = pneg %p52
        %p325 = scmp.lt.s32.totalorder %s27, 0
        %s326 = scalar_select %p325, %s27, 0
        %s327 = smul.addr %s326, 4
        %s328 = scalar_lea.vmem %s1, %s327
        %p329 = pneg %p81
        %p330 = pneg %p78
        %p331 = scmp.lt.s32.totalorder %s27, 0
        %s332 = scalar_select %p331, %s27, 0
        %s333 = scalar_lea.vmem %s2, %s332
        %p334 = pneg %p107
        %p335 = pneg %p104
        %s336 = smul.u32 8, %s27
        %p337 = scmp.lt.s32.totalorder %s336, 7
        %s338 = scalar_select %p337, %s336, 7
        %s339 = smul.addr %s338, 4
        %s340 = scalar_lea.vmem %s3, %s339
        %p341 = pneg %p133
        %p342 = pneg %p130
        %p343 = pneg %p154
        %p344 = pneg %p151
        %p345 = scmp.lt.s32.totalorder %s26, 1
        %s346 = scalar_select %p345, %s26, 1
        %s347 = smul.addr %s346, 8
        %s348 = scalar_lea.vmem %s5, %s347
        %p349 = pneg %p180
        %p350 = pneg %p177
        %p351 = pneg %p201
        %p352 = pneg %p198
        %p353 = pneg %p222
        %p354 = pneg %p219
        %p355 = pneg %p248
        %p356 = pneg %p245
        %s357 = sand.u32 %s235, 1
        %s358 = scalar_lea.sflag [#allocation4], %s357
        %s359 = sand.u32 %s235, 1
        %s360 = smul.addr %s359, 8
        %s361 = scalar_lea.vmem [#allocation3], %s360
        %p362 = scmp.lt.s32.totalorder %s26, 1
        %s363 = scalar_select %p362, %s26, 1
        %s364 = smul.addr %s363, 4
        %s365 = scalar_lea.vmem %s0, %s364
        %p366 = scmp.lt.s32.totalorder %s27, 0
        %s367 = scalar_select %p366, %s27, 0
        %s368 = smul.addr %s367, 4
        %s369 = scalar_lea.vmem %s1, %s368
        %p370 = scmp.lt.s32.totalorder %s27, 0
        %s371 = scalar_select %p370, %s27, 0
        %s372 = scalar_lea.vmem %s2, %s371
        %s373 = smul.u32 8, %s27
        %p374 = scmp.lt.s32.totalorder %s373, 7
        %s375 = scalar_select %p374, %s373, 7
        %s376 = smul.addr %s375, 4
        %s377 = scalar_lea.vmem %s3, %s376
        %s378 = smul.u32 8, %s27
        %p379 = scmp.lt.s32.totalorder %s26, 1
        %s380 = scalar_select %p379, %s26, 1
        %s381 = smul.addr %s380, 8
        %s382 = scalar_lea.vmem %s5, %s381
        %p384 = scmp.eq.s32.totalorder %s27, 0
        // Predicated region
        $region53: #{decode_layer.15} parent=51 // pred_check
          %p385 = pneg %p384
        $region54: #{decode_layer.15} parent=51 // pred_check_branch
          %387 = sbr.rel (%p385) target = $region56
        $region55: #{decode_layer.15} parent=51 // pred_region
          %vm388 = vcmask 261120
          %389 = vst.msk [vmem:[#allocation2] sm:$0xff] %vm388, 0.0
        $region56: #{decode_layer.15} parent=51 // pred_fallthru
          _
        %v390 = vld [vmem:[%s365] sm:$0xf]
        %v391 = vld [vmem:[%s369] sm:$0xf]
        %v392 = vld [vmem:[%s369 + $0x4] sm:$0xf]
        %v393 = vld [vmem:[%s369 + $0x8] sm:$0xf]
        %v394 = vld [vmem:[%s369 + $0xc] sm:$0xf]
        %v395 = vld [vmem:[%s372] sm:$0x1]
        %v397 = vlaneseq
        %v398 = vshrl.u32 %v397, 7
        %v399 = vsub.s32 0, %v398
        %v400 = vrot.slane %v395, %v399
        %v406 = vunpack.c.l.b16 %v391
        %v407 = vunpack.c.l.b16 %v392
        %v408 = vunpack.c.l.b16 %v393
        %v409 = vunpack.c.l.b16 %v394
        %v410 = vpack.c.b16 %v407, %v406
        %v411 = vpack.c.b16 %v409, %v408
        %vm414 = vcmask 261120
        %v416 = vsel %vm414, %v390, 0
        %418 = vmatprep.subr.bf16.mxu0 0
        %419 = vmatpush1.bf16.msra.mxu0 %v410
        %420 = vmatprep.subr.bf16.mxu0 0
        %421 = vmatpush1.bf16.msra.mxu0 %v411
        %422 = vmatprep.subr.bf16.mxu0 0
        %423 = vmatpush1.bf16.msra.mxu0 0
        %424 = vmatprep.subr.bf16.mxu0 0
        %425 = vmatpush1.bf16.msra.mxu0 0
        %426 = vmatprep.subr.bf16.mxu0 0
        %427 = vmatpush1.bf16.msra.mxu0 0
        %428 = vmatprep.subr.bf16.mxu0 0
        %429 = vmatpush1.bf16.msra.mxu0 0
        %430 = vmatprep.subr.bf16.mxu0 0
        %431 = vmatpush1.bf16.msra.mxu0 0
        %432 = vmatprep.subr.bf16.mxu0 0
        %433 = vmatpush1.bf16.msra.mxu0 0
        %434 = vmatprep.subr.bf16.mxu0 0
        %435 = vmatpush1.bf16.msra.mxu0 0
        %436 = vmatprep.subr.bf16.mxu0 0
        %437 = vmatpush1.bf16.msra.mxu0 0
        %438 = vmatprep.subr.bf16.mxu0 0
        %439 = vmatpush1.bf16.msra.mxu0 0
        %440 = vmatprep.subr.bf16.mxu0 0
        %441 = vmatpush1.bf16.msra.mxu0 0
        %442 = vmatprep.subr.bf16.mxu0 0
        %443 = vmatpush1.bf16.msra.mxu0 0
        %444 = vmatprep.subr.bf16.mxu0 0
        %445 = vmatpush1.bf16.msra.mxu0 0
        %446 = vmatprep.subr.bf16.mxu0 0
        %447 = vmatpush1.bf16.msra.mxu0 0
        %448 = vmatprep.subr.bf16.mxu0 0
        %449 = vmatpush1.bf16.msra.mxu0 0
        %450 = vmatprep.mubr.bf16.mxu0 0
        %451 = vmatmul.mubr.bf16.gmra.mrb[0].mxu0 %v416
        %v452 = vpop.f32.mrb[0].mxu0
        %v453 = vadd.f32 %v400, %v452
        %v454 = vpop.f32.mrb[0].mxu0
        %v455 = vpop.f32.mrb[0].mxu0
        %v456 = vpop.f32.mrb[0].mxu0
        %457 = vdwg.mxu0
        %v458 = vmax.f32 %v453, 0.0
        %v459 = vpack.c.bf16 %v458, %v458
        %v460 = vld [vmem:[#allocation2] sm:$0xff]
        %v461 = vld [vmem:[%s377] sm:$0xf]
        %v462 = vld [vmem:[%s377 + $0x4] sm:$0xf]
        %v463 = vld [vmem:[%s377 + $0x8] sm:$0xf]
        %v464 = vld [vmem:[%s377 + $0xc] sm:$0xf]
        %v465 = vld [vmem:[%s377 + $0x10] sm:$0xf]
        %v466 = vld [vmem:[%s377 + $0x14] sm:$0xf]
        %v467 = vld [vmem:[%s377 + $0x18] sm:$0xf]
        %v468 = vld [vmem:[%s377 + $0x1c] sm:$0xf]
        %v477 = vunpack.c.l.b16 %v461
        %v478 = vunpack.c.l.b16 %v462
        %v479 = vunpack.c.l.b16 %v463
        %v480 = vunpack.c.l.b16 %v464
        %v481 = vunpack.c.l.b16 %v465
        %v482 = vunpack.c.l.b16 %v466
        %v483 = vunpack.c.l.b16 %v467
        %v484 = vunpack.c.l.b16 %v468
        %v485 = vpack.c.b16 %v478, %v477
        %v486 = vpack.c.b16 %v480, %v479
        %v487 = vpack.c.b16 %v482, %v481
        %v488 = vpack.c.b16 %v484, %v483
        %vm493 = vcmask 523264
        %v495 = vsel %vm493, %v459, 0
        %497 = vmatprep.subr.bf16.mxu0 0
        %498 = vmatpush1.bf16.msra.mxu0 %v485
        %499 = vmatprep.subr.bf16.mxu0 0
        %500 = vmatpush1.bf16.msra.mxu0 %v486
        %501 = vmatprep.subr.bf16.mxu0 0
        %502 = vmatpush1.bf16.msra.mxu0 %v487
        %503 = vmatprep.subr.bf16.mxu0 0
        %504 = vmatpush1.bf16.msra.mxu0 %v488
        %505 = vmatprep.subr.bf16.mxu0 0
        %506 = vmatpush1.bf16.msra.mxu0 0
        %507 = vmatprep.subr.bf16.mxu0 0
        %508 = vmatpush1.bf16.msra.mxu0 0
        %509 = vmatprep.subr.bf16.mxu0 0
        %510 = vmatpush1.bf16.msra.mxu0 0
        %511 = vmatprep.subr.bf16.mxu0 0
        %512 = vmatpush1.bf16.msra.mxu0 0
        %513 = vmatprep.subr.bf16.mxu0 0
        %514 = vmatpush1.bf16.msra.mxu0 0
        %515 = vmatprep.subr.bf16.mxu0 0
        %516 = vmatpush1.bf16.msra.mxu0 0
        %517 = vmatprep.subr.bf16.mxu0 0
        %518 = vmatpush1.bf16.msra.mxu0 0
        %519 = vmatprep.subr.bf16.mxu0 0
        %520 = vmatpush1.bf16.msra.mxu0 0
        %521 = vmatprep.subr.bf16.mxu0 0
        %522 = vmatpush1.bf16.msra.mxu0 0
        %523 = vmatprep.subr.bf16.mxu0 0
        %524 = vmatpush1.bf16.msra.mxu0 0
        %525 = vmatprep.subr.bf16.mxu0 0
        %526 = vmatpush1.bf16.msra.mxu0 0
        %527 = vmatprep.subr.bf16.mxu0 0
        %528 = vmatpush1.bf16.msra.mxu0 0
        %529 = vmatprep.mubr.bf16.mxu0 0
        %530 = vmatmul.mubr.bf16.gmra.mrb[0].mxu0 %v495
        %v531 = vpop.f32.mrb[0].mxu0
        %v532 = vadd.f32 0.0, %v531
        %v533 = vpop.f32.mrb[0].mxu0
        %v534 = vpop.f32.mrb[0].mxu0
        %v535 = vpop.f32.mrb[0].mxu0
        %536 = vdwg.mxu0
        %v537 = vadd.f32 %v460, %v532
        %538 = vst.msk [vmem:[#allocation2] sm:$0xff] %vm414, %v537
        // Predicated region
        $region57: #{decode_layer.15} parent=51 // pred_check
          %p539 = pneg %p384
        $region58: #{decode_layer.15} parent=51 // pred_check_branch
          %541 = sbr.rel (%p539) target = $region60
        $region59: #{decode_layer.15} parent=51 // pred_region
          %v542 = vld [vmem:[#allocation2] sm:$0xff]
          %v543 = vld [vmem:[%s4] sm:$0x1]
          %v545 = vlaneseq
          %v546 = vshrl.u32 %v545, 7
          %v547 = vsub.s32 0, %v546
          %v548 = vrot.slane %v543, %v547
          %v550 = vadd.f32 %v542, %v548
          %v551 = vmax.f32 %v550, 0.0
          %v552 = vld [vmem:[%s382] sm:$0xff]
          %v553 = vadd.f32 %v551, %v552
          %v554 = vsel %vm414, %v553, 0.0
          %555 = vadd.xlane.f32.xlu0 %v554
          %v556 = vpop.xlane.xlu0 %555
          %v557 = vrcp.pop 32.0
          %v558 = vmul.f32 %v556, %v557
          %v559 = vsub.f32 %v553, %v558
          %v560 = vmul.f32 %v559, %v559
          %v561 = vsel %vm414, %v560, 0.0
          %562 = vadd.xlane.f32.xlu0 %v561
          %v563 = vpop.xlane.xlu0 %562
          %v564 = vmul.f32 %v563, %v557
          %v565 = vadd.f32 %v564, 1e-05
          %v566 = vrsqrt.pop %v565
          %v567 = vmul.f32 %v559, %v566
          %v568 = vld [vmem:[%s6] sm:$0x1]
          %v570 = vlaneseq
          %v571 = vshrl.u32 %v570, 7
          %v572 = vsub.s32 0, %v571
          %v573 = vrot.slane %v568, %v572
          %v575 = vmul.f32 %v567, %v573
          %v576 = vld [vmem:[%s7] sm:$0x1]
          %v578 = vlaneseq
          %v579 = vshrl.u32 %v578, 7
          %v580 = vsub.s32 0, %v579
          %v581 = vrot.slane %v576, %v580
          %v583 = vadd.f32 %v575, %v581
          %584 = vst.msk [vmem:[%s361] sm:$0xff] %vm414, %v583
        $region60: #{decode_layer.15} parent=51 // pred_fallthru
          _
        %s585 = sand.u32 %s235, 1
        %s586 = scalar_lea.sflag [#allocation4], %s585
        %s587 = sand.u32 %s235, 1
        %s588 = smul.addr %s587, 8
        %s589 = scalar_lea.vmem [#allocation3], %s588
        // Predicated region
        $region61: #{decode_layer.15} parent=51 // pred_check
          %p590 = pneg %p245
        $region62: #{decode_layer.15} parent=51 // pred_check_branch
          %592 = sbr.rel (%p590) target = $region64
        $region63: #{decode_layer.15} parent=51 // pred_region
          %s594 = ssub.s32 128, 128
          %595 = vsyncadd %s586, %s594
          %s596 = smul.addr %s26, 128
          %s597 = scalar_lea.hbm %s8, %s596
          %s599 = sshll.u32 %s589, 4
          %s600 = int_to_ptr.vmem [resolvable:$true] %s599
          %602 = dma.vmem_to_hbm [thread:$0]  %s600, 128, %s597, %s586
        $region64: #{decode_layer.15} parent=51 // pred_fallthru
          _
      $region52: #{decode_layer.15} parent=5 // pred_fallthru
        _
      %p603 = scmp.le.s32.totalorder 2, %s17
      // Predicated region
      $region65: #{decode_layer.15} parent=5 // pred_check
        %p604 = pneg %p603
      $region66: #{decode_layer.15} parent=5 // pred_check_branch
        %606 = sbr.rel (%p604) target = $region68
      $region67: #{decode_layer.15} parent=5 // pred_region
        %s607 = ssub.s32 %s17, 2
        // Predicated region
        $region69: #{decode_layer.15} parent=67 // pred_check
          %p608 = pneg %p251
        $region70: #{decode_layer.15} parent=67 // pred_check_branch
          %610 = sbr.rel (%p608) target = $region72
        $region71: #{decode_layer.15} parent=67 // pred_region
          %s611 = sand.u32 %s236, 1
          %s612 = scalar_lea.sflag [#allocation4], %s611
          %s613 = sand.u32 %s236, 1
          %s614 = smul.addr %s613, 8
          %s615 = scalar_lea.vmem [#allocation3], %s614
          %616 = dma.done %s612, 128
        $region72: #{decode_layer.15} parent=67 // pred_fallthru
          _
      $region68: #{decode_layer.15} parent=5 // pred_fallthru
        _
    $region6: #{decode_layer.15} parent=1 // loop_footer
      %s21 = sadd.s32 1, %s17
    $region7: #{decode_layer.15} parent=1 // loop_footer_branch
      %16 = sbr.rel target = $region3
    $region8: #{decode_layer.15} parent=1 // loop_exit
      _
    %617 = vsyncpa [#allocation4], 1
    %s618 = scalar_lea.sflag [#allocation4], 1
    %619 = vsyncpa %s618, 1

</llo_original>
